<compile_context>
chip_gen: v5e
topology: v5e:2x2
jax: 0.10.0
libtpu: 0.0.40
codegen_flags: <defaults>
</compile_context>

<pallas_src>
import functools
import numpy as np
import jax
import jax.numpy as jnp
from jax import lax
from jax.experimental import pallas as pl
from jax.experimental.pallas import tpu as pltpu

LRELU = 0.01
EPS = 1e-5


# ---------------------------- fused Pallas kernel ----------------------------

def _make_decoder_kernel(C, Cp, Co, D, H, W, upsample):
    S = D * H * W
    HW = H * W
    HALO = pl.cdiv(HW + W + 1, 128) * 128           # lane-aligned halo width

    # Tap order must match the weight reshape: tap = kd*9 + kh*3 + kw.
    TAPS = [(kd, kh, kw) for kd in range(3) for kh in range(3) for kw in range(3)]

    def kernel(*refs):
        if upsample:
            (masks_ref, x_ref, w1_ref, w2_ref, w3_ref, b3_ref,
             o_ref, halo_ref, cols_ref) = refs
        else:
            masks_ref, x_ref, w1_ref, w2_ref, o_ref, halo_ref, cols_ref = refs

        # Host-precomputed, bit-packed boundary masks:
        #   row 0, bits 0..8 : the 9 (kh,kw) conv validity masks
        #   row 1, bits 0..5 : d==0, d==D-1, h==0, h==H-1, w==0, w==W-1 (upsample)
        hw_bits = masks_ref[0:1, :]                                  # (1, S) int32
        hw_valid = [((hw_bits >> j) & 1) != 0 for j in range(9)]

        # Zero the halo scratch each invocation (cheap; halos + padded rows stay 0,
        # and this does not rely on program_id==0 running on every core).
        halo_ref[...] = jnp.zeros_like(halo_ref)

        def norm_lrelu(v):                      # (C, S): InstanceNorm3d + LeakyReLU
            mean = jnp.mean(v, axis=1, keepdims=True)
            c = v - mean                                         # reuse centered val
            var = jnp.mean(c * c, axis=1, keepdims=True)
            y = c * lax.rsqrt(var + EPS)
            return jnp.where(y >= 0, y, LRELU * y)

        def conv3(v, w_ref):                    # (C, S) -> (C, S), pad=1, no bias
            # Stage into the zero-halo scratch: rows C..Cp-1 and the halo columns
            # remain zero, so d-direction zero padding needs no mask at all.
            halo_ref[0:C, HALO:HALO + S] = v
            for t, (kd, kh, kw) in enumerate(TAPS):
                off = HALO + (kd - 1) * HW + (kh - 1) * W + (kw - 1)
                piece = halo_ref[:, off:off + S]                 # (Cp, S) shifted load
                cols_ref[t * Cp:(t + 1) * Cp, :] = jnp.where(
                    hw_valid[kh * 3 + kw], piece, 0.0)           # 8-aligned store
            # single MXU matmul, bf16 operands, f32 accumulation
            return jnp.dot(w_ref[...], cols_ref[...].astype(jnp.bfloat16),
                           preferred_element_type=jnp.float32)

        y = x_ref[0].astype(jnp.float32)                         # (C, S)
        y = conv3(norm_lrelu(y), w1_ref)
        y = conv3(norm_lrelu(y), w2_ref)

        if not upsample:
            o_ref[0] = y.astype(o_ref.dtype)
            return

        # 1x1x1 conv with bias (bf16 MXU operands, f32 accumulate + bias).
        z = jnp.dot(w3_ref[...], y.astype(jnp.bfloat16),
                    preferred_element_type=jnp.float32) + b3_ref[...]

        bnd = masks_ref[1:2, :]
        d_first = ((bnd >> 0) & 1) != 0
        d_last = ((bnd >> 1) & 1) != 0
        h_first = ((bnd >> 2) & 1) != 0
        h_last = ((bnd >> 3) & 1) != 0
        w_first = ((bnd >> 4) & 1) != 0
        w_last = ((bnd >> 5) & 1) != 0

        # Trilinear x2, align_corners=False (half-pixel centers, edge clamp).
        def interp(v, first, last, step, parity):
            if parity == 0:      # out 2i   : 0.25*v[i-1] + 0.75*v[i]
                prev = jnp.where(first, v, pltpu.roll(v, step, axis=1))
                return 0.25 * prev + 0.75 * v
            else:                # out 2i+1 : 0.75*v[i] + 0.25*v[i+1]
                nxt = jnp.where(last, v, pltpu.roll(v, (S - step) % S, axis=1))
                return 0.75 * v + 0.25 * nxt

        slabs = []
        for pd in range(2):
            vd = interp(z, d_first, d_last, HW, pd)
            for ph in range(2):
                vh = interp(vd, h_first, h_last, W, ph)
                for pw in range(2):
                    slabs.append(interp(vh, w_first, w_last, 1, pw))
        # one dense (8*Co, S) store instead of 8 masked (Co, S) partial stores
        o_ref[0] = jnp.concatenate(slabs, axis=0).astype(o_ref.dtype)

    return kernel


def _decoder_pallas(x_flat, masks, weights, *, C, Cp, Co, D, H, W, upsample):
    N = x_flat.shape[0]
    S = D * H * W
    HW = H * W
    HALO = pl.cdiv(HW + W + 1, 128) * 128
    kernel = _make_decoder_kernel(C, Cp, Co, D, H, W, upsample)
    const2 = lambda n: (0, 0)

    in_specs = [
        pl.BlockSpec((8, S), const2),                      # bit-packed boundary masks
        pl.BlockSpec((1, C, S), lambda n: (n, 0, 0)),      # activations, lane-dense
        pl.BlockSpec((C, 27 * Cp), const2),                # conv1 weights (bf16)
        pl.BlockSpec((C, 27 * Cp), const2),                # conv2 weights (bf16)
    ]
    if upsample:
        in_specs += [
            pl.BlockSpec((Co, C), const2),                 # 1x1 weights (bf16)
            pl.BlockSpec((Co, 1), const2),                 # 1x1 bias (f32)
        ]
        out_spec = pl.BlockSpec((1, 8 * Co, S), lambda n: (n, 0, 0))
        out_shape = jax.ShapeDtypeStruct((N, 8 * Co, S), x_flat.dtype)
        out_elems = N * 8 * Co * S
    else:
        out_spec = pl.BlockSpec((1, C, S), lambda n: (n, 0, 0))
        out_shape = jax.ShapeDtypeStruct((N, C, S), x_flat.dtype)
        out_elems = N * C * S

    scratch_shapes = [
        pltpu.VMEM((Cp, S + 2 * HALO), jnp.float32),       # zero-halo normed activation
        pltpu.VMEM((27 * Cp, S), jnp.float32),             # 8-aligned im2col columns
    ]

    flops = N * (2 * (2 * C * 27 * Cp * S))                # two 3x3x3 convs
    if upsample:
        flops += N * (2 * Co * C * S + 8 * Co * S * 6)     # 1x1 conv + trilinear lerps
    bytes_accessed = (x_flat.size * 4 + out_elems * 4 + masks.size * 4 +
                      sum(int(w.size) * w.dtype.itemsize for w in weights))
    cost = pl.CostEstimate(flops=int(flops), transcendentals=int(N * 2 * C),
                           bytes_accessed=int(bytes_accessed))

    return pl.pallas_call(
        kernel,
        out_shape=out_shape,
        grid=(N,),
        in_specs=in_specs,
        out_specs=out_spec,
        scratch_shapes=scratch_shapes,
        compiler_params=pltpu.CompilerParams(
            dimension_semantics=("parallel",),             # shard N across TCs on v7x
            vmem_limit_bytes=64 * 1024 * 1024),
        cost_estimate=cost,
    )(masks, x_flat, *weights)


# ---------------------------- host-side helpers ----------------------------

def _build_masks(D, H, W):
    """Bit-packed boundary masks, built once at trace time (no in-kernel // %)."""
    S = D * H * W
    flat = np.arange(S)
    d_idx = flat // (H * W)
    h_idx = (flat // W) % H
    w_idx = flat % W
    row0 = np.zeros(S, np.int64)
    for kh in range(3):
        for kw in range(3):
            ok = ((h_idx + kh - 1 >= 0) & (h_idx + kh - 1 < H) &
                  (w_idx + kw - 1 >= 0) & (w_idx + kw - 1 < W))
            row0 |= ok.astype(np.int64) << (kh * 3 + kw)
    row1 = ((d_idx == 0).astype(np.int64) << 0) | ((d_idx == D - 1).astype(np.int64) << 1) | \
           ((h_idx == 0).astype(np.int64) << 2) | ((h_idx == H - 1).astype(np.int64) << 3) | \
           ((w_idx == 0).astype(np.int64) << 4) | ((w_idx == W - 1).astype(np.int64) << 5)
    masks = np.zeros((8, S), np.int32)
    masks[0] = row0.astype(np.int32)
    masks[1] = row1.astype(np.int32)
    return jnp.asarray(masks)


def _prep_conv_w(w, Cp):
    """(3,3,3,Ci,Co) DHWIO -> (Co, 27*Cp) bf16, Ci zero-padded to Cp (col = tap*Cp+ci)."""
    Ci, Co = w.shape[3], w.shape[4]
    wp = jnp.zeros((3, 3, 3, Cp, Co), w.dtype).at[:, :, :, :Ci, :].set(w)
    return wp.reshape(27 * Cp, Co).T.astype(jnp.bfloat16)


# ---------------------------- Decoder forward ----------------------------

def init_decoder_params(key, channels, out_channel):
    ks = jax.random.split(key, 4)
    params = {
        # conv3x3 weights stored DHWIO (kd, kh, kw, Cin, Cout)
        "w_b1": 0.1 * jax.random.normal(ks[0], (3, 3, 3, channels, channels), jnp.float32),
        "w_b2": 0.1 * jax.random.normal(ks[1], (3, 3, 3, channels, channels), jnp.float32),
    }
    if out_channel != channels:
        params["w_1x1"] = 0.1 * jax.random.normal(ks[2], (channels, out_channel), jnp.float32)
        params["b_1x1"] = 0.1 * jax.random.normal(ks[3], (out_channel,), jnp.float32)
    return params


def decoder_forward(x_ncdhw, params):
    # Mirrors Decoder: upsample <=> out_channel != channels <=> 1x1 conv present.
    return _decoder_forward(x_ncdhw, params, "w_1x1" in params)


@functools.partial(jax.jit, static_argnames=("upsample",))
def _decoder_forward(x_ncdhw, params, upsample):
    N, C, D, H, W = x_ncdhw.shape
    Cp = ((C + 7) // 8) * 8                       # sublane-pad Cin for the im2col scratch
    S = D * H * W
    x_flat = x_ncdhw.reshape(N, C, S)             # pure metadata, no transpose
    masks = _build_masks(D, H, W)                 # trace-time constant
    w1 = _prep_conv_w(params["w_b1"], Cp)
    w2 = _prep_conv_w(params["w_b2"], Cp)
    if upsample:
        Co = params["w_1x1"].shape[-1]
        w3 = params["w_1x1"].T.astype(jnp.bfloat16)          # (Co, C)
        b3 = params["b_1x1"].reshape(Co, 1).astype(jnp.float32)
        y8 = _decoder_pallas(x_flat, masks, (w1, w2, w3, b3), C=C, Cp=Cp, Co=Co,
                             D=D, H=H, W=W, upsample=True)   # (N, 8*Co, S)
        # glue: interleave the 8 parity slabs into the 2x grid (output-sized transpose)
        y = y8.reshape(N, 2, 2, 2, Co, D, H, W)
        y = jnp.transpose(y, (0, 4, 5, 1, 6, 2, 7, 3))
        return y.reshape(N, Co, 2 * D, 2 * H, 2 * W)
    y = _decoder_pallas(x_flat, masks, (w1, w2), C=C, Cp=Cp, Co=C,
                        D=D, H=H, W=W, upsample=False)
    return y.reshape(N, C, D, H, W)


# ---------------------------- pure-JAX reference ----------------------------

def ref_decoder(x_ncdhw, params, upsample=True):
    x = jnp.transpose(x_ncdhw, (0, 2, 3, 4, 1)).astype(jnp.float32)   # NDHWC

    def block(x, w):
        mean = jnp.mean(x, axis=(1, 2, 3), keepdims=True)
        var = jnp.mean(jnp.square(x - mean), axis=(1, 2, 3), keepdims=True)
        y = (x - mean) * lax.rsqrt(var + EPS)
        y = jnp.where(y >= 0, y, LRELU * y)
        return lax.conv_general_dilated(
            y, w, window_strides=(1, 1, 1), padding="SAME",
            dimension_numbers=("NDHWC", "DHWIO", "NDHWC"),
            precision=lax.Precision.HIGHEST)

    x = block(x, params["w_b1"])
    x = block(x, params["w_b2"])
    if upsample:
        x = jnp.einsum("ndhwi,io->ndhwo", x, params["w_1x1"],
                       precision=lax.Precision.HIGHEST) + params["b_1x1"]

        def up_mat(s):  # PyTorch trilinear, align_corners=False
            m = np.zeros((2 * s, s), np.float32)
            for o in range(2 * s):
                src = max((o + 0.5) / 2.0 - 0.5, 0.0)
                i0 = int(np.floor(src))
                i1 = min(i0 + 1, s - 1)
                lam = src - i0
                m[o, i0] += 1.0 - lam
                m[o, i1] += lam
            return jnp.asarray(m)

        N, D, H, W, C = x.shape
        x = jnp.einsum("ad,ndhwk->nahwk", up_mat(D), x)
        x = jnp.einsum("bh,nahwk->nabwk", up_mat(H), x)
        x = jnp.einsum("gw,nabwk->nabgk", up_mat(W), x)
    return jnp.transpose(x, (0, 4, 1, 2, 3))             # NDHWC -> NCDHW


# ---------------------------- main ----------------------------

if __name__ == "__main__":
    channels, out_channel = 4, 2        # out_channel != channels -> upsample path
    N, D, H, W = 2, 8, 8, 8
    key = jax.random.PRNGKey(0)
    kp, kx = jax.random.split(key)
    params = init_decoder_params(kp, channels, out_channel)
    x = jax.random.normal(kx, (N, channels, D, H, W), jnp.float32)

    out = jax.block_until_ready(decoder_forward(x, params))
    assert out.shape == (N, out_channel, 2 * D, 2 * H, 2 * W), out.shape

    ref = jax.block_until_ready(ref_decoder(x, params, upsample=True))
    err = float(jnp.max(jnp.abs(out - ref)))
    assert err < 2e-2, f"max abs err {err}"
    print("KERNEL_OK")
</pallas_src>

<mosaic_0001>
module attributes {stable_mosaic.version = 11 : i64} {
  func.func @kernel(%arg0: i32, %arg1: memref<8x512xi32, #tpu.memory_space<vmem>>, %arg2: memref<1x4x512xf32, #tpu.memory_space<vmem>>, %arg3: memref<4x216xbf16, #tpu.memory_space<vmem>>, %arg4: memref<4x216xbf16, #tpu.memory_space<vmem>>, %arg5: memref<2x4xbf16, #tpu.memory_space<vmem>>, %arg6: memref<2x1xf32, #tpu.memory_space<vmem>>, %arg7: memref<1x16x512xf32, #tpu.memory_space<vmem>>, %arg8: memref<8x768xf32, #tpu.memory_space<vmem>>, %arg9: memref<216x512xf32, #tpu.memory_space<vmem>>) attributes {dimension_semantics = [#tpu.dimension_semantics<parallel>], iteration_bounds = array<i64: 2>, scalar_prefetch = 0 : i64, scratch_operands = 2 : i64, tpu.core_type = #tpu.core_type<tc>, window_params = [{pipeline_mode = #tpu.pipeline_mode<synchronous>, transform_indices = @transform_0, window_bounds = array<i64: 8, 512>}, {transform_indices = @transform_1, window_bounds = array<i64: 1, 4, 512>}, {pipeline_mode = #tpu.pipeline_mode<synchronous>, transform_indices = @transform_2, window_bounds = array<i64: 4, 216>}, {pipeline_mode = #tpu.pipeline_mode<synchronous>, transform_indices = @transform_3, window_bounds = array<i64: 4, 216>}, {pipeline_mode = #tpu.pipeline_mode<synchronous>, transform_indices = @transform_4, window_bounds = array<i64: 2, 4>}, {pipeline_mode = #tpu.pipeline_mode<synchronous>, transform_indices = @transform_5, window_bounds = array<i64: 2, 1>}, {transform_indices = @transform_6, window_bounds = array<i64: 1, 16, 512>}]} {
    %c0 = arith.constant 0 : index
    %c0_0 = arith.constant 0 : index
    %0 = vector.load %arg1[%c0, %c0_0] : memref<8x512xi32, #tpu.memory_space<vmem>>, vector<1x512xi32>
    %c0_i32 = arith.constant 0 : i32
    %1 = vector.broadcast %c0_i32 : i32 to vector<1x512xi32>
    %2 = arith.shrsi %0, %1 : vector<1x512xi32>
    %c1_i32 = arith.constant 1 : i32
    %3 = vector.broadcast %c1_i32 : i32 to vector<1x512xi32>
    %4 = arith.andi %2, %3 : vector<1x512xi32>
    %c0_i32_1 = arith.constant 0 : i32
    %5 = vector.broadcast %c0_i32_1 : i32 to vector<1x512xi32>
    %6 = arith.cmpi ne, %4, %5 : vector<1x512xi32>
    %c1_i32_2 = arith.constant 1 : i32
    %7 = vector.broadcast %c1_i32_2 : i32 to vector<1x512xi32>
    %8 = arith.shrsi %0, %7 : vector<1x512xi32>
    %c1_i32_3 = arith.constant 1 : i32
    %9 = vector.broadcast %c1_i32_3 : i32 to vector<1x512xi32>
    %10 = arith.andi %8, %9 : vector<1x512xi32>
    %c0_i32_4 = arith.constant 0 : i32
    %11 = vector.broadcast %c0_i32_4 : i32 to vector<1x512xi32>
    %12 = arith.cmpi ne, %10, %11 : vector<1x512xi32>
    %c2_i32 = arith.constant 2 : i32
    %13 = vector.broadcast %c2_i32 : i32 to vector<1x512xi32>
    %14 = arith.shrsi %0, %13 : vector<1x512xi32>
    %c1_i32_5 = arith.constant 1 : i32
    %15 = vector.broadcast %c1_i32_5 : i32 to vector<1x512xi32>
    %16 = arith.andi %14, %15 : vector<1x512xi32>
    %c0_i32_6 = arith.constant 0 : i32
    %17 = vector.broadcast %c0_i32_6 : i32 to vector<1x512xi32>
    %18 = arith.cmpi ne, %16, %17 : vector<1x512xi32>
    %c3_i32 = arith.constant 3 : i32
    %19 = vector.broadcast %c3_i32 : i32 to vector<1x512xi32>
    %20 = arith.shrsi %0, %19 : vector<1x512xi32>
    %c1_i32_7 = arith.constant 1 : i32
    %21 = vector.broadcast %c1_i32_7 : i32 to vector<1x512xi32>
    %22 = arith.andi %20, %21 : vector<1x512xi32>
    %c0_i32_8 = arith.constant 0 : i32
    %23 = vector.broadcast %c0_i32_8 : i32 to vector<1x512xi32>
    %24 = arith.cmpi ne, %22, %23 : vector<1x512xi32>
    %c4_i32 = arith.constant 4 : i32
    %25 = vector.broadcast %c4_i32 : i32 to vector<1x512xi32>
    %26 = arith.shrsi %0, %25 : vector<1x512xi32>
    %c1_i32_9 = arith.constant 1 : i32
    %27 = vector.broadcast %c1_i32_9 : i32 to vector<1x512xi32>
    %28 = arith.andi %26, %27 : vector<1x512xi32>
    %c0_i32_10 = arith.constant 0 : i32
    %29 = vector.broadcast %c0_i32_10 : i32 to vector<1x512xi32>
    %30 = arith.cmpi ne, %28, %29 : vector<1x512xi32>
    %c5_i32 = arith.constant 5 : i32
    %31 = vector.broadcast %c5_i32 : i32 to vector<1x512xi32>
    %32 = arith.shrsi %0, %31 : vector<1x512xi32>
    %c1_i32_11 = arith.constant 1 : i32
    %33 = vector.broadcast %c1_i32_11 : i32 to vector<1x512xi32>
    %34 = arith.andi %32, %33 : vector<1x512xi32>
    %c0_i32_12 = arith.constant 0 : i32
    %35 = vector.broadcast %c0_i32_12 : i32 to vector<1x512xi32>
    %36 = arith.cmpi ne, %34, %35 : vector<1x512xi32>
    %c6_i32 = arith.constant 6 : i32
    %37 = vector.broadcast %c6_i32 : i32 to vector<1x512xi32>
    %38 = arith.shrsi %0, %37 : vector<1x512xi32>
    %c1_i32_13 = arith.constant 1 : i32
    %39 = vector.broadcast %c1_i32_13 : i32 to vector<1x512xi32>
    %40 = arith.andi %38, %39 : vector<1x512xi32>
    %c0_i32_14 = arith.constant 0 : i32
    %41 = vector.broadcast %c0_i32_14 : i32 to vector<1x512xi32>
    %42 = arith.cmpi ne, %40, %41 : vector<1x512xi32>
    %c7_i32 = arith.constant 7 : i32
    %43 = vector.broadcast %c7_i32 : i32 to vector<1x512xi32>
    %44 = arith.shrsi %0, %43 : vector<1x512xi32>
    %c1_i32_15 = arith.constant 1 : i32
    %45 = vector.broadcast %c1_i32_15 : i32 to vector<1x512xi32>
    %46 = arith.andi %44, %45 : vector<1x512xi32>
    %c0_i32_16 = arith.constant 0 : i32
    %47 = vector.broadcast %c0_i32_16 : i32 to vector<1x512xi32>
    %48 = arith.cmpi ne, %46, %47 : vector<1x512xi32>
    %c8_i32 = arith.constant 8 : i32
    %49 = vector.broadcast %c8_i32 : i32 to vector<1x512xi32>
    %50 = arith.shrsi %0, %49 : vector<1x512xi32>
    %c1_i32_17 = arith.constant 1 : i32
    %51 = vector.broadcast %c1_i32_17 : i32 to vector<1x512xi32>
    %52 = arith.andi %50, %51 : vector<1x512xi32>
    %c0_i32_18 = arith.constant 0 : i32
    %53 = vector.broadcast %c0_i32_18 : i32 to vector<1x512xi32>
    %54 = arith.cmpi ne, %52, %53 : vector<1x512xi32>
    %cst = arith.constant 0.000000e+00 : f32
    %55 = vector.broadcast %cst : f32 to vector<8x768xf32>
    %c0_19 = arith.constant 0 : index
    %c0_20 = arith.constant 0 : index
    %56 = vector.load %arg8[%c0_19, %c0_20] : memref<8x768xf32, #tpu.memory_space<vmem>>, vector<8x768xf32>
    tpu.vector_store %arg8[%c0_19, %c0_20], %55 {strides = array<i32>} : memref<8x768xf32, #tpu.memory_space<vmem>>, vector<8x768xf32>,
    %c0_21 = arith.constant 0 : index
    %c0_22 = arith.constant 0 : index
    %c0_23 = arith.constant 0 : index
    %57 = vector.load %arg2[%c0_21, %c0_22, %c0_23] : memref<1x4x512xf32, #tpu.memory_space<vmem>>, vector<1x4x512xf32>
    %58 = vector.shape_cast %57 : vector<1x4x512xf32> to vector<4x512xf32>
    %cst_24 = arith.constant dense<0.000000e+00> : vector<4xf32>
    %59 = vector.multi_reduction <add>, %58, %cst_24 [1] : vector<4x512xf32> to vector<4xf32>
    %60 = vector.shape_cast %59 : vector<4xf32> to vector<4x1xf32>
    %cst_25 = arith.constant 5.120000e+02 : f32
    %61 = vector.broadcast %cst_25 : f32 to vector<4x1xf32>
    %62 = arith.divf %60, %61 : vector<4x1xf32>
    %63 = vector.broadcast %62 : vector<4x1xf32> to vector<4x512xf32>
    %64 = arith.subf %58, %63 : vector<4x512xf32>
    %65 = arith.mulf %64, %64 : vector<4x512xf32>
    %cst_26 = arith.constant dense<0.000000e+00> : vector<4xf32>
    %66 = vector.multi_reduction <add>, %65, %cst_26 [1] : vector<4x512xf32> to vector<4xf32>
    %67 = vector.shape_cast %66 : vector<4xf32> to vector<4x1xf32>
    %cst_27 = arith.constant 5.120000e+02 : f32
    %68 = vector.broadcast %cst_27 : f32 to vector<4x1xf32>
    %69 = arith.divf %67, %68 : vector<4x1xf32>
    %cst_28 = arith.constant 9.99999974E-6 : f32
    %70 = vector.broadcast %cst_28 : f32 to vector<4x1xf32>
    %71 = arith.addf %69, %70 : vector<4x1xf32>
    %72 = math.rsqrt %71 : vector<4x1xf32>
    %73 = vector.broadcast %72 : vector<4x1xf32> to vector<4x512xf32>
    %74 = arith.mulf %64, %73 : vector<4x512xf32>
    %cst_29 = arith.constant 0.000000e+00 : f32
    %75 = vector.broadcast %cst_29 : f32 to vector<4x512xf32>
    %76 = arith.cmpf oge, %74, %75 : vector<4x512xf32>
    %cst_30 = arith.constant 0.00999999977 : f32
    %77 = vector.broadcast %cst_30 : f32 to vector<4x512xf32>
    %78 = arith.mulf %77, %74 : vector<4x512xf32>
    %79 = arith.select %76, %74, %78 : vector<4x512xi1>, vector<4x512xf32>
    %c0_31 = arith.constant 0 : index
    %c128 = arith.constant 128 : index
    %80 = vector.load %arg8[%c0_31, %c128] : memref<8x768xf32, #tpu.memory_space<vmem>>, vector<4x512xf32>
    tpu.vector_store %arg8[%c0_31, %c128], %79 {strides = array<i32>} : memref<8x768xf32, #tpu.memory_space<vmem>>, vector<4x512xf32>,
    %c0_32 = arith.constant 0 : index
    %c55 = arith.constant 55 : index
    %81 = vector.load %arg8[%c0_32, %c55] : memref<8x768xf32, #tpu.memory_space<vmem>>, vector<8x512xf32>
    %cst_33 = arith.constant 0.000000e+00 : f32
    %82 = vector.shape_cast %6 : vector<1x512xi1> to vector<1x512xi1>
    %83 = vector.broadcast %82 : vector<1x512xi1> to vector<8x512xi1>
    %84 = vector.broadcast %cst_33 : f32 to vector<8x512xf32>
    %85 = arith.select %83, %81, %84 : vector<8x512xi1>, vector<8x512xf32>
    %c0_34 = arith.constant 0 : index
    %c0_35 = arith.constant 0 : index
    %86 = vector.load %arg9[%c0_34, %c0_35] : memref<216x512xf32, #tpu.memory_space<vmem>>, vector<8x512xf32>
    tpu.vector_store %arg9[%c0_34, %c0_35], %85 {strides = array<i32>} : memref<216x512xf32, #tpu.memory_space<vmem>>, vector<8x512xf32>,
    %c0_36 = arith.constant 0 : index
    %c56 = arith.constant 56 : index
    %87 = vector.load %arg8[%c0_36, %c56] : memref<8x768xf32, #tpu.memory_space<vmem>>, vector<8x512xf32>
    %cst_37 = arith.constant 0.000000e+00 : f32
    %88 = vector.shape_cast %12 : vector<1x512xi1> to vector<1x512xi1>
    %89 = vector.broadcast %88 : vector<1x512xi1> to vector<8x512xi1>
    %90 = vector.broadcast %cst_37 : f32 to vector<8x512xf32>
    %91 = arith.select %89, %87, %90 : vector<8x512xi1>, vector<8x512xf32>
    %c8 = arith.constant 8 : index
    %c0_38 = arith.constant 0 : index
    %92 = vector.load %arg9[%c8, %c0_38] : memref<216x512xf32, #tpu.memory_space<vmem>>, vector<8x512xf32>
    tpu.vector_store %arg9[%c8, %c0_38], %91 {strides = array<i32>} : memref<216x512xf32, #tpu.memory_space<vmem>>, vector<8x512xf32>,
    %c0_39 = arith.constant 0 : index
    %c57 = arith.constant 57 : index
    %93 = vector.load %arg8[%c0_39, %c57] : memref<8x768xf32, #tpu.memory_space<vmem>>, vector<8x512xf32>
    %cst_40 = arith.constant 0.000000e+00 : f32
    %94 = vector.shape_cast %18 : vector<1x512xi1> to vector<1x512xi1>
    %95 = vector.broadcast %94 : vector<1x512xi1> to vector<8x512xi1>
    %96 = vector.broadcast %cst_40 : f32 to vector<8x512xf32>
    %97 = arith.select %95, %93, %96 : vector<8x512xi1>, vector<8x512xf32>
    %c16 = arith.constant 16 : index
    %c0_41 = arith.constant 0 : index
    %98 = vector.load %arg9[%c16, %c0_41] : memref<216x512xf32, #tpu.memory_space<vmem>>, vector<8x512xf32>
    tpu.vector_store %arg9[%c16, %c0_41], %97 {strides = array<i32>} : memref<216x512xf32, #tpu.memory_space<vmem>>, vector<8x512xf32>,
    %c0_42 = arith.constant 0 : index
    %c63 = arith.constant 63 : index
    %99 = vector.load %arg8[%c0_42, %c63] : memref<8x768xf32, #tpu.memory_space<vmem>>, vector<8x512xf32>
    %cst_43 = arith.constant 0.000000e+00 : f32
    %100 = vector.shape_cast %24 : vector<1x512xi1> to vector<1x512xi1>
    %101 = vector.broadcast %100 : vector<1x512xi1> to vector<8x512xi1>
    %102 = vector.broadcast %cst_43 : f32 to vector<8x512xf32>
    %103 = arith.select %101, %99, %102 : vector<8x512xi1>, vector<8x512xf32>
    %c24 = arith.constant 24 : index
    %c0_44 = arith.constant 0 : index
    %104 = vector.load %arg9[%c24, %c0_44] : memref<216x512xf32, #tpu.memory_space<vmem>>, vector<8x512xf32>
    tpu.vector_store %arg9[%c24, %c0_44], %103 {strides = array<i32>} : memref<216x512xf32, #tpu.memory_space<vmem>>, vector<8x512xf32>,
    %c0_45 = arith.constant 0 : index
    %c64 = arith.constant 64 : index
    %105 = vector.load %arg8[%c0_45, %c64] : memref<8x768xf32, #tpu.memory_space<vmem>>, vector<8x512xf32>
    %cst_46 = arith.constant 0.000000e+00 : f32
    %106 = vector.shape_cast %30 : vector<1x512xi1> to vector<1x512xi1>
    %107 = vector.broadcast %106 : vector<1x512xi1> to vector<8x512xi1>
    %108 = vector.broadcast %cst_46 : f32 to vector<8x512xf32>
    %109 = arith.select %107, %105, %108 : vector<8x512xi1>, vector<8x512xf32>
    %c32 = arith.constant 32 : index
    %c0_47 = arith.constant 0 : index
    %110 = vector.load %arg9[%c32, %c0_47] : memref<216x512xf32, #tpu.memory_space<vmem>>, vector<8x512xf32>
    tpu.vector_store %arg9[%c32, %c0_47], %109 {strides = array<i32>} : memref<216x512xf32, #tpu.memory_space<vmem>>, vector<8x512xf32>,
    %c0_48 = arith.constant 0 : index
    %c65 = arith.constant 65 : index
    %111 = vector.load %arg8[%c0_48, %c65] : memref<8x768xf32, #tpu.memory_space<vmem>>, vector<8x512xf32>
    %cst_49 = arith.constant 0.000000e+00 : f32
    %112 = vector.shape_cast %36 : vector<1x512xi1> to vector<1x512xi1>
    %113 = vector.broadcast %112 : vector<1x512xi1> to vector<8x512xi1>
    %114 = vector.broadcast %cst_49 : f32 to vector<8x512xf32>
    %115 = arith.select %113, %111, %114 : vector<8x512xi1>, vector<8x512xf32>
    %c40 = arith.constant 40 : index
    %c0_50 = arith.constant 0 : index
    %116 = vector.load %arg9[%c40, %c0_50] : memref<216x512xf32, #tpu.memory_space<vmem>>, vector<8x512xf32>
    tpu.vector_store %arg9[%c40, %c0_50], %115 {strides = array<i32>} : memref<216x512xf32, #tpu.memory_space<vmem>>, vector<8x512xf32>,
    %c0_51 = arith.constant 0 : index
    %c71 = arith.constant 71 : index
    %117 = vector.load %arg8[%c0_51, %c71] : memref<8x768xf32, #tpu.memory_space<vmem>>, vector<8x512xf32>
    %cst_52 = arith.constant 0.000000e+00 : f32
    %118 = vector.shape_cast %42 : vector<1x512xi1> to vector<1x512xi1>
    %119 = vector.broadcast %118 : vector<1x512xi1> to vector<8x512xi1>
    %120 = vector.broadcast %cst_52 : f32 to vector<8x512xf32>
    %121 = arith.select %119, %117, %120 : vector<8x512xi1>, vector<8x512xf32>
    %c48 = arith.constant 48 : index
    %c0_53 = arith.constant 0 : index
    %122 = vector.load %arg9[%c48, %c0_53] : memref<216x512xf32, #tpu.memory_space<vmem>>, vector<8x512xf32>
    tpu.vector_store %arg9[%c48, %c0_53], %121 {strides = array<i32>} : memref<216x512xf32, #tpu.memory_space<vmem>>, vector<8x512xf32>,
    %c0_54 = arith.constant 0 : index
    %c72 = arith.constant 72 : index
    %123 = vector.load %arg8[%c0_54, %c72] : memref<8x768xf32, #tpu.memory_space<vmem>>, vector<8x512xf32>
    %cst_55 = arith.constant 0.000000e+00 : f32
    %124 = vector.shape_cast %48 : vector<1x512xi1> to vector<1x512xi1>
    %125 = vector.broadcast %124 : vector<1x512xi1> to vector<8x512xi1>
    %126 = vector.broadcast %cst_55 : f32 to vector<8x512xf32>
    %127 = arith.select %125, %123, %126 : vector<8x512xi1>, vector<8x512xf32>
    %c56_56 = arith.constant 56 : index
    %c0_57 = arith.constant 0 : index
    %128 = vector.load %arg9[%c56_56, %c0_57] : memref<216x512xf32, #tpu.memory_space<vmem>>, vector<8x512xf32>
    tpu.vector_store %arg9[%c56_56, %c0_57], %127 {strides = array<i32>} : memref<216x512xf32, #tpu.memory_space<vmem>>, vector<8x512xf32>,
    %c0_58 = arith.constant 0 : index
    %c73 = arith.constant 73 : index
    %129 = vector.load %arg8[%c0_58, %c73] : memref<8x768xf32, #tpu.memory_space<vmem>>, vector<8x512xf32>
    %cst_59 = arith.constant 0.000000e+00 : f32
    %130 = vector.shape_cast %54 : vector<1x512xi1> to vector<1x512xi1>
    %131 = vector.broadcast %130 : vector<1x512xi1> to vector<8x512xi1>
    %132 = vector.broadcast %cst_59 : f32 to vector<8x512xf32>
    %133 = arith.select %131, %129, %132 : vector<8x512xi1>, vector<8x512xf32>
    %c64_60 = arith.constant 64 : index
    %c0_61 = arith.constant 0 : index
    %134 = vector.load %arg9[%c64_60, %c0_61] : memref<216x512xf32, #tpu.memory_space<vmem>>, vector<8x512xf32>
    tpu.vector_store %arg9[%c64_60, %c0_61], %133 {strides = array<i32>} : memref<216x512xf32, #tpu.memory_space<vmem>>, vector<8x512xf32>,
    %c0_62 = arith.constant 0 : index
    %c119 = arith.constant 119 : index
    %135 = vector.load %arg8[%c0_62, %c119] : memref<8x768xf32, #tpu.memory_space<vmem>>, vector<8x512xf32>
    %cst_63 = arith.constant 0.000000e+00 : f32
    %136 = vector.shape_cast %6 : vector<1x512xi1> to vector<1x512xi1>
    %137 = vector.broadcast %136 : vector<1x512xi1> to vector<8x512xi1>
    %138 = vector.broadcast %cst_63 : f32 to vector<8x512xf32>
    %139 = arith.select %137, %135, %138 : vector<8x512xi1>, vector<8x512xf32>
    %c72_64 = arith.constant 72 : index
    %c0_65 = arith.constant 0 : index
    %140 = vector.load %arg9[%c72_64, %c0_65] : memref<216x512xf32, #tpu.memory_space<vmem>>, vector<8x512xf32>
    tpu.vector_store %arg9[%c72_64, %c0_65], %139 {strides = array<i32>} : memref<216x512xf32, #tpu.memory_space<vmem>>, vector<8x512xf32>,
    %c0_66 = arith.constant 0 : index
    %c120 = arith.constant 120 : index
    %141 = vector.load %arg8[%c0_66, %c120] : memref<8x768xf32, #tpu.memory_space<vmem>>, vector<8x512xf32>
    %cst_67 = arith.constant 0.000000e+00 : f32
    %142 = vector.shape_cast %12 : vector<1x512xi1> to vector<1x512xi1>
    %143 = vector.broadcast %142 : vector<1x512xi1> to vector<8x512xi1>
    %144 = vector.broadcast %cst_67 : f32 to vector<8x512xf32>
    %145 = arith.select %143, %141, %144 : vector<8x512xi1>, vector<8x512xf32>
    %c80 = arith.constant 80 : index
    %c0_68 = arith.constant 0 : index
    %146 = vector.load %arg9[%c80, %c0_68] : memref<216x512xf32, #tpu.memory_space<vmem>>, vector<8x512xf32>
    tpu.vector_store %arg9[%c80, %c0_68], %145 {strides = array<i32>} : memref<216x512xf32, #tpu.memory_space<vmem>>, vector<8x512xf32>,
    %c0_69 = arith.constant 0 : index
    %c121 = arith.constant 121 : index
    %147 = vector.load %arg8[%c0_69, %c121] : memref<8x768xf32, #tpu.memory_space<vmem>>, vector<8x512xf32>
    %cst_70 = arith.constant 0.000000e+00 : f32
    %148 = vector.shape_cast %18 : vector<1x512xi1> to vector<1x512xi1>
    %149 = vector.broadcast %148 : vector<1x512xi1> to vector<8x512xi1>
    %150 = vector.broadcast %cst_70 : f32 to vector<8x512xf32>
    %151 = arith.select %149, %147, %150 : vector<8x512xi1>, vector<8x512xf32>
    %c88 = arith.constant 88 : index
    %c0_71 = arith.constant 0 : index
    %152 = vector.load %arg9[%c88, %c0_71] : memref<216x512xf32, #tpu.memory_space<vmem>>, vector<8x512xf32>
    tpu.vector_store %arg9[%c88, %c0_71], %151 {strides = array<i32>} : memref<216x512xf32, #tpu.memory_space<vmem>>, vector<8x512xf32>,
    %c0_72 = arith.constant 0 : index
    %c127 = arith.constant 127 : index
    %153 = vector.load %arg8[%c0_72, %c127] : memref<8x768xf32, #tpu.memory_space<vmem>>, vector<8x512xf32>
    %cst_73 = arith.constant 0.000000e+00 : f32
    %154 = vector.shape_cast %24 : vector<1x512xi1> to vector<1x512xi1>
    %155 = vector.broadcast %154 : vector<1x512xi1> to vector<8x512xi1>
    %156 = vector.broadcast %cst_73 : f32 to vector<8x512xf32>
    %157 = arith.select %155, %153, %156 : vector<8x512xi1>, vector<8x512xf32>
    %c96 = arith.constant 96 : index
    %c0_74 = arith.constant 0 : index
    %158 = vector.load %arg9[%c96, %c0_74] : memref<216x512xf32, #tpu.memory_space<vmem>>, vector<8x512xf32>
    tpu.vector_store %arg9[%c96, %c0_74], %157 {strides = array<i32>} : memref<216x512xf32, #tpu.memory_space<vmem>>, vector<8x512xf32>,
    %c0_75 = arith.constant 0 : index
    %c128_76 = arith.constant 128 : index
    %159 = vector.load %arg8[%c0_75, %c128_76] : memref<8x768xf32, #tpu.memory_space<vmem>>, vector<8x512xf32>
    %cst_77 = arith.constant 0.000000e+00 : f32
    %160 = vector.shape_cast %30 : vector<1x512xi1> to vector<1x512xi1>
    %161 = vector.broadcast %160 : vector<1x512xi1> to vector<8x512xi1>
    %162 = vector.broadcast %cst_77 : f32 to vector<8x512xf32>
    %163 = arith.select %161, %159, %162 : vector<8x512xi1>, vector<8x512xf32>
    %c104 = arith.constant 104 : index
    %c0_78 = arith.constant 0 : index
    %164 = vector.load %arg9[%c104, %c0_78] : memref<216x512xf32, #tpu.memory_space<vmem>>, vector<8x512xf32>
    tpu.vector_store %arg9[%c104, %c0_78], %163 {strides = array<i32>} : memref<216x512xf32, #tpu.memory_space<vmem>>, vector<8x512xf32>,
    %c0_79 = arith.constant 0 : index
    %c129 = arith.constant 129 : index
    %165 = vector.load %arg8[%c0_79, %c129] : memref<8x768xf32, #tpu.memory_space<vmem>>, vector<8x512xf32>
    %cst_80 = arith.constant 0.000000e+00 : f32
    %166 = vector.shape_cast %36 : vector<1x512xi1> to vector<1x512xi1>
    %167 = vector.broadcast %166 : vector<1x512xi1> to vector<8x512xi1>
    %168 = vector.broadcast %cst_80 : f32 to vector<8x512xf32>
    %169 = arith.select %167, %165, %168 : vector<8x512xi1>, vector<8x512xf32>
    %c112 = arith.constant 112 : index
    %c0_81 = arith.constant 0 : index
    %170 = vector.load %arg9[%c112, %c0_81] : memref<216x512xf32, #tpu.memory_space<vmem>>, vector<8x512xf32>
    tpu.vector_store %arg9[%c112, %c0_81], %169 {strides = array<i32>} : memref<216x512xf32, #tpu.memory_space<vmem>>, vector<8x512xf32>,
    %c0_82 = arith.constant 0 : index
    %c135 = arith.constant 135 : index
    %171 = vector.load %arg8[%c0_82, %c135] : memref<8x768xf32, #tpu.memory_space<vmem>>, vector<8x512xf32>
    %cst_83 = arith.constant 0.000000e+00 : f32
    %172 = vector.shape_cast %42 : vector<1x512xi1> to vector<1x512xi1>
    %173 = vector.broadcast %172 : vector<1x512xi1> to vector<8x512xi1>
    %174 = vector.broadcast %cst_83 : f32 to vector<8x512xf32>
    %175 = arith.select %173, %171, %174 : vector<8x512xi1>, vector<8x512xf32>
    %c120_84 = arith.constant 120 : index
    %c0_85 = arith.constant 0 : index
    %176 = vector.load %arg9[%c120_84, %c0_85] : memref<216x512xf32, #tpu.memory_space<vmem>>, vector<8x512xf32>
    tpu.vector_store %arg9[%c120_84, %c0_85], %175 {strides = array<i32>} : memref<216x512xf32, #tpu.memory_space<vmem>>, vector<8x512xf32>,
    %c0_86 = arith.constant 0 : index
    %c136 = arith.constant 136 : index
    %177 = vector.load %arg8[%c0_86, %c136] : memref<8x768xf32, #tpu.memory_space<vmem>>, vector<8x512xf32>
    %cst_87 = arith.constant 0.000000e+00 : f32
    %178 = vector.shape_cast %48 : vector<1x512xi1> to vector<1x512xi1>
    %179 = vector.broadcast %178 : vector<1x512xi1> to vector<8x512xi1>
    %180 = vector.broadcast %cst_87 : f32 to vector<8x512xf32>
    %181 = arith.select %179, %177, %180 : vector<8x512xi1>, vector<8x512xf32>
    %c128_88 = arith.constant 128 : index
    %c0_89 = arith.constant 0 : index
    %182 = vector.load %arg9[%c128_88, %c0_89] : memref<216x512xf32, #tpu.memory_space<vmem>>, vector<8x512xf32>
    tpu.vector_store %arg9[%c128_88, %c0_89], %181 {strides = array<i32>} : memref<216x512xf32, #tpu.memory_space<vmem>>, vector<8x512xf32>,
    %c0_90 = arith.constant 0 : index
    %c137 = arith.constant 137 : index
    %183 = vector.load %arg8[%c0_90, %c137] : memref<8x768xf32, #tpu.memory_space<vmem>>, vector<8x512xf32>
    %cst_91 = arith.constant 0.000000e+00 : f32
    %184 = vector.shape_cast %54 : vector<1x512xi1> to vector<1x512xi1>
    %185 = vector.broadcast %184 : vector<1x512xi1> to vector<8x512xi1>
    %186 = vector.broadcast %cst_91 : f32 to vector<8x512xf32>
    %187 = arith.select %185, %183, %186 : vector<8x512xi1>, vector<8x512xf32>
    %c136_92 = arith.constant 136 : index
    %c0_93 = arith.constant 0 : index
    %188 = vector.load %arg9[%c136_92, %c0_93] : memref<216x512xf32, #tpu.memory_space<vmem>>, vector<8x512xf32>
    tpu.vector_store %arg9[%c136_92, %c0_93], %187 {strides = array<i32>} : memref<216x512xf32, #tpu.memory_space<vmem>>, vector<8x512xf32>,
    %c0_94 = arith.constant 0 : index
    %c183 = arith.constant 183 : index
    %189 = vector.load %arg8[%c0_94, %c183] : memref<8x768xf32, #tpu.memory_space<vmem>>, vector<8x512xf32>
    %cst_95 = arith.constant 0.000000e+00 : f32
    %190 = vector.shape_cast %6 : vector<1x512xi1> to vector<1x512xi1>
    %191 = vector.broadcast %190 : vector<1x512xi1> to vector<8x512xi1>
    %192 = vector.broadcast %cst_95 : f32 to vector<8x512xf32>
    %193 = arith.select %191, %189, %192 : vector<8x512xi1>, vector<8x512xf32>
    %c144 = arith.constant 144 : index
    %c0_96 = arith.constant 0 : index
    %194 = vector.load %arg9[%c144, %c0_96] : memref<216x512xf32, #tpu.memory_space<vmem>>, vector<8x512xf32>
    tpu.vector_store %arg9[%c144, %c0_96], %193 {strides = array<i32>} : memref<216x512xf32, #tpu.memory_space<vmem>>, vector<8x512xf32>,
    %c0_97 = arith.constant 0 : index
    %c184 = arith.constant 184 : index
    %195 = vector.load %arg8[%c0_97, %c184] : memref<8x768xf32, #tpu.memory_space<vmem>>, vector<8x512xf32>
    %cst_98 = arith.constant 0.000000e+00 : f32
    %196 = vector.shape_cast %12 : vector<1x512xi1> to vector<1x512xi1>
    %197 = vector.broadcast %196 : vector<1x512xi1> to vector<8x512xi1>
    %198 = vector.broadcast %cst_98 : f32 to vector<8x512xf32>
    %199 = arith.select %197, %195, %198 : vector<8x512xi1>, vector<8x512xf32>
    %c152 = arith.constant 152 : index
    %c0_99 = arith.constant 0 : index
    %200 = vector.load %arg9[%c152, %c0_99] : memref<216x512xf32, #tpu.memory_space<vmem>>, vector<8x512xf32>
    tpu.vector_store %arg9[%c152, %c0_99], %199 {strides = array<i32>} : memref<216x512xf32, #tpu.memory_space<vmem>>, vector<8x512xf32>,
    %c0_100 = arith.constant 0 : index
    %c185 = arith.constant 185 : index
    %201 = vector.load %arg8[%c0_100, %c185] : memref<8x768xf32, #tpu.memory_space<vmem>>, vector<8x512xf32>
    %cst_101 = arith.constant 0.000000e+00 : f32
    %202 = vector.shape_cast %18 : vector<1x512xi1> to vector<1x512xi1>
    %203 = vector.broadcast %202 : vector<1x512xi1> to vector<8x512xi1>
    %204 = vector.broadcast %cst_101 : f32 to vector<8x512xf32>
    %205 = arith.select %203, %201, %204 : vector<8x512xi1>, vector<8x512xf32>
    %c160 = arith.constant 160 : index
    %c0_102 = arith.constant 0 : index
    %206 = vector.load %arg9[%c160, %c0_102] : memref<216x512xf32, #tpu.memory_space<vmem>>, vector<8x512xf32>
    tpu.vector_store %arg9[%c160, %c0_102], %205 {strides = array<i32>} : memref<216x512xf32, #tpu.memory_space<vmem>>, vector<8x512xf32>,
    %c0_103 = arith.constant 0 : index
    %c191 = arith.constant 191 : index
    %207 = vector.load %arg8[%c0_103, %c191] : memref<8x768xf32, #tpu.memory_space<vmem>>, vector<8x512xf32>
    %cst_104 = arith.constant 0.000000e+00 : f32
    %208 = vector.shape_cast %24 : vector<1x512xi1> to vector<1x512xi1>
    %209 = vector.broadcast %208 : vector<1x512xi1> to vector<8x512xi1>
    %210 = vector.broadcast %cst_104 : f32 to vector<8x512xf32>
    %211 = arith.select %209, %207, %210 : vector<8x512xi1>, vector<8x512xf32>
    %c168 = arith.constant 168 : index
    %c0_105 = arith.constant 0 : index
    %212 = vector.load %arg9[%c168, %c0_105] : memref<216x512xf32, #tpu.memory_space<vmem>>, vector<8x512xf32>
    tpu.vector_store %arg9[%c168, %c0_105], %211 {strides = array<i32>} : memref<216x512xf32, #tpu.memory_space<vmem>>, vector<8x512xf32>,
    %c0_106 = arith.constant 0 : index
    %c192 = arith.constant 192 : index
    %213 = vector.load %arg8[%c0_106, %c192] : memref<8x768xf32, #tpu.memory_space<vmem>>, vector<8x512xf32>
    %cst_107 = arith.constant 0.000000e+00 : f32
    %214 = vector.shape_cast %30 : vector<1x512xi1> to vector<1x512xi1>
    %215 = vector.broadcast %214 : vector<1x512xi1> to vector<8x512xi1>
    %216 = vector.broadcast %cst_107 : f32 to vector<8x512xf32>
    %217 = arith.select %215, %213, %216 : vector<8x512xi1>, vector<8x512xf32>
    %c176 = arith.constant 176 : index
    %c0_108 = arith.constant 0 : index
    %218 = vector.load %arg9[%c176, %c0_108] : memref<216x512xf32, #tpu.memory_space<vmem>>, vector<8x512xf32>
    tpu.vector_store %arg9[%c176, %c0_108], %217 {strides = array<i32>} : memref<216x512xf32, #tpu.memory_space<vmem>>, vector<8x512xf32>,
    %c0_109 = arith.constant 0 : index
    %c193 = arith.constant 193 : index
    %219 = vector.load %arg8[%c0_109, %c193] : memref<8x768xf32, #tpu.memory_space<vmem>>, vector<8x512xf32>
    %cst_110 = arith.constant 0.000000e+00 : f32
    %220 = vector.shape_cast %36 : vector<1x512xi1> to vector<1x512xi1>
    %221 = vector.broadcast %220 : vector<1x512xi1> to vector<8x512xi1>
    %222 = vector.broadcast %cst_110 : f32 to vector<8x512xf32>
    %223 = arith.select %221, %219, %222 : vector<8x512xi1>, vector<8x512xf32>
    %c184_111 = arith.constant 184 : index
    %c0_112 = arith.constant 0 : index
    %224 = vector.load %arg9[%c184_111, %c0_112] : memref<216x512xf32, #tpu.memory_space<vmem>>, vector<8x512xf32>
    tpu.vector_store %arg9[%c184_111, %c0_112], %223 {strides = array<i32>} : memref<216x512xf32, #tpu.memory_space<vmem>>, vector<8x512xf32>,
    %c0_113 = arith.constant 0 : index
    %c199 = arith.constant 199 : index
    %225 = vector.load %arg8[%c0_113, %c199] : memref<8x768xf32, #tpu.memory_space<vmem>>, vector<8x512xf32>
    %cst_114 = arith.constant 0.000000e+00 : f32
    %226 = vector.shape_cast %42 : vector<1x512xi1> to vector<1x512xi1>
    %227 = vector.broadcast %226 : vector<1x512xi1> to vector<8x512xi1>
    %228 = vector.broadcast %cst_114 : f32 to vector<8x512xf32>
    %229 = arith.select %227, %225, %228 : vector<8x512xi1>, vector<8x512xf32>
    %c192_115 = arith.constant 192 : index
    %c0_116 = arith.constant 0 : index
    %230 = vector.load %arg9[%c192_115, %c0_116] : memref<216x512xf32, #tpu.memory_space<vmem>>, vector<8x512xf32>
    tpu.vector_store %arg9[%c192_115, %c0_116], %229 {strides = array<i32>} : memref<216x512xf32, #tpu.memory_space<vmem>>, vector<8x512xf32>,
    %c0_117 = arith.constant 0 : index
    %c200 = arith.constant 200 : index
    %231 = vector.load %arg8[%c0_117, %c200] : memref<8x768xf32, #tpu.memory_space<vmem>>, vector<8x512xf32>
    %cst_118 = arith.constant 0.000000e+00 : f32
    %232 = vector.shape_cast %48 : vector<1x512xi1> to vector<1x512xi1>
    %233 = vector.broadcast %232 : vector<1x512xi1> to vector<8x512xi1>
    %234 = vector.broadcast %cst_118 : f32 to vector<8x512xf32>
    %235 = arith.select %233, %231, %234 : vector<8x512xi1>, vector<8x512xf32>
    %c200_119 = arith.constant 200 : index
    %c0_120 = arith.constant 0 : index
    %236 = vector.load %arg9[%c200_119, %c0_120] : memref<216x512xf32, #tpu.memory_space<vmem>>, vector<8x512xf32>
    tpu.vector_store %arg9[%c200_119, %c0_120], %235 {strides = array<i32>} : memref<216x512xf32, #tpu.memory_space<vmem>>, vector<8x512xf32>,
    %c0_121 = arith.constant 0 : index
    %c201 = arith.constant 201 : index
    %237 = vector.load %arg8[%c0_121, %c201] : memref<8x768xf32, #tpu.memory_space<vmem>>, vector<8x512xf32>
    %cst_122 = arith.constant 0.000000e+00 : f32
    %238 = vector.shape_cast %54 : vector<1x512xi1> to vector<1x512xi1>
    %239 = vector.broadcast %238 : vector<1x512xi1> to vector<8x512xi1>
    %240 = vector.broadcast %cst_122 : f32 to vector<8x512xf32>
    %241 = arith.select %239, %237, %240 : vector<8x512xi1>, vector<8x512xf32>
    %c208 = arith.constant 208 : index
    %c0_123 = arith.constant 0 : index
    %242 = vector.load %arg9[%c208, %c0_123] : memref<216x512xf32, #tpu.memory_space<vmem>>, vector<8x512xf32>
    tpu.vector_store %arg9[%c208, %c0_123], %241 {strides = array<i32>} : memref<216x512xf32, #tpu.memory_space<vmem>>, vector<8x512xf32>,
    %c0_124 = arith.constant 0 : index
    %c0_125 = arith.constant 0 : index
    %243 = vector.load %arg3[%c0_124, %c0_125] : memref<4x216xbf16, #tpu.memory_space<vmem>>, vector<4x216xbf16>
    %c0_126 = arith.constant 0 : index
    %c0_127 = arith.constant 0 : index
    %244 = vector.load %arg9[%c0_126, %c0_127] : memref<216x512xf32, #tpu.memory_space<vmem>>, vector<216x512xf32>
    %245 = arith.truncf %244 : vector<216x512xf32> to vector<216x512xbf16>
    %cst_128 = arith.constant dense<0.000000e+00> : vector<4x512xf32>
    %246 = tpu.matmul %243, %245, %cst_128 {dimension_numbers = #tpu.dot_dimension_numbers<[1], [0], [0], [1], [0, 0, 1, 1], [], []>} : vector<4x216xbf16>, vector<216x512xbf16>, vector<4x512xf32> -> vector<4x512xf32>
    %cst_129 = arith.constant dense<0.000000e+00> : vector<4xf32>
    %247 = vector.multi_reduction <add>, %246, %cst_129 [1] : vector<4x512xf32> to vector<4xf32>
    %248 = vector.shape_cast %247 : vector<4xf32> to vector<4x1xf32>
    %cst_130 = arith.constant 5.120000e+02 : f32
    %249 = vector.broadcast %cst_130 : f32 to vector<4x1xf32>
    %250 = arith.divf %248, %249 : vector<4x1xf32>
    %251 = vector.broadcast %250 : vector<4x1xf32> to vector<4x512xf32>
    %252 = arith.subf %246, %251 : vector<4x512xf32>
    %253 = arith.mulf %252, %252 : vector<4x512xf32>
    %cst_131 = arith.constant dense<0.000000e+00> : vector<4xf32>
    %254 = vector.multi_reduction <add>, %253, %cst_131 [1] : vector<4x512xf32> to vector<4xf32>
    %255 = vector.shape_cast %254 : vector<4xf32> to vector<4x1xf32>
    %cst_132 = arith.constant 5.120000e+02 : f32
    %256 = vector.broadcast %cst_132 : f32 to vector<4x1xf32>
    %257 = arith.divf %255, %256 : vector<4x1xf32>
    %cst_133 = arith.constant 9.99999974E-6 : f32
    %258 = vector.broadcast %cst_133 : f32 to vector<4x1xf32>
    %259 = arith.addf %257, %258 : vector<4x1xf32>
    %260 = math.rsqrt %259 : vector<4x1xf32>
    %261 = vector.broadcast %260 : vector<4x1xf32> to vector<4x512xf32>
    %262 = arith.mulf %252, %261 : vector<4x512xf32>
    %cst_134 = arith.constant 0.000000e+00 : f32
    %263 = vector.broadcast %cst_134 : f32 to vector<4x512xf32>
    %264 = arith.cmpf oge, %262, %263 : vector<4x512xf32>
    %cst_135 = arith.constant 0.00999999977 : f32
    %265 = vector.broadcast %cst_135 : f32 to vector<4x512xf32>
    %266 = arith.mulf %265, %262 : vector<4x512xf32>
    %267 = arith.select %264, %262, %266 : vector<4x512xi1>, vector<4x512xf32>
    %c0_136 = arith.constant 0 : index
    %c128_137 = arith.constant 128 : index
    %268 = vector.load %arg8[%c0_136, %c128_137] : memref<8x768xf32, #tpu.memory_space<vmem>>, vector<4x512xf32>
    tpu.vector_store %arg8[%c0_136, %c128_137], %267 {strides = array<i32>} : memref<8x768xf32, #tpu.memory_space<vmem>>, vector<4x512xf32>,
    %c0_138 = arith.constant 0 : index
    %c55_139 = arith.constant 55 : index
    %269 = vector.load %arg8[%c0_138, %c55_139] : memref<8x768xf32, #tpu.memory_space<vmem>>, vector<8x512xf32>
    %cst_140 = arith.constant 0.000000e+00 : f32
    %270 = vector.shape_cast %6 : vector<1x512xi1> to vector<1x512xi1>
    %271 = vector.broadcast %270 : vector<1x512xi1> to vector<8x512xi1>
    %272 = vector.broadcast %cst_140 : f32 to vector<8x512xf32>
    %273 = arith.select %271, %269, %272 : vector<8x512xi1>, vector<8x512xf32>
    %c0_141 = arith.constant 0 : index
    %c0_142 = arith.constant 0 : index
    %274 = vector.load %arg9[%c0_141, %c0_142] : memref<216x512xf32, #tpu.memory_space<vmem>>, vector<8x512xf32>
    tpu.vector_store %arg9[%c0_141, %c0_142], %273 {strides = array<i32>} : memref<216x512xf32, #tpu.memory_space<vmem>>, vector<8x512xf32>,
    %c0_143 = arith.constant 0 : index
    %c56_144 = arith.constant 56 : index
    %275 = vector.load %arg8[%c0_143, %c56_144] : memref<8x768xf32, #tpu.memory_space<vmem>>, vector<8x512xf32>
    %cst_145 = arith.constant 0.000000e+00 : f32
    %276 = vector.shape_cast %12 : vector<1x512xi1> to vector<1x512xi1>
    %277 = vector.broadcast %276 : vector<1x512xi1> to vector<8x512xi1>
    %278 = vector.broadcast %cst_145 : f32 to vector<8x512xf32>
    %279 = arith.select %277, %275, %278 : vector<8x512xi1>, vector<8x512xf32>
    %c8_146 = arith.constant 8 : index
    %c0_147 = arith.constant 0 : index
    %280 = vector.load %arg9[%c8_146, %c0_147] : memref<216x512xf32, #tpu.memory_space<vmem>>, vector<8x512xf32>
    tpu.vector_store %arg9[%c8_146, %c0_147], %279 {strides = array<i32>} : memref<216x512xf32, #tpu.memory_space<vmem>>, vector<8x512xf32>,
    %c0_148 = arith.constant 0 : index
    %c57_149 = arith.constant 57 : index
    %281 = vector.load %arg8[%c0_148, %c57_149] : memref<8x768xf32, #tpu.memory_space<vmem>>, vector<8x512xf32>
    %cst_150 = arith.constant 0.000000e+00 : f32
    %282 = vector.shape_cast %18 : vector<1x512xi1> to vector<1x512xi1>
    %283 = vector.broadcast %282 : vector<1x512xi1> to vector<8x512xi1>
    %284 = vector.broadcast %cst_150 : f32 to vector<8x512xf32>
    %285 = arith.select %283, %281, %284 : vector<8x512xi1>, vector<8x512xf32>
    %c16_151 = arith.constant 16 : index
    %c0_152 = arith.constant 0 : index
    %286 = vector.load %arg9[%c16_151, %c0_152] : memref<216x512xf32, #tpu.memory_space<vmem>>, vector<8x512xf32>
    tpu.vector_store %arg9[%c16_151, %c0_152], %285 {strides = array<i32>} : memref<216x512xf32, #tpu.memory_space<vmem>>, vector<8x512xf32>,
    %c0_153 = arith.constant 0 : index
    %c63_154 = arith.constant 63 : index
    %287 = vector.load %arg8[%c0_153, %c63_154] : memref<8x768xf32, #tpu.memory_space<vmem>>, vector<8x512xf32>
    %cst_155 = arith.constant 0.000000e+00 : f32
    %288 = vector.shape_cast %24 : vector<1x512xi1> to vector<1x512xi1>
    %289 = vector.broadcast %288 : vector<1x512xi1> to vector<8x512xi1>
    %290 = vector.broadcast %cst_155 : f32 to vector<8x512xf32>
    %291 = arith.select %289, %287, %290 : vector<8x512xi1>, vector<8x512xf32>
    %c24_156 = arith.constant 24 : index
    %c0_157 = arith.constant 0 : index
    %292 = vector.load %arg9[%c24_156, %c0_157] : memref<216x512xf32, #tpu.memory_space<vmem>>, vector<8x512xf32>
    tpu.vector_store %arg9[%c24_156, %c0_157], %291 {strides = array<i32>} : memref<216x512xf32, #tpu.memory_space<vmem>>, vector<8x512xf32>,
    %c0_158 = arith.constant 0 : index
    %c64_159 = arith.constant 64 : index
    %293 = vector.load %arg8[%c0_158, %c64_159] : memref<8x768xf32, #tpu.memory_space<vmem>>, vector<8x512xf32>
    %cst_160 = arith.constant 0.000000e+00 : f32
    %294 = vector.shape_cast %30 : vector<1x512xi1> to vector<1x512xi1>
    %295 = vector.broadcast %294 : vector<1x512xi1> to vector<8x512xi1>
    %296 = vector.broadcast %cst_160 : f32 to vector<8x512xf32>
    %297 = arith.select %295, %293, %296 : vector<8x512xi1>, vector<8x512xf32>
    %c32_161 = arith.constant 32 : index
    %c0_162 = arith.constant 0 : index
    %298 = vector.load %arg9[%c32_161, %c0_162] : memref<216x512xf32, #tpu.memory_space<vmem>>, vector<8x512xf32>
    tpu.vector_store %arg9[%c32_161, %c0_162], %297 {strides = array<i32>} : memref<216x512xf32, #tpu.memory_space<vmem>>, vector<8x512xf32>,
    %c0_163 = arith.constant 0 : index
    %c65_164 = arith.constant 65 : index
    %299 = vector.load %arg8[%c0_163, %c65_164] : memref<8x768xf32, #tpu.memory_space<vmem>>, vector<8x512xf32>
    %cst_165 = arith.constant 0.000000e+00 : f32
    %300 = vector.shape_cast %36 : vector<1x512xi1> to vector<1x512xi1>
    %301 = vector.broadcast %300 : vector<1x512xi1> to vector<8x512xi1>
    %302 = vector.broadcast %cst_165 : f32 to vector<8x512xf32>
    %303 = arith.select %301, %299, %302 : vector<8x512xi1>, vector<8x512xf32>
    %c40_166 = arith.constant 40 : index
    %c0_167 = arith.constant 0 : index
    %304 = vector.load %arg9[%c40_166, %c0_167] : memref<216x512xf32, #tpu.memory_space<vmem>>, vector<8x512xf32>
    tpu.vector_store %arg9[%c40_166, %c0_167], %303 {strides = array<i32>} : memref<216x512xf32, #tpu.memory_space<vmem>>, vector<8x512xf32>,
    %c0_168 = arith.constant 0 : index
    %c71_169 = arith.constant 71 : index
    %305 = vector.load %arg8[%c0_168, %c71_169] : memref<8x768xf32, #tpu.memory_space<vmem>>, vector<8x512xf32>
    %cst_170 = arith.constant 0.000000e+00 : f32
    %306 = vector.shape_cast %42 : vector<1x512xi1> to vector<1x512xi1>
    %307 = vector.broadcast %306 : vector<1x512xi1> to vector<8x512xi1>
    %308 = vector.broadcast %cst_170 : f32 to vector<8x512xf32>
    %309 = arith.select %307, %305, %308 : vector<8x512xi1>, vector<8x512xf32>
    %c48_171 = arith.constant 48 : index
    %c0_172 = arith.constant 0 : index
    %310 = vector.load %arg9[%c48_171, %c0_172] : memref<216x512xf32, #tpu.memory_space<vmem>>, vector<8x512xf32>
    tpu.vector_store %arg9[%c48_171, %c0_172], %309 {strides = array<i32>} : memref<216x512xf32, #tpu.memory_space<vmem>>, vector<8x512xf32>,
    %c0_173 = arith.constant 0 : index
    %c72_174 = arith.constant 72 : index
    %311 = vector.load %arg8[%c0_173, %c72_174] : memref<8x768xf32, #tpu.memory_space<vmem>>, vector<8x512xf32>
    %cst_175 = arith.constant 0.000000e+00 : f32
    %312 = vector.shape_cast %48 : vector<1x512xi1> to vector<1x512xi1>
    %313 = vector.broadcast %312 : vector<1x512xi1> to vector<8x512xi1>
    %314 = vector.broadcast %cst_175 : f32 to vector<8x512xf32>
    %315 = arith.select %313, %311, %314 : vector<8x512xi1>, vector<8x512xf32>
    %c56_176 = arith.constant 56 : index
    %c0_177 = arith.constant 0 : index
    %316 = vector.load %arg9[%c56_176, %c0_177] : memref<216x512xf32, #tpu.memory_space<vmem>>, vector<8x512xf32>
    tpu.vector_store %arg9[%c56_176, %c0_177], %315 {strides = array<i32>} : memref<216x512xf32, #tpu.memory_space<vmem>>, vector<8x512xf32>,
    %c0_178 = arith.constant 0 : index
    %c73_179 = arith.constant 73 : index
    %317 = vector.load %arg8[%c0_178, %c73_179] : memref<8x768xf32, #tpu.memory_space<vmem>>, vector<8x512xf32>
    %cst_180 = arith.constant 0.000000e+00 : f32
    %318 = vector.shape_cast %54 : vector<1x512xi1> to vector<1x512xi1>
    %319 = vector.broadcast %318 : vector<1x512xi1> to vector<8x512xi1>
    %320 = vector.broadcast %cst_180 : f32 to vector<8x512xf32>
    %321 = arith.select %319, %317, %320 : vector<8x512xi1>, vector<8x512xf32>
    %c64_181 = arith.constant 64 : index
    %c0_182 = arith.constant 0 : index
    %322 = vector.load %arg9[%c64_181, %c0_182] : memref<216x512xf32, #tpu.memory_space<vmem>>, vector<8x512xf32>
    tpu.vector_store %arg9[%c64_181, %c0_182], %321 {strides = array<i32>} : memref<216x512xf32, #tpu.memory_space<vmem>>, vector<8x512xf32>,
    %c0_183 = arith.constant 0 : index
    %c119_184 = arith.constant 119 : index
    %323 = vector.load %arg8[%c0_183, %c119_184] : memref<8x768xf32, #tpu.memory_space<vmem>>, vector<8x512xf32>
    %cst_185 = arith.constant 0.000000e+00 : f32
    %324 = vector.shape_cast %6 : vector<1x512xi1> to vector<1x512xi1>
    %325 = vector.broadcast %324 : vector<1x512xi1> to vector<8x512xi1>
    %326 = vector.broadcast %cst_185 : f32 to vector<8x512xf32>
    %327 = arith.select %325, %323, %326 : vector<8x512xi1>, vector<8x512xf32>
    %c72_186 = arith.constant 72 : index
    %c0_187 = arith.constant 0 : index
    %328 = vector.load %arg9[%c72_186, %c0_187] : memref<216x512xf32, #tpu.memory_space<vmem>>, vector<8x512xf32>
    tpu.vector_store %arg9[%c72_186, %c0_187], %327 {strides = array<i32>} : memref<216x512xf32, #tpu.memory_space<vmem>>, vector<8x512xf32>,
    %c0_188 = arith.constant 0 : index
    %c120_189 = arith.constant 120 : index
    %329 = vector.load %arg8[%c0_188, %c120_189] : memref<8x768xf32, #tpu.memory_space<vmem>>, vector<8x512xf32>
    %cst_190 = arith.constant 0.000000e+00 : f32
    %330 = vector.shape_cast %12 : vector<1x512xi1> to vector<1x512xi1>
    %331 = vector.broadcast %330 : vector<1x512xi1> to vector<8x512xi1>
    %332 = vector.broadcast %cst_190 : f32 to vector<8x512xf32>
    %333 = arith.select %331, %329, %332 : vector<8x512xi1>, vector<8x512xf32>
    %c80_191 = arith.constant 80 : index
    %c0_192 = arith.constant 0 : index
    %334 = vector.load %arg9[%c80_191, %c0_192] : memref<216x512xf32, #tpu.memory_space<vmem>>, vector<8x512xf32>
    tpu.vector_store %arg9[%c80_191, %c0_192], %333 {strides = array<i32>} : memref<216x512xf32, #tpu.memory_space<vmem>>, vector<8x512xf32>,
    %c0_193 = arith.constant 0 : index
    %c121_194 = arith.constant 121 : index
    %335 = vector.load %arg8[%c0_193, %c121_194] : memref<8x768xf32, #tpu.memory_space<vmem>>, vector<8x512xf32>
    %cst_195 = arith.constant 0.000000e+00 : f32
    %336 = vector.shape_cast %18 : vector<1x512xi1> to vector<1x512xi1>
    %337 = vector.broadcast %336 : vector<1x512xi1> to vector<8x512xi1>
    %338 = vector.broadcast %cst_195 : f32 to vector<8x512xf32>
    %339 = arith.select %337, %335, %338 : vector<8x512xi1>, vector<8x512xf32>
    %c88_196 = arith.constant 88 : index
    %c0_197 = arith.constant 0 : index
    %340 = vector.load %arg9[%c88_196, %c0_197] : memref<216x512xf32, #tpu.memory_space<vmem>>, vector<8x512xf32>
    tpu.vector_store %arg9[%c88_196, %c0_197], %339 {strides = array<i32>} : memref<216x512xf32, #tpu.memory_space<vmem>>, vector<8x512xf32>,
    %c0_198 = arith.constant 0 : index
    %c127_199 = arith.constant 127 : index
    %341 = vector.load %arg8[%c0_198, %c127_199] : memref<8x768xf32, #tpu.memory_space<vmem>>, vector<8x512xf32>
    %cst_200 = arith.constant 0.000000e+00 : f32
    %342 = vector.shape_cast %24 : vector<1x512xi1> to vector<1x512xi1>
    %343 = vector.broadcast %342 : vector<1x512xi1> to vector<8x512xi1>
    %344 = vector.broadcast %cst_200 : f32 to vector<8x512xf32>
    %345 = arith.select %343, %341, %344 : vector<8x512xi1>, vector<8x512xf32>
    %c96_201 = arith.constant 96 : index
    %c0_202 = arith.constant 0 : index
    %346 = vector.load %arg9[%c96_201, %c0_202] : memref<216x512xf32, #tpu.memory_space<vmem>>, vector<8x512xf32>
    tpu.vector_store %arg9[%c96_201, %c0_202], %345 {strides = array<i32>} : memref<216x512xf32, #tpu.memory_space<vmem>>, vector<8x512xf32>,
    %c0_203 = arith.constant 0 : index
    %c128_204 = arith.constant 128 : index
    %347 = vector.load %arg8[%c0_203, %c128_204] : memref<8x768xf32, #tpu.memory_space<vmem>>, vector<8x512xf32>
    %cst_205 = arith.constant 0.000000e+00 : f32
    %348 = vector.shape_cast %30 : vector<1x512xi1> to vector<1x512xi1>
    %349 = vector.broadcast %348 : vector<1x512xi1> to vector<8x512xi1>
    %350 = vector.broadcast %cst_205 : f32 to vector<8x512xf32>
    %351 = arith.select %349, %347, %350 : vector<8x512xi1>, vector<8x512xf32>
    %c104_206 = arith.constant 104 : index
    %c0_207 = arith.constant 0 : index
    %352 = vector.load %arg9[%c104_206, %c0_207] : memref<216x512xf32, #tpu.memory_space<vmem>>, vector<8x512xf32>
    tpu.vector_store %arg9[%c104_206, %c0_207], %351 {strides = array<i32>} : memref<216x512xf32, #tpu.memory_space<vmem>>, vector<8x512xf32>,
    %c0_208 = arith.constant 0 : index
    %c129_209 = arith.constant 129 : index
    %353 = vector.load %arg8[%c0_208, %c129_209] : memref<8x768xf32, #tpu.memory_space<vmem>>, vector<8x512xf32>
    %cst_210 = arith.constant 0.000000e+00 : f32
    %354 = vector.shape_cast %36 : vector<1x512xi1> to vector<1x512xi1>
    %355 = vector.broadcast %354 : vector<1x512xi1> to vector<8x512xi1>
    %356 = vector.broadcast %cst_210 : f32 to vector<8x512xf32>
    %357 = arith.select %355, %353, %356 : vector<8x512xi1>, vector<8x512xf32>
    %c112_211 = arith.constant 112 : index
    %c0_212 = arith.constant 0 : index
    %358 = vector.load %arg9[%c112_211, %c0_212] : memref<216x512xf32, #tpu.memory_space<vmem>>, vector<8x512xf32>
    tpu.vector_store %arg9[%c112_211, %c0_212], %357 {strides = array<i32>} : memref<216x512xf32, #tpu.memory_space<vmem>>, vector<8x512xf32>,
    %c0_213 = arith.constant 0 : index
    %c135_214 = arith.constant 135 : index
    %359 = vector.load %arg8[%c0_213, %c135_214] : memref<8x768xf32, #tpu.memory_space<vmem>>, vector<8x512xf32>
    %cst_215 = arith.constant 0.000000e+00 : f32
    %360 = vector.shape_cast %42 : vector<1x512xi1> to vector<1x512xi1>
    %361 = vector.broadcast %360 : vector<1x512xi1> to vector<8x512xi1>
    %362 = vector.broadcast %cst_215 : f32 to vector<8x512xf32>
    %363 = arith.select %361, %359, %362 : vector<8x512xi1>, vector<8x512xf32>
    %c120_216 = arith.constant 120 : index
    %c0_217 = arith.constant 0 : index
    %364 = vector.load %arg9[%c120_216, %c0_217] : memref<216x512xf32, #tpu.memory_space<vmem>>, vector<8x512xf32>
    tpu.vector_store %arg9[%c120_216, %c0_217], %363 {strides = array<i32>} : memref<216x512xf32, #tpu.memory_space<vmem>>, vector<8x512xf32>,
    %c0_218 = arith.constant 0 : index
    %c136_219 = arith.constant 136 : index
    %365 = vector.load %arg8[%c0_218, %c136_219] : memref<8x768xf32, #tpu.memory_space<vmem>>, vector<8x512xf32>
    %cst_220 = arith.constant 0.000000e+00 : f32
    %366 = vector.shape_cast %48 : vector<1x512xi1> to vector<1x512xi1>
    %367 = vector.broadcast %366 : vector<1x512xi1> to vector<8x512xi1>
    %368 = vector.broadcast %cst_220 : f32 to vector<8x512xf32>
    %369 = arith.select %367, %365, %368 : vector<8x512xi1>, vector<8x512xf32>
    %c128_221 = arith.constant 128 : index
    %c0_222 = arith.constant 0 : index
    %370 = vector.load %arg9[%c128_221, %c0_222] : memref<216x512xf32, #tpu.memory_space<vmem>>, vector<8x512xf32>
    tpu.vector_store %arg9[%c128_221, %c0_222], %369 {strides = array<i32>} : memref<216x512xf32, #tpu.memory_space<vmem>>, vector<8x512xf32>,
    %c0_223 = arith.constant 0 : index
    %c137_224 = arith.constant 137 : index
    %371 = vector.load %arg8[%c0_223, %c137_224] : memref<8x768xf32, #tpu.memory_space<vmem>>, vector<8x512xf32>
    %cst_225 = arith.constant 0.000000e+00 : f32
    %372 = vector.shape_cast %54 : vector<1x512xi1> to vector<1x512xi1>
    %373 = vector.broadcast %372 : vector<1x512xi1> to vector<8x512xi1>
    %374 = vector.broadcast %cst_225 : f32 to vector<8x512xf32>
    %375 = arith.select %373, %371, %374 : vector<8x512xi1>, vector<8x512xf32>
    %c136_226 = arith.constant 136 : index
    %c0_227 = arith.constant 0 : index
    %376 = vector.load %arg9[%c136_226, %c0_227] : memref<216x512xf32, #tpu.memory_space<vmem>>, vector<8x512xf32>
    tpu.vector_store %arg9[%c136_226, %c0_227], %375 {strides = array<i32>} : memref<216x512xf32, #tpu.memory_space<vmem>>, vector<8x512xf32>,
    %c0_228 = arith.constant 0 : index
    %c183_229 = arith.constant 183 : index
    %377 = vector.load %arg8[%c0_228, %c183_229] : memref<8x768xf32, #tpu.memory_space<vmem>>, vector<8x512xf32>
    %cst_230 = arith.constant 0.000000e+00 : f32
    %378 = vector.shape_cast %6 : vector<1x512xi1> to vector<1x512xi1>
    %379 = vector.broadcast %378 : vector<1x512xi1> to vector<8x512xi1>
    %380 = vector.broadcast %cst_230 : f32 to vector<8x512xf32>
    %381 = arith.select %379, %377, %380 : vector<8x512xi1>, vector<8x512xf32>
    %c144_231 = arith.constant 144 : index
    %c0_232 = arith.constant 0 : index
    %382 = vector.load %arg9[%c144_231, %c0_232] : memref<216x512xf32, #tpu.memory_space<vmem>>, vector<8x512xf32>
    tpu.vector_store %arg9[%c144_231, %c0_232], %381 {strides = array<i32>} : memref<216x512xf32, #tpu.memory_space<vmem>>, vector<8x512xf32>,
    %c0_233 = arith.constant 0 : index
    %c184_234 = arith.constant 184 : index
    %383 = vector.load %arg8[%c0_233, %c184_234] : memref<8x768xf32, #tpu.memory_space<vmem>>, vector<8x512xf32>
    %cst_235 = arith.constant 0.000000e+00 : f32
    %384 = vector.shape_cast %12 : vector<1x512xi1> to vector<1x512xi1>
    %385 = vector.broadcast %384 : vector<1x512xi1> to vector<8x512xi1>
    %386 = vector.broadcast %cst_235 : f32 to vector<8x512xf32>
    %387 = arith.select %385, %383, %386 : vector<8x512xi1>, vector<8x512xf32>
    %c152_236 = arith.constant 152 : index
    %c0_237 = arith.constant 0 : index
    %388 = vector.load %arg9[%c152_236, %c0_237] : memref<216x512xf32, #tpu.memory_space<vmem>>, vector<8x512xf32>
    tpu.vector_store %arg9[%c152_236, %c0_237], %387 {strides = array<i32>} : memref<216x512xf32, #tpu.memory_space<vmem>>, vector<8x512xf32>,
    %c0_238 = arith.constant 0 : index
    %c185_239 = arith.constant 185 : index
    %389 = vector.load %arg8[%c0_238, %c185_239] : memref<8x768xf32, #tpu.memory_space<vmem>>, vector<8x512xf32>
    %cst_240 = arith.constant 0.000000e+00 : f32
    %390 = vector.shape_cast %18 : vector<1x512xi1> to vector<1x512xi1>
    %391 = vector.broadcast %390 : vector<1x512xi1> to vector<8x512xi1>
    %392 = vector.broadcast %cst_240 : f32 to vector<8x512xf32>
    %393 = arith.select %391, %389, %392 : vector<8x512xi1>, vector<8x512xf32>
    %c160_241 = arith.constant 160 : index
    %c0_242 = arith.constant 0 : index
    %394 = vector.load %arg9[%c160_241, %c0_242] : memref<216x512xf32, #tpu.memory_space<vmem>>, vector<8x512xf32>
    tpu.vector_store %arg9[%c160_241, %c0_242], %393 {strides = array<i32>} : memref<216x512xf32, #tpu.memory_space<vmem>>, vector<8x512xf32>,
    %c0_243 = arith.constant 0 : index
    %c191_244 = arith.constant 191 : index
    %395 = vector.load %arg8[%c0_243, %c191_244] : memref<8x768xf32, #tpu.memory_space<vmem>>, vector<8x512xf32>
    %cst_245 = arith.constant 0.000000e+00 : f32
    %396 = vector.shape_cast %24 : vector<1x512xi1> to vector<1x512xi1>
    %397 = vector.broadcast %396 : vector<1x512xi1> to vector<8x512xi1>
    %398 = vector.broadcast %cst_245 : f32 to vector<8x512xf32>
    %399 = arith.select %397, %395, %398 : vector<8x512xi1>, vector<8x512xf32>
    %c168_246 = arith.constant 168 : index
    %c0_247 = arith.constant 0 : index
    %400 = vector.load %arg9[%c168_246, %c0_247] : memref<216x512xf32, #tpu.memory_space<vmem>>, vector<8x512xf32>
    tpu.vector_store %arg9[%c168_246, %c0_247], %399 {strides = array<i32>} : memref<216x512xf32, #tpu.memory_space<vmem>>, vector<8x512xf32>,
    %c0_248 = arith.constant 0 : index
    %c192_249 = arith.constant 192 : index
    %401 = vector.load %arg8[%c0_248, %c192_249] : memref<8x768xf32, #tpu.memory_space<vmem>>, vector<8x512xf32>
    %cst_250 = arith.constant 0.000000e+00 : f32
    %402 = vector.shape_cast %30 : vector<1x512xi1> to vector<1x512xi1>
    %403 = vector.broadcast %402 : vector<1x512xi1> to vector<8x512xi1>
    %404 = vector.broadcast %cst_250 : f32 to vector<8x512xf32>
    %405 = arith.select %403, %401, %404 : vector<8x512xi1>, vector<8x512xf32>
    %c176_251 = arith.constant 176 : index
    %c0_252 = arith.constant 0 : index
    %406 = vector.load %arg9[%c176_251, %c0_252] : memref<216x512xf32, #tpu.memory_space<vmem>>, vector<8x512xf32>
    tpu.vector_store %arg9[%c176_251, %c0_252], %405 {strides = array<i32>} : memref<216x512xf32, #tpu.memory_space<vmem>>, vector<8x512xf32>,
    %c0_253 = arith.constant 0 : index
    %c193_254 = arith.constant 193 : index
    %407 = vector.load %arg8[%c0_253, %c193_254] : memref<8x768xf32, #tpu.memory_space<vmem>>, vector<8x512xf32>
    %cst_255 = arith.constant 0.000000e+00 : f32
    %408 = vector.shape_cast %36 : vector<1x512xi1> to vector<1x512xi1>
    %409 = vector.broadcast %408 : vector<1x512xi1> to vector<8x512xi1>
    %410 = vector.broadcast %cst_255 : f32 to vector<8x512xf32>
    %411 = arith.select %409, %407, %410 : vector<8x512xi1>, vector<8x512xf32>
    %c184_256 = arith.constant 184 : index
    %c0_257 = arith.constant 0 : index
    %412 = vector.load %arg9[%c184_256, %c0_257] : memref<216x512xf32, #tpu.memory_space<vmem>>, vector<8x512xf32>
    tpu.vector_store %arg9[%c184_256, %c0_257], %411 {strides = array<i32>} : memref<216x512xf32, #tpu.memory_space<vmem>>, vector<8x512xf32>,
    %c0_258 = arith.constant 0 : index
    %c199_259 = arith.constant 199 : index
    %413 = vector.load %arg8[%c0_258, %c199_259] : memref<8x768xf32, #tpu.memory_space<vmem>>, vector<8x512xf32>
    %cst_260 = arith.constant 0.000000e+00 : f32
    %414 = vector.shape_cast %42 : vector<1x512xi1> to vector<1x512xi1>
    %415 = vector.broadcast %414 : vector<1x512xi1> to vector<8x512xi1>
    %416 = vector.broadcast %cst_260 : f32 to vector<8x512xf32>
    %417 = arith.select %415, %413, %416 : vector<8x512xi1>, vector<8x512xf32>
    %c192_261 = arith.constant 192 : index
    %c0_262 = arith.constant 0 : index
    %418 = vector.load %arg9[%c192_261, %c0_262] : memref<216x512xf32, #tpu.memory_space<vmem>>, vector<8x512xf32>
    tpu.vector_store %arg9[%c192_261, %c0_262], %417 {strides = array<i32>} : memref<216x512xf32, #tpu.memory_space<vmem>>, vector<8x512xf32>,
    %c0_263 = arith.constant 0 : index
    %c200_264 = arith.constant 200 : index
    %419 = vector.load %arg8[%c0_263, %c200_264] : memref<8x768xf32, #tpu.memory_space<vmem>>, vector<8x512xf32>
    %cst_265 = arith.constant 0.000000e+00 : f32
    %420 = vector.shape_cast %48 : vector<1x512xi1> to vector<1x512xi1>
    %421 = vector.broadcast %420 : vector<1x512xi1> to vector<8x512xi1>
    %422 = vector.broadcast %cst_265 : f32 to vector<8x512xf32>
    %423 = arith.select %421, %419, %422 : vector<8x512xi1>, vector<8x512xf32>
    %c200_266 = arith.constant 200 : index
    %c0_267 = arith.constant 0 : index
    %424 = vector.load %arg9[%c200_266, %c0_267] : memref<216x512xf32, #tpu.memory_space<vmem>>, vector<8x512xf32>
    tpu.vector_store %arg9[%c200_266, %c0_267], %423 {strides = array<i32>} : memref<216x512xf32, #tpu.memory_space<vmem>>, vector<8x512xf32>,
    %c0_268 = arith.constant 0 : index
    %c201_269 = arith.constant 201 : index
    %425 = vector.load %arg8[%c0_268, %c201_269] : memref<8x768xf32, #tpu.memory_space<vmem>>, vector<8x512xf32>
    %cst_270 = arith.constant 0.000000e+00 : f32
    %426 = vector.shape_cast %54 : vector<1x512xi1> to vector<1x512xi1>
    %427 = vector.broadcast %426 : vector<1x512xi1> to vector<8x512xi1>
    %428 = vector.broadcast %cst_270 : f32 to vector<8x512xf32>
    %429 = arith.select %427, %425, %428 : vector<8x512xi1>, vector<8x512xf32>
    %c208_271 = arith.constant 208 : index
    %c0_272 = arith.constant 0 : index
    %430 = vector.load %arg9[%c208_271, %c0_272] : memref<216x512xf32, #tpu.memory_space<vmem>>, vector<8x512xf32>
    tpu.vector_store %arg9[%c208_271, %c0_272], %429 {strides = array<i32>} : memref<216x512xf32, #tpu.memory_space<vmem>>, vector<8x512xf32>,
    %c0_273 = arith.constant 0 : index
    %c0_274 = arith.constant 0 : index
    %431 = vector.load %arg4[%c0_273, %c0_274] : memref<4x216xbf16, #tpu.memory_space<vmem>>, vector<4x216xbf16>
    %c0_275 = arith.constant 0 : index
    %c0_276 = arith.constant 0 : index
    %432 = vector.load %arg9[%c0_275, %c0_276] : memref<216x512xf32, #tpu.memory_space<vmem>>, vector<216x512xf32>
    %433 = arith.truncf %432 : vector<216x512xf32> to vector<216x512xbf16>
    %cst_277 = arith.constant dense<0.000000e+00> : vector<4x512xf32>
    %434 = tpu.matmul %431, %433, %cst_277 {dimension_numbers = #tpu.dot_dimension_numbers<[1], [0], [0], [1], [0, 0, 1, 1], [], []>} : vector<4x216xbf16>, vector<216x512xbf16>, vector<4x512xf32> -> vector<4x512xf32>
    %c0_278 = arith.constant 0 : index
    %c0_279 = arith.constant 0 : index
    %435 = vector.load %arg5[%c0_278, %c0_279] : memref<2x4xbf16, #tpu.memory_space<vmem>>, vector<2x4xbf16>
    %436 = arith.truncf %434 : vector<4x512xf32> to vector<4x512xbf16>
    %cst_280 = arith.constant dense<0.000000e+00> : vector<2x512xf32>
    %437 = tpu.matmul %435, %436, %cst_280 {dimension_numbers = #tpu.dot_dimension_numbers<[1], [0], [0], [1], [0, 0, 1, 1], [], []>} : vector<2x4xbf16>, vector<4x512xbf16>, vector<2x512xf32> -> vector<2x512xf32>
    %c0_281 = arith.constant 0 : index
    %c0_282 = arith.constant 0 : index
    %438 = vector.load %arg6[%c0_281, %c0_282] : memref<2x1xf32, #tpu.memory_space<vmem>>, vector<2x1xf32>
    %439 = vector.broadcast %438 : vector<2x1xf32> to vector<2x512xf32>
    %440 = arith.addf %437, %439 : vector<2x512xf32>
    %c1 = arith.constant 1 : index
    %c0_283 = arith.constant 0 : index
    %441 = vector.load %arg1[%c1, %c0_283] : memref<8x512xi32, #tpu.memory_space<vmem>>, vector<1x512xi32>
    %c0_i32_284 = arith.constant 0 : i32
    %442 = vector.broadcast %c0_i32_284 : i32 to vector<1x512xi32>
    %443 = arith.shrsi %441, %442 : vector<1x512xi32>
    %c1_i32_285 = arith.constant 1 : i32
    %444 = vector.broadcast %c1_i32_285 : i32 to vector<1x512xi32>
    %445 = arith.andi %443, %444 : vector<1x512xi32>
    %c0_i32_286 = arith.constant 0 : i32
    %446 = vector.broadcast %c0_i32_286 : i32 to vector<1x512xi32>
    %447 = arith.cmpi ne, %445, %446 : vector<1x512xi32>
    %c1_i32_287 = arith.constant 1 : i32
    %448 = vector.broadcast %c1_i32_287 : i32 to vector<1x512xi32>
    %449 = arith.shrsi %441, %448 : vector<1x512xi32>
    %c1_i32_288 = arith.constant 1 : i32
    %450 = vector.broadcast %c1_i32_288 : i32 to vector<1x512xi32>
    %451 = arith.andi %449, %450 : vector<1x512xi32>
    %c0_i32_289 = arith.constant 0 : i32
    %452 = vector.broadcast %c0_i32_289 : i32 to vector<1x512xi32>
    %453 = arith.cmpi ne, %451, %452 : vector<1x512xi32>
    %c2_i32_290 = arith.constant 2 : i32
    %454 = vector.broadcast %c2_i32_290 : i32 to vector<1x512xi32>
    %455 = arith.shrsi %441, %454 : vector<1x512xi32>
    %c1_i32_291 = arith.constant 1 : i32
    %456 = vector.broadcast %c1_i32_291 : i32 to vector<1x512xi32>
    %457 = arith.andi %455, %456 : vector<1x512xi32>
    %c0_i32_292 = arith.constant 0 : i32
    %458 = vector.broadcast %c0_i32_292 : i32 to vector<1x512xi32>
    %459 = arith.cmpi ne, %457, %458 : vector<1x512xi32>
    %c3_i32_293 = arith.constant 3 : i32
    %460 = vector.broadcast %c3_i32_293 : i32 to vector<1x512xi32>
    %461 = arith.shrsi %441, %460 : vector<1x512xi32>
    %c1_i32_294 = arith.constant 1 : i32
    %462 = vector.broadcast %c1_i32_294 : i32 to vector<1x512xi32>
    %463 = arith.andi %461, %462 : vector<1x512xi32>
    %c0_i32_295 = arith.constant 0 : i32
    %464 = vector.broadcast %c0_i32_295 : i32 to vector<1x512xi32>
    %465 = arith.cmpi ne, %463, %464 : vector<1x512xi32>
    %c4_i32_296 = arith.constant 4 : i32
    %466 = vector.broadcast %c4_i32_296 : i32 to vector<1x512xi32>
    %467 = arith.shrsi %441, %466 : vector<1x512xi32>
    %c1_i32_297 = arith.constant 1 : i32
    %468 = vector.broadcast %c1_i32_297 : i32 to vector<1x512xi32>
    %469 = arith.andi %467, %468 : vector<1x512xi32>
    %c0_i32_298 = arith.constant 0 : i32
    %470 = vector.broadcast %c0_i32_298 : i32 to vector<1x512xi32>
    %471 = arith.cmpi ne, %469, %470 : vector<1x512xi32>
    %c5_i32_299 = arith.constant 5 : i32
    %472 = vector.broadcast %c5_i32_299 : i32 to vector<1x512xi32>
    %473 = arith.shrsi %441, %472 : vector<1x512xi32>
    %c1_i32_300 = arith.constant 1 : i32
    %474 = vector.broadcast %c1_i32_300 : i32 to vector<1x512xi32>
    %475 = arith.andi %473, %474 : vector<1x512xi32>
    %c0_i32_301 = arith.constant 0 : i32
    %476 = vector.broadcast %c0_i32_301 : i32 to vector<1x512xi32>
    %477 = arith.cmpi ne, %475, %476 : vector<1x512xi32>
    %c64_i32 = arith.constant 64 : i32
    %478 = tpu.dynamic_rotate %440 by %c64_i32 dim 1 : vector<2x512xf32>, i32 -> vector<2x512xf32>
    %479 = vector.shape_cast %447 : vector<1x512xi1> to vector<1x512xi1>
    %480 = vector.broadcast %479 : vector<1x512xi1> to vector<2x512xi1>
    %481 = arith.select %480, %440, %478 : vector<2x512xi1>, vector<2x512xf32>
    %cst_302 = arith.constant 2.500000e-01 : f32
    %482 = vector.broadcast %cst_302 : f32 to vector<2x512xf32>
    %483 = arith.mulf %482, %481 : vector<2x512xf32>
    %cst_303 = arith.constant 7.500000e-01 : f32
    %484 = vector.broadcast %cst_303 : f32 to vector<2x512xf32>
    %485 = arith.mulf %484, %440 : vector<2x512xf32>
    %486 = arith.addf %483, %485 : vector<2x512xf32>
    %c8_i32_304 = arith.constant 8 : i32
    %487 = tpu.dynamic_rotate %486 by %c8_i32_304 dim 1 : vector<2x512xf32>, i32 -> vector<2x512xf32>
    %488 = vector.shape_cast %459 : vector<1x512xi1> to vector<1x512xi1>
    %489 = vector.broadcast %488 : vector<1x512xi1> to vector<2x512xi1>
    %490 = arith.select %489, %486, %487 : vector<2x512xi1>, vector<2x512xf32>
    %cst_305 = arith.constant 2.500000e-01 : f32
    %491 = vector.broadcast %cst_305 : f32 to vector<2x512xf32>
    %492 = arith.mulf %491, %490 : vector<2x512xf32>
    %cst_306 = arith.constant 7.500000e-01 : f32
    %493 = vector.broadcast %cst_306 : f32 to vector<2x512xf32>
    %494 = arith.mulf %493, %486 : vector<2x512xf32>
    %495 = arith.addf %492, %494 : vector<2x512xf32>
    %c1_i32_307 = arith.constant 1 : i32
    %496 = tpu.dynamic_rotate %495 by %c1_i32_307 dim 1 : vector<2x512xf32>, i32 -> vector<2x512xf32>
    %497 = vector.shape_cast %471 : vector<1x512xi1> to vector<1x512xi1>
    %498 = vector.broadcast %497 : vector<1x512xi1> to vector<2x512xi1>
    %499 = arith.select %498, %495, %496 : vector<2x512xi1>, vector<2x512xf32>
    %cst_308 = arith.constant 2.500000e-01 : f32
    %500 = vector.broadcast %cst_308 : f32 to vector<2x512xf32>
    %501 = arith.mulf %500, %499 : vector<2x512xf32>
    %cst_309 = arith.constant 7.500000e-01 : f32
    %502 = vector.broadcast %cst_309 : f32 to vector<2x512xf32>
    %503 = arith.mulf %502, %495 : vector<2x512xf32>
    %504 = arith.addf %501, %503 : vector<2x512xf32>
    %c511_i32 = arith.constant 511 : i32
    %505 = tpu.dynamic_rotate %495 by %c511_i32 dim 1 : vector<2x512xf32>, i32 -> vector<2x512xf32>
    %506 = vector.shape_cast %477 : vector<1x512xi1> to vector<1x512xi1>
    %507 = vector.broadcast %506 : vector<1x512xi1> to vector<2x512xi1>
    %508 = arith.select %507, %495, %505 : vector<2x512xi1>, vector<2x512xf32>
    %cst_310 = arith.constant 7.500000e-01 : f32
    %509 = vector.broadcast %cst_310 : f32 to vector<2x512xf32>
    %510 = arith.mulf %509, %495 : vector<2x512xf32>
    %cst_311 = arith.constant 2.500000e-01 : f32
    %511 = vector.broadcast %cst_311 : f32 to vector<2x512xf32>
    %512 = arith.mulf %511, %508 : vector<2x512xf32>
    %513 = arith.addf %510, %512 : vector<2x512xf32>
    %c504_i32 = arith.constant 504 : i32
    %514 = tpu.dynamic_rotate %486 by %c504_i32 dim 1 : vector<2x512xf32>, i32 -> vector<2x512xf32>
    %515 = vector.shape_cast %465 : vector<1x512xi1> to vector<1x512xi1>
    %516 = vector.broadcast %515 : vector<1x512xi1> to vector<2x512xi1>
    %517 = arith.select %516, %486, %514 : vector<2x512xi1>, vector<2x512xf32>
    %cst_312 = arith.constant 7.500000e-01 : f32
    %518 = vector.broadcast %cst_312 : f32 to vector<2x512xf32>
    %519 = arith.mulf %518, %486 : vector<2x512xf32>
    %cst_313 = arith.constant 2.500000e-01 : f32
    %520 = vector.broadcast %cst_313 : f32 to vector<2x512xf32>
    %521 = arith.mulf %520, %517 : vector<2x512xf32>
    %522 = arith.addf %519, %521 : vector<2x512xf32>
    %c1_i32_314 = arith.constant 1 : i32
    %523 = tpu.dynamic_rotate %522 by %c1_i32_314 dim 1 : vector<2x512xf32>, i32 -> vector<2x512xf32>
    %524 = vector.shape_cast %471 : vector<1x512xi1> to vector<1x512xi1>
    %525 = vector.broadcast %524 : vector<1x512xi1> to vector<2x512xi1>
    %526 = arith.select %525, %522, %523 : vector<2x512xi1>, vector<2x512xf32>
    %cst_315 = arith.constant 2.500000e-01 : f32
    %527 = vector.broadcast %cst_315 : f32 to vector<2x512xf32>
    %528 = arith.mulf %527, %526 : vector<2x512xf32>
    %cst_316 = arith.constant 7.500000e-01 : f32
    %529 = vector.broadcast %cst_316 : f32 to vector<2x512xf32>
    %530 = arith.mulf %529, %522 : vector<2x512xf32>
    %531 = arith.addf %528, %530 : vector<2x512xf32>
    %c511_i32_317 = arith.constant 511 : i32
    %532 = tpu.dynamic_rotate %522 by %c511_i32_317 dim 1 : vector<2x512xf32>, i32 -> vector<2x512xf32>
    %533 = vector.shape_cast %477 : vector<1x512xi1> to vector<1x512xi1>
    %534 = vector.broadcast %533 : vector<1x512xi1> to vector<2x512xi1>
    %535 = arith.select %534, %522, %532 : vector<2x512xi1>, vector<2x512xf32>
    %cst_318 = arith.constant 7.500000e-01 : f32
    %536 = vector.broadcast %cst_318 : f32 to vector<2x512xf32>
    %537 = arith.mulf %536, %522 : vector<2x512xf32>
    %cst_319 = arith.constant 2.500000e-01 : f32
    %538 = vector.broadcast %cst_319 : f32 to vector<2x512xf32>
    %539 = arith.mulf %538, %535 : vector<2x512xf32>
    %540 = arith.addf %537, %539 : vector<2x512xf32>
    %c448_i32 = arith.constant 448 : i32
    %541 = tpu.dynamic_rotate %440 by %c448_i32 dim 1 : vector<2x512xf32>, i32 -> vector<2x512xf32>
    %542 = vector.shape_cast %453 : vector<1x512xi1> to vector<1x512xi1>
    %543 = vector.broadcast %542 : vector<1x512xi1> to vector<2x512xi1>
    %544 = arith.select %543, %440, %541 : vector<2x512xi1>, vector<2x512xf32>
    %cst_320 = arith.constant 7.500000e-01 : f32
    %545 = vector.broadcast %cst_320 : f32 to vector<2x512xf32>
    %546 = arith.mulf %545, %440 : vector<2x512xf32>
    %cst_321 = arith.constant 2.500000e-01 : f32
    %547 = vector.broadcast %cst_321 : f32 to vector<2x512xf32>
    %548 = arith.mulf %547, %544 : vector<2x512xf32>
    %549 = arith.addf %546, %548 : vector<2x512xf32>
    %c8_i32_322 = arith.constant 8 : i32
    %550 = tpu.dynamic_rotate %549 by %c8_i32_322 dim 1 : vector<2x512xf32>, i32 -> vector<2x512xf32>
    %551 = vector.shape_cast %459 : vector<1x512xi1> to vector<1x512xi1>
    %552 = vector.broadcast %551 : vector<1x512xi1> to vector<2x512xi1>
    %553 = arith.select %552, %549, %550 : vector<2x512xi1>, vector<2x512xf32>
    %cst_323 = arith.constant 2.500000e-01 : f32
    %554 = vector.broadcast %cst_323 : f32 to vector<2x512xf32>
    %555 = arith.mulf %554, %553 : vector<2x512xf32>
    %cst_324 = arith.constant 7.500000e-01 : f32
    %556 = vector.broadcast %cst_324 : f32 to vector<2x512xf32>
    %557 = arith.mulf %556, %549 : vector<2x512xf32>
    %558 = arith.addf %555, %557 : vector<2x512xf32>
    %c1_i32_325 = arith.constant 1 : i32
    %559 = tpu.dynamic_rotate %558 by %c1_i32_325 dim 1 : vector<2x512xf32>, i32 -> vector<2x512xf32>
    %560 = vector.shape_cast %471 : vector<1x512xi1> to vector<1x512xi1>
    %561 = vector.broadcast %560 : vector<1x512xi1> to vector<2x512xi1>
    %562 = arith.select %561, %558, %559 : vector<2x512xi1>, vector<2x512xf32>
    %cst_326 = arith.constant 2.500000e-01 : f32
    %563 = vector.broadcast %cst_326 : f32 to vector<2x512xf32>
    %564 = arith.mulf %563, %562 : vector<2x512xf32>
    %cst_327 = arith.constant 7.500000e-01 : f32
    %565 = vector.broadcast %cst_327 : f32 to vector<2x512xf32>
    %566 = arith.mulf %565, %558 : vector<2x512xf32>
    %567 = arith.addf %564, %566 : vector<2x512xf32>
    %c511_i32_328 = arith.constant 511 : i32
    %568 = tpu.dynamic_rotate %558 by %c511_i32_328 dim 1 : vector<2x512xf32>, i32 -> vector<2x512xf32>
    %569 = vector.shape_cast %477 : vector<1x512xi1> to vector<1x512xi1>
    %570 = vector.broadcast %569 : vector<1x512xi1> to vector<2x512xi1>
    %571 = arith.select %570, %558, %568 : vector<2x512xi1>, vector<2x512xf32>
    %cst_329 = arith.constant 7.500000e-01 : f32
    %572 = vector.broadcast %cst_329 : f32 to vector<2x512xf32>
    %573 = arith.mulf %572, %558 : vector<2x512xf32>
    %cst_330 = arith.constant 2.500000e-01 : f32
    %574 = vector.broadcast %cst_330 : f32 to vector<2x512xf32>
    %575 = arith.mulf %574, %571 : vector<2x512xf32>
    %576 = arith.addf %573, %575 : vector<2x512xf32>
    %c504_i32_331 = arith.constant 504 : i32
    %577 = tpu.dynamic_rotate %549 by %c504_i32_331 dim 1 : vector<2x512xf32>, i32 -> vector<2x512xf32>
    %578 = vector.shape_cast %465 : vector<1x512xi1> to vector<1x512xi1>
    %579 = vector.broadcast %578 : vector<1x512xi1> to vector<2x512xi1>
    %580 = arith.select %579, %549, %577 : vector<2x512xi1>, vector<2x512xf32>
    %cst_332 = arith.constant 7.500000e-01 : f32
    %581 = vector.broadcast %cst_332 : f32 to vector<2x512xf32>
    %582 = arith.mulf %581, %549 : vector<2x512xf32>
    %cst_333 = arith.constant 2.500000e-01 : f32
    %583 = vector.broadcast %cst_333 : f32 to vector<2x512xf32>
    %584 = arith.mulf %583, %580 : vector<2x512xf32>
    %585 = arith.addf %582, %584 : vector<2x512xf32>
    %c1_i32_334 = arith.constant 1 : i32
    %586 = tpu.dynamic_rotate %585 by %c1_i32_334 dim 1 : vector<2x512xf32>, i32 -> vector<2x512xf32>
    %587 = vector.shape_cast %471 : vector<1x512xi1> to vector<1x512xi1>
    %588 = vector.broadcast %587 : vector<1x512xi1> to vector<2x512xi1>
    %589 = arith.select %588, %585, %586 : vector<2x512xi1>, vector<2x512xf32>
    %cst_335 = arith.constant 2.500000e-01 : f32
    %590 = vector.broadcast %cst_335 : f32 to vector<2x512xf32>
    %591 = arith.mulf %590, %589 : vector<2x512xf32>
    %cst_336 = arith.constant 7.500000e-01 : f32
    %592 = vector.broadcast %cst_336 : f32 to vector<2x512xf32>
    %593 = arith.mulf %592, %585 : vector<2x512xf32>
    %594 = arith.addf %591, %593 : vector<2x512xf32>
    %c511_i32_337 = arith.constant 511 : i32
    %595 = tpu.dynamic_rotate %585 by %c511_i32_337 dim 1 : vector<2x512xf32>, i32 -> vector<2x512xf32>
    %596 = vector.shape_cast %477 : vector<1x512xi1> to vector<1x512xi1>
    %597 = vector.broadcast %596 : vector<1x512xi1> to vector<2x512xi1>
    %598 = arith.select %597, %585, %595 : vector<2x512xi1>, vector<2x512xf32>
    %cst_338 = arith.constant 7.500000e-01 : f32
    %599 = vector.broadcast %cst_338 : f32 to vector<2x512xf32>
    %600 = arith.mulf %599, %585 : vector<2x512xf32>
    %cst_339 = arith.constant 2.500000e-01 : f32
    %601 = vector.broadcast %cst_339 : f32 to vector<2x512xf32>
    %602 = arith.mulf %601, %598 : vector<2x512xf32>
    %603 = arith.addf %600, %602 : vector<2x512xf32>
    %604 = tpu.concatenate %504, %513, %531, %540, %567, %576, %594, %603 in 0 : vector<2x512xf32>, vector<2x512xf32>, vector<2x512xf32>, vector<2x512xf32>, vector<2x512xf32>, vector<2x512xf32>, vector<2x512xf32>, vector<2x512xf32> -> vector<16x512xf32>
    %c0_340 = arith.constant 0 : index
    %c0_341 = arith.constant 0 : index
    %c0_342 = arith.constant 0 : index
    %605 = vector.load %arg7[%c0_340, %c0_341, %c0_342] : memref<1x16x512xf32, #tpu.memory_space<vmem>>, vector<1x16x512xf32>
    %606 = vector.shape_cast %605 : vector<1x16x512xf32> to vector<16x512xf32>
    %607 = vector.shape_cast %604 : vector<16x512xf32> to vector<1x16x512xf32>
    tpu.vector_store %arg7[%c0_340, %c0_341, %c0_342], %607 {strides = array<i32>} : memref<1x16x512xf32, #tpu.memory_space<vmem>>, vector<1x16x512xf32>,
    return
  }
  func.func @transform_0(%arg0: i32) -> (i32, i32) {
    %c0_i32 = arith.constant 0 : i32
    %c0_i32_0 = arith.constant 0 : i32
    %c0_i32_1 = arith.constant 0 : i32
    return %c0_i32, %c0_i32_0 : i32, i32
  }
  func.func @transform_1(%arg0: i32) -> (i32, i32, i32) {
    %c0_i32 = arith.constant 0 : i32
    %c0_i32_0 = arith.constant 0 : i32
    %c0_i32_1 = arith.constant 0 : i32
    return %arg0, %c0_i32, %c0_i32_0 : i32, i32, i32
  }
  func.func @transform_2(%arg0: i32) -> (i32, i32) {
    %c0_i32 = arith.constant 0 : i32
    %c0_i32_0 = arith.constant 0 : i32
    %c0_i32_1 = arith.constant 0 : i32
    return %c0_i32, %c0_i32_0 : i32, i32
  }
  func.func @transform_3(%arg0: i32) -> (i32, i32) {
    %c0_i32 = arith.constant 0 : i32
    %c0_i32_0 = arith.constant 0 : i32
    %c0_i32_1 = arith.constant 0 : i32
    return %c0_i32, %c0_i32_0 : i32, i32
  }
  func.func @transform_4(%arg0: i32) -> (i32, i32) {
    %c0_i32 = arith.constant 0 : i32
    %c0_i32_0 = arith.constant 0 : i32
    %c0_i32_1 = arith.constant 0 : i32
    return %c0_i32, %c0_i32_0 : i32, i32
  }
  func.func @transform_5(%arg0: i32) -> (i32, i32) {
    %c0_i32 = arith.constant 0 : i32
    %c0_i32_0 = arith.constant 0 : i32
    %c0_i32_1 = arith.constant 0 : i32
    return %c0_i32, %c0_i32_0 : i32, i32
  }
  func.func @transform_6(%arg0: i32) -> (i32, i32, i32) {
    %c0_i32 = arith.constant 0 : i32
    %c0_i32_0 = arith.constant 0 : i32
    %c0_i32_1 = arith.constant 0 : i32
    return %arg0, %c0_i32, %c0_i32_0 : i32, i32, i32
  }
}

</mosaic_0001>

<llo_original>
// kernel: _decoder_forward.1
$region0: #{_decoder_forward.1}
  #allocation0 [shape = 'u32[]', space=smem, size = 0x4, offset = 0x4, fixed_abs, tag = 'smem constant byte address 0x4 - core index']
  #allocation1 [shape = 'u32[72,128]{1,0:T(1,128)}', space=vmem, size = 0x9000, scoped, tag = 'internal scratch']
  #allocation2 [shape = 'f32[8,768]{1,0:T(8,128)}', space=vmem, size = 0x6000, scoped, tag = 'scratch operand']
  #allocation3 [shape = 'f32[216,512]{1,0:T(8,128)}', space=vmem, size = 0x6c000, scoped, tag = 'scratch operand']
  %s0 = inlined_call_operand.hbm [shape: s32[8,512], index: 0, kind: input, shape index: {}]
  %s1 = inlined_call_operand.vmem [shape: f32[2,4,512], index: 1, kind: input, shape index: {}]
  %s2 = inlined_call_operand.vmem [shape: bf16[4,216], index: 2, kind: input, shape index: {}]
  %s3 = inlined_call_operand.vmem [shape: bf16[4,216], index: 3, kind: input, shape index: {}]
  %s4 = inlined_call_operand.vmem [shape: bf16[2,4], index: 4, kind: input, shape index: {}]
  %s5 = inlined_call_operand.vmem [shape: f32[2,1], index: 5, kind: input, shape index: {}]
  %s6 = inlined_call_operand.vmem [shape: f32[2,16,512], index: 6, kind: output, shape index: {}]
  %s7 = sld [smem:[#allocation0]]
  $region61: #{_decoder_forward.1} parent=0
    _
  %s9 = ssub.s32 1, %s7
  %s10 = scalar_select 0, %s9, %s7
  $region1: #{_decoder_forward.1} parent=0
    #allocation4 [shape = 'u8[16384]{0}', space=vmem, size = 0x4000, scoped, tag = 'input window, operand 0, single buffered']
    #allocation5 [shape = 's32[2]{0}', space=sflag, size = 0x8, scoped, tag = 'scoped memory for _decoder_forward.1']
    %11 = vsyncpa [#allocation5], 0
    loop: start=0, step=1, limit=4
    $region2: #{_decoder_forward.1} parent=1 // loop_pre_header
      _
    $region3: #{_decoder_forward.1} parent=1 // loop_header
      %s13 = sphi 0, %s17
      %p14 = scmp.ge.s32.totalorder %s13, 4
      %s21 = sphi 0, %s21
      %s23 = sphi 0, %s21
      %s24 = sphi 0, %s23
      %s38 = sphi 0, %s24
      %s44 = sphi 0, %s46
      %s47 = sphi 0, %s44
      %s48 = sphi 0, %s47
      %s64 = sphi 0, %s48
      %s68 = sphi 0, %s68
      %s70 = sphi 0, %s68
      %s71 = sphi 0, %s70
      %s85 = sphi 0, %s71
      %s89 = sphi 0, %s89
      %s91 = sphi 0, %s89
      %s92 = sphi 0, %s91
      %s106 = sphi 0, %s92
      %s110 = sphi 0, %s110
      %s112 = sphi 0, %s110
      %s113 = sphi 0, %s112
      %s127 = sphi 0, %s113
      %s131 = sphi 0, %s131
      %s133 = sphi 0, %s131
      %s134 = sphi 0, %s133
      %s148 = sphi 0, %s134
      %s154 = sphi 0, %s156
      %s157 = sphi 0, %s154
      %s158 = sphi 0, %s157
      %s174 = sphi 0, %s158
    $region4: #{_decoder_forward.1} parent=1 // loop_header_branch
      %16 = sbr.rel (%p14) target = $region8
    $region5: #{_decoder_forward.1} parent=1 // loop_body
      %s18 = ssub.s32 %s13, 1
      %s19 = ssub.s32 %s13, 2
      %s20 = sadd.s32 %s13, 1
      %s22 = sadd.s32 %s21, 1
      %p25 = scmp.eq.s32.totalorder %s13, 1
      %p26 = scmp.ne.s32.totalorder %s21, %s23
      %p27 = scmp.eq.s32.totalorder %s13, 0
      %p28 = por %p26, %p27
      %p29 = scmp.ne.s32.totalorder %s21, %s23
      %p30 = scmp.eq.s32.totalorder %s18, 1
      %p31 = por %p29, %p30
      %p32 = scmp.ne.s32.totalorder %s23, %s24
      %p33 = scmp.eq.s32.totalorder %s18, 0
      %p34 = por %p32, %p33
      %p35 = scmp.ne.s32.totalorder %s23, %s24
      %p36 = scmp.eq.s32.totalorder %s19, 1
      %p37 = por %p35, %p36
      %p39 = scmp.ne.s32.totalorder %s24, %s38
      %p40 = scmp.eq.s32.totalorder %s19, 0
      %p41 = por %p39, %p40
      %s42 = ssub.s32 %s13, %s20
      %p43 = scmp.eq.s32.totalorder %s42, 0
      %s45 = sadd.s32 %s44, 1
      %s46 = scalar_select %p43, %s44, %s45
      %p49 = pneg %p43
      %p50 = scmp.eq.s32.totalorder %s13, 1
      %p51 = por %p49, %p50
      %p52 = scmp.ne.s32.totalorder %s44, %s47
      %p53 = scmp.eq.s32.totalorder %s13, 0
      %p54 = por %p52, %p53
      %p55 = scmp.ne.s32.totalorder %s44, %s47
      %p56 = scmp.eq.s32.totalorder %s18, 1
      %p57 = por %p55, %p56
      %p58 = scmp.ne.s32.totalorder %s47, %s48
      %p59 = scmp.eq.s32.totalorder %s18, 0
      %p60 = por %p58, %p59
      %p61 = scmp.ne.s32.totalorder %s47, %s48
      %p62 = scmp.eq.s32.totalorder %s19, 1
      %p63 = por %p61, %p62
      %p65 = scmp.ne.s32.totalorder %s48, %s64
      %p66 = scmp.eq.s32.totalorder %s19, 0
      %p67 = por %p65, %p66
      %s69 = sadd.s32 %s68, 1
      %p72 = scmp.eq.s32.totalorder %s13, 1
      %p73 = scmp.ne.s32.totalorder %s68, %s70
      %p74 = scmp.eq.s32.totalorder %s13, 0
      %p75 = por %p73, %p74
      %p76 = scmp.ne.s32.totalorder %s68, %s70
      %p77 = scmp.eq.s32.totalorder %s18, 1
      %p78 = por %p76, %p77
      %p79 = scmp.ne.s32.totalorder %s70, %s71
      %p80 = scmp.eq.s32.totalorder %s18, 0
      %p81 = por %p79, %p80
      %p82 = scmp.ne.s32.totalorder %s70, %s71
      %p83 = scmp.eq.s32.totalorder %s19, 1
      %p84 = por %p82, %p83
      %p86 = scmp.ne.s32.totalorder %s71, %s85
      %p87 = scmp.eq.s32.totalorder %s19, 0
      %p88 = por %p86, %p87
      %s90 = sadd.s32 %s89, 1
      %p93 = scmp.eq.s32.totalorder %s13, 1
      %p94 = scmp.ne.s32.totalorder %s89, %s91
      %p95 = scmp.eq.s32.totalorder %s13, 0
      %p96 = por %p94, %p95
      %p97 = scmp.ne.s32.totalorder %s89, %s91
      %p98 = scmp.eq.s32.totalorder %s18, 1
      %p99 = por %p97, %p98
      %p100 = scmp.ne.s32.totalorder %s91, %s92
      %p101 = scmp.eq.s32.totalorder %s18, 0
      %p102 = por %p100, %p101
      %p103 = scmp.ne.s32.totalorder %s91, %s92
      %p104 = scmp.eq.s32.totalorder %s19, 1
      %p105 = por %p103, %p104
      %p107 = scmp.ne.s32.totalorder %s92, %s106
      %p108 = scmp.eq.s32.totalorder %s19, 0
      %p109 = por %p107, %p108
      %s111 = sadd.s32 %s110, 1
      %p114 = scmp.eq.s32.totalorder %s13, 1
      %p115 = scmp.ne.s32.totalorder %s110, %s112
      %p116 = scmp.eq.s32.totalorder %s13, 0
      %p117 = por %p115, %p116
      %p118 = scmp.ne.s32.totalorder %s110, %s112
      %p119 = scmp.eq.s32.totalorder %s18, 1
      %p120 = por %p118, %p119
      %p121 = scmp.ne.s32.totalorder %s112, %s113
      %p122 = scmp.eq.s32.totalorder %s18, 0
      %p123 = por %p121, %p122
      %p124 = scmp.ne.s32.totalorder %s112, %s113
      %p125 = scmp.eq.s32.totalorder %s19, 1
      %p126 = por %p124, %p125
      %p128 = scmp.ne.s32.totalorder %s113, %s127
      %p129 = scmp.eq.s32.totalorder %s19, 0
      %p130 = por %p128, %p129
      %s132 = sadd.s32 %s131, 1
      %p135 = scmp.eq.s32.totalorder %s13, 1
      %p136 = scmp.ne.s32.totalorder %s131, %s133
      %p137 = scmp.eq.s32.totalorder %s13, 0
      %p138 = por %p136, %p137
      %p139 = scmp.ne.s32.totalorder %s131, %s133
      %p140 = scmp.eq.s32.totalorder %s18, 1
      %p141 = por %p139, %p140
      %p142 = scmp.ne.s32.totalorder %s133, %s134
      %p143 = scmp.eq.s32.totalorder %s18, 0
      %p144 = por %p142, %p143
      %p145 = scmp.ne.s32.totalorder %s133, %s134
      %p146 = scmp.eq.s32.totalorder %s19, 1
      %p147 = por %p145, %p146
      %p149 = scmp.ne.s32.totalorder %s134, %s148
      %p150 = scmp.eq.s32.totalorder %s19, 0
      %p151 = por %p149, %p150
      %s152 = ssub.s32 %s13, %s20
      %p153 = scmp.eq.s32.totalorder %s152, 0
      %s155 = sadd.s32 %s154, 1
      %s156 = scalar_select %p153, %s154, %s155
      %p159 = pneg %p153
      %p160 = scmp.eq.s32.totalorder %s13, 1
      %p161 = por %p159, %p160
      %p162 = scmp.ne.s32.totalorder %s154, %s157
      %p163 = scmp.eq.s32.totalorder %s13, 0
      %p164 = por %p162, %p163
      %p165 = scmp.ne.s32.totalorder %s154, %s157
      %p166 = scmp.eq.s32.totalorder %s18, 1
      %p167 = por %p165, %p166
      %p168 = scmp.ne.s32.totalorder %s157, %s158
      %p169 = scmp.eq.s32.totalorder %s18, 0
      %p170 = por %p168, %p169
      %p171 = scmp.ne.s32.totalorder %s157, %s158
      %p172 = scmp.eq.s32.totalorder %s19, 1
      %p173 = por %p171, %p172
      %p175 = scmp.ne.s32.totalorder %s158, %s174
      %p176 = scmp.eq.s32.totalorder %s19, 0
      %p177 = por %p175, %p176
      %p178 = scmp.le.s32.totalorder 1, %s13
      %p179 = scmp.lt.s32.totalorder %s13, 3
      %p180 = pnand %p178, %p179
      %p181 = pneg %p180
      // Predicated region
      $region9: #{_decoder_forward.1} parent=5 // pred_check
        _
      $region10: #{_decoder_forward.1} parent=5 // pred_check_branch
        %183 = sbr.rel (%p180) target = $region12
      $region11: #{_decoder_forward.1} parent=5 // pred_region
        %s184 = ssub.s32 %s13, 1
        // Predicated region
        $region13: #{_decoder_forward.1} parent=11 // pred_check
          %p185 = pneg %p34
        $region14: #{_decoder_forward.1} parent=11 // pred_check_branch
          %187 = sbr.rel (%p185) target = $region16
        $region15: #{_decoder_forward.1} parent=11 // pred_region
          %189 = vsyncadd [#allocation5], 0
          %s191 = sshll.u32 %s0, 4
          %s192 = int_to_ptr.hbm [resolvable:$true] %s191
          %s193 = sshll.u32 [#allocation4], 4
          %s194 = int_to_ptr.vmem [resolvable:$true] %s193
          %196 = dma.hbm_to_vmem [thread:$0]  %s192, 512, %s194, [#allocation5]
        $region16: #{_decoder_forward.1} parent=11 // pred_fallthru
          _
        // Predicated region
        $region17: #{_decoder_forward.1} parent=11 // pred_check
          %p197 = pneg %p81
        $region18: #{_decoder_forward.1} parent=11 // pred_check_branch
          %199 = sbr.rel (%p197) target = $region20
        $region19: #{_decoder_forward.1} parent=11 // pred_region
          _
        $region20: #{_decoder_forward.1} parent=11 // pred_fallthru
          _
        // Predicated region
        $region21: #{_decoder_forward.1} parent=11 // pred_check
          %p200 = pneg %p102
        $region22: #{_decoder_forward.1} parent=11 // pred_check_branch
          %202 = sbr.rel (%p200) target = $region24
        $region23: #{_decoder_forward.1} parent=11 // pred_region
          _
        $region24: #{_decoder_forward.1} parent=11 // pred_fallthru
          _
        // Predicated region
        $region25: #{_decoder_forward.1} parent=11 // pred_check
          %p203 = pneg %p123
        $region26: #{_decoder_forward.1} parent=11 // pred_check_branch
          %205 = sbr.rel (%p203) target = $region28
        $region27: #{_decoder_forward.1} parent=11 // pred_region
          _
        $region28: #{_decoder_forward.1} parent=11 // pred_fallthru
          _
        // Predicated region
        $region29: #{_decoder_forward.1} parent=11 // pred_check
          %p206 = pneg %p144
        $region30: #{_decoder_forward.1} parent=11 // pred_check_branch
          %208 = sbr.rel (%p206) target = $region32
        $region31: #{_decoder_forward.1} parent=11 // pred_region
          _
        $region32: #{_decoder_forward.1} parent=11 // pred_fallthru
          _
      $region12: #{_decoder_forward.1} parent=5 // pred_fallthru
        _
      %p209 = scmp.lt.s32.totalorder %s13, 2
      // Predicated region
      $region33: #{_decoder_forward.1} parent=5 // pred_check
        %p210 = pneg %p209
      $region34: #{_decoder_forward.1} parent=5 // pred_check_branch
        %212 = sbr.rel (%p210) target = $region36
      $region35: #{_decoder_forward.1} parent=5 // pred_region
        // Predicated region
        $region37: #{_decoder_forward.1} parent=35 // pred_check
          %p213 = pneg %p54
        $region38: #{_decoder_forward.1} parent=35 // pred_check_branch
          %215 = sbr.rel (%p213) target = $region40
        $region39: #{_decoder_forward.1} parent=35 // pred_region
          %p216 = scmp.lt.s32.totalorder %s13, 1
          %s217 = scalar_select %p216, %s13, 1
          %s218 = smul.addr %s217, 4
          %s219 = smul.addr %s218, 4
          %s220 = scalar_lea.vmem %s1, %s219
        $region40: #{_decoder_forward.1} parent=35 // pred_fallthru
          _
      $region36: #{_decoder_forward.1} parent=5 // pred_fallthru
        _
      %p221 = scmp.le.s32.totalorder 1, %s13
      %p222 = scmp.lt.s32.totalorder %s13, 3
      %p223 = pnand %p221, %p222
      %p224 = pneg %p223
      // Predicated region
      $region41: #{_decoder_forward.1} parent=5 // pred_check
        _
      $region42: #{_decoder_forward.1} parent=5 // pred_check_branch
        %226 = sbr.rel (%p223) target = $region44
      $region43: #{_decoder_forward.1} parent=5 // pred_region
        %s227 = ssub.s32 %s13, 1
        // Predicated region
        $region45: #{_decoder_forward.1} parent=43 // pred_check
          %p228 = pneg %p34
        $region46: #{_decoder_forward.1} parent=43 // pred_check_branch
          %230 = sbr.rel (%p228) target = $region48
        $region47: #{_decoder_forward.1} parent=43 // pred_region
          %232 = dma.done [#allocation5], 512
        $region48: #{_decoder_forward.1} parent=43 // pred_fallthru
          _
        %p233 = pneg %p34
        %p234 = pneg %p31
        %p235 = scmp.lt.s32.totalorder %s18, 1
        %s236 = scalar_select %p235, %s18, 1
        %s237 = smul.addr %s236, 4
        %s238 = smul.addr %s237, 4
        %s239 = scalar_lea.vmem %s1, %s238
        %p240 = pneg %p60
        %p241 = pneg %p57
        %p242 = pneg %p81
        %p243 = pneg %p78
        %p244 = pneg %p102
        %p245 = pneg %p99
        %p246 = pneg %p123
        %p247 = pneg %p120
        %p248 = pneg %p144
        %p249 = pneg %p141
        %p250 = pneg %p170
        %p251 = pneg %p167
        %p252 = scmp.lt.s32.totalorder %s18, 1
        %s253 = scalar_select %p252, %s18, 1
        %s254 = smul.addr %s253, 8
        %s255 = smul.addr %s254, 8
        %s256 = scalar_lea.vmem %s6, %s255
        %p257 = scmp.lt.s32.totalorder %s18, 1
        %s258 = scalar_select %p257, %s18, 1
        %s259 = smul.addr %s258, 4
        %s260 = smul.addr %s259, 4
        %s261 = scalar_lea.vmem %s1, %s260
        %p262 = scmp.lt.s32.totalorder %s18, 1
        %s263 = scalar_select %p262, %s18, 1
        %s264 = smul.addr %s263, 8
        %s265 = smul.addr %s264, 8
        %s266 = scalar_lea.vmem %s6, %s265
        %v268 = vld [vmem:[#allocation4] ss:$8 sm:$0xf]
        %v269 = vand.u32 %v268, 1
        %vm270 = vcmp.ne.s32.totalorder %v269, 0
        %v271 = vshra.s32 %v268, 1
        %v272 = vand.u32 %v271, 1
        %vm273 = vcmp.ne.s32.totalorder %v272, 0
        %v274 = vshra.s32 %v268, 2
        %v275 = vand.u32 %v274, 1
        %vm276 = vcmp.ne.s32.totalorder %v275, 0
        %v277 = vshra.s32 %v268, 3
        %v278 = vand.u32 %v277, 1
        %vm279 = vcmp.ne.s32.totalorder %v278, 0
        %v280 = vshra.s32 %v268, 4
        %v281 = vand.u32 %v280, 1
        %vm282 = vcmp.ne.s32.totalorder %v281, 0
        %v283 = vshra.s32 %v268, 5
        %v284 = vand.u32 %v283, 1
        %vm285 = vcmp.ne.s32.totalorder %v284, 0
        %v286 = vshra.s32 %v268, 6
        %v287 = vand.u32 %v286, 1
        %vm288 = vcmp.ne.s32.totalorder %v287, 0
        %v289 = vshra.s32 %v268, 7
        %v290 = vand.u32 %v289, 1
        %vm291 = vcmp.ne.s32.totalorder %v290, 0
        %v292 = vshra.s32 %v268, 8
        %v293 = vand.u32 %v292, 1
        %vm294 = vcmp.ne.s32.totalorder %v293, 0
        %295 = vst [vmem:[#allocation2] sm:$0xff] 0.0
        %296 = vst [vmem:[#allocation2 + $0x8] sm:$0xff] 0.0
        %297 = vst [vmem:[#allocation2 + $0x10] sm:$0xff] 0.0
        %298 = vst [vmem:[#allocation2 + $0x18] sm:$0xff] 0.0
        %299 = vst [vmem:[#allocation2 + $0x20] sm:$0xff] 0.0
        %300 = vst [vmem:[#allocation2 + $0x28] sm:$0xff] 0.0
        %v301 = vld [vmem:[%s261] sm:$0xff]
        %v302 = vld [vmem:[%s261 + $0x8] sm:$0xff]
        %305 = vst [vmem:[#allocation1] ss:$2 sm:$0xff] %v301
        %s306 = scalar_lea.vmem [#allocation1], 16
        %307 = vst [vmem:[%s306] ss:$2 sm:$0xff] %v302
        %v308 = vld.sshfl [vmem:[#allocation1] sm:$0xff pattern:$0x75316420]
        %v309 = vld.sshfl [vmem:[#allocation1 + $0x8] sm:$0xff pattern:$0x75316420]
        %v310 = vld.sshfl [vmem:[#allocation1 + $0x10] sm:$0xff pattern:$0x75316420]
        %v311 = vld.sshfl [vmem:[#allocation1 + $0x18] sm:$0xff pattern:$0x75316420]
        %vm316 = vcmask 1043456
        %v317 = vsel %vm316, %v308, 0.0
        %v318 = vsel %vm316, %v309, 0.0
        %v319 = vadd.f32 %v317, %v318
        %v320 = vsel %vm316, %v310, 0.0
        %v321 = vadd.f32 %v319, %v320
        %v322 = vsel %vm316, %v311, 0.0
        %v323 = vadd.f32 %v321, %v322
        %324 = vadd.xlane.f32.xlu0 %v323
        %v325 = vpop.xlane.xlu0 %324
        %v326 = vrcp.pop 512.0
        %v327 = vmul.f32 512.0, %v326
        %v328 = vsub.f32 1.0, %v327
        %v329 = vmul.f32 %v326, %v328
        %v330 = vadd.f32 %v326, %v329
        %vm331 = vweird.f32 %v326
        %v332 = vsel %vm331, %v326, %v330
        %v333 = vmul.f32 %v325, %v332
        %v336 = vunpack.c.l.s4 839922192
        %v337 = vunpack.c.0.s8 %v336
        %v338 = vperm.slane %v333, %v337
        %v340 = vsub.f32 %v301, %v338
        %v341 = vsub.f32 %v302, %v338
        %v342 = vmul.f32 %v340, %v340
        %v343 = vmul.f32 %v341, %v341
        %346 = vst [vmem:[#allocation1] ss:$2 sm:$0xff] %v342
        %s347 = scalar_lea.vmem [#allocation1], 16
        %348 = vst [vmem:[%s347] ss:$2 sm:$0xff] %v343
        %v349 = vld.sshfl [vmem:[#allocation1] sm:$0xff pattern:$0x75316420]
        %v350 = vld.sshfl [vmem:[#allocation1 + $0x8] sm:$0xff pattern:$0x75316420]
        %v351 = vld.sshfl [vmem:[#allocation1 + $0x10] sm:$0xff pattern:$0x75316420]
        %v352 = vld.sshfl [vmem:[#allocation1 + $0x18] sm:$0xff pattern:$0x75316420]
        %v357 = vsel %vm316, %v349, 0.0
        %v358 = vsel %vm316, %v350, 0.0
        %v359 = vadd.f32 %v357, %v358
        %v360 = vsel %vm316, %v351, 0.0
        %v361 = vadd.f32 %v359, %v360
        %v362 = vsel %vm316, %v352, 0.0
        %v363 = vadd.f32 %v361, %v362
        %364 = vadd.xlane.f32.xlu0 %v363
        %v365 = vpop.xlane.xlu0 %364
        %v366 = vmul.f32 %v365, %v332
        %v367 = vadd.f32 %v366, 1e-05
        %v368 = vrsqrt.pop %v367
        %v369 = vmul.f32 %v368, %v367
        %v370 = vmul.f32 %v369, %v368
        %v371 = vmul.f32 0.5, %v370
        %v372 = vsub.f32 1.5, %v371
        %v373 = vmul.f32 %v368, %v372
        %vm374 = vweird.f32 %v367
        %vm375 = vweird.f32 %v368
        %vm376 = vmor %vm374, %vm375
        %v377 = vsel %vm376, %v368, %v373
        %v380 = vunpack.c.l.s4 839922192
        %v381 = vunpack.c.0.s8 %v380
        %v382 = vperm.slane %v377, %v381
        %v384 = vmul.f32 %v340, %v382
        %v385 = vmul.f32 %v341, %v382
        %vm386 = vcmp.ge.f32.partialorder %v384, 0.0
        %vm387 = vcmp.ge.f32.partialorder %v385, 0.0
        %v388 = vmul.f32 %v384, 0.01
        %v389 = vmul.f32 %v385, 0.01
        %v390 = vsel %vm386, %v384, %v388
        %v391 = vsel %vm387, %v385, %v389
        %394 = vst [vmem:[#allocation1] ss:$2 sm:$0xff] %v390
        %s395 = scalar_lea.vmem [#allocation1], 16
        %396 = vst [vmem:[%s395] ss:$2 sm:$0xff] %v391
        %v397 = vld.sshfl [vmem:[#allocation1] sm:$0xff pattern:$0x75316420]
        %v398 = vld.sshfl [vmem:[#allocation1 + $0x8] sm:$0xff pattern:$0x75316420]
        %v399 = vld.sshfl [vmem:[#allocation1 + $0x10] sm:$0xff pattern:$0x75316420]
        %v400 = vld.sshfl [vmem:[#allocation1 + $0x18] sm:$0xff pattern:$0x75316420]
        %405 = vst [vmem:[#allocation2 + $0x8] sm:$0xf] %v397
        %406 = vst [vmem:[#allocation2 + $0x10] sm:$0xf] %v398
        %407 = vst [vmem:[#allocation2 + $0x18] sm:$0xf] %v399
        %408 = vst [vmem:[#allocation2 + $0x20] sm:$0xf] %v400
        %v409 = vld [vmem:[#allocation2] sm:$0xff]
        %v410 = vld [vmem:[#allocation2 + $0x8] sm:$0xff]
        %v411 = vld [vmem:[#allocation2 + $0x10] sm:$0xff]
        %v412 = vld [vmem:[#allocation2 + $0x18] sm:$0xff]
        %v413 = vld [vmem:[#allocation2 + $0x20] sm:$0xff]
        %v414 = vsel %vm270, 1, 0
        %v415 = vperm.slane %v414, 0
        %v416 = vperm.slane %v414, 1
        %v417 = vperm.slane %v414, 2
        %v418 = vperm.slane %v414, 3
        %vm419 = vcmp.eq.s32.totalorder %v415, 1
        %vm420 = vcmp.eq.s32.totalorder %v416, 1
        %vm421 = vcmp.eq.s32.totalorder %v417, 1
        %vm422 = vcmp.eq.s32.totalorder %v418, 1
        %428 = vrot.lane.b32.xlu0 %v409, 73
        %v429 = vpop.permute.xlu0 %428
        %430 = vrot.lane.b32.xlu0 %v410, 73
        %v431 = vpop.permute.xlu0 %430
        %432 = vrot.lane.b32.xlu0 %v411, 73
        %v433 = vpop.permute.xlu0 %432
        %434 = vrot.lane.b32.xlu0 %v412, 73
        %v435 = vpop.permute.xlu0 %434
        %436 = vrot.lane.b32.xlu0 %v413, 73
        %v437 = vpop.permute.xlu0 %436
        %vm438 = vcmask 596992
        %v439 = vsel %vm438, %v429, %v431
        %v440 = vsel %vm438, %v431, %v433
        %v441 = vsel %vm438, %v433, %v435
        %v442 = vsel %vm438, %v435, %v437
        %v447 = vsel %vm419, %v439, 0.0
        %v448 = vsel %vm420, %v440, 0.0
        %v449 = vsel %vm421, %v441, 0.0
        %v450 = vsel %vm422, %v442, 0.0
        %451 = vst [vmem:[#allocation3] sm:$0xff] %v447
        %452 = vst [vmem:[#allocation3 + $0x8] sm:$0xff] %v448
        %453 = vst [vmem:[#allocation3 + $0x10] sm:$0xff] %v449
        %454 = vst [vmem:[#allocation3 + $0x18] sm:$0xff] %v450
        %v455 = vld [vmem:[#allocation2] sm:$0xff]
        %v456 = vld [vmem:[#allocation2 + $0x8] sm:$0xff]
        %v457 = vld [vmem:[#allocation2 + $0x10] sm:$0xff]
        %v458 = vld [vmem:[#allocation2 + $0x18] sm:$0xff]
        %v459 = vld [vmem:[#allocation2 + $0x20] sm:$0xff]
        %v460 = vsel %vm273, 1, 0
        %v461 = vperm.slane %v460, 0
        %v462 = vperm.slane %v460, 1
        %v463 = vperm.slane %v460, 2
        %v464 = vperm.slane %v460, 3
        %vm465 = vcmp.eq.s32.totalorder %v461, 1
        %vm466 = vcmp.eq.s32.totalorder %v462, 1
        %vm467 = vcmp.eq.s32.totalorder %v463, 1
        %vm468 = vcmp.eq.s32.totalorder %v464, 1
        %474 = vrot.lane.b32.xlu0 %v455, 72
        %v475 = vpop.permute.xlu0 %474
        %476 = vrot.lane.b32.xlu0 %v456, 72
        %v477 = vpop.permute.xlu0 %476
        %478 = vrot.lane.b32.xlu0 %v457, 72
        %v479 = vpop.permute.xlu0 %478
        %480 = vrot.lane.b32.xlu0 %v458, 72
        %v481 = vpop.permute.xlu0 %480
        %482 = vrot.lane.b32.xlu0 %v459, 72
        %v483 = vpop.permute.xlu0 %482
        %vm484 = vcmask 588800
        %v485 = vsel %vm484, %v475, %v477
        %v486 = vsel %vm484, %v477, %v479
        %v487 = vsel %vm484, %v479, %v481
        %v488 = vsel %vm484, %v481, %v483
        %v493 = vsel %vm465, %v485, 0.0
        %v494 = vsel %vm466, %v486, 0.0
        %v495 = vsel %vm467, %v487, 0.0
        %v496 = vsel %vm468, %v488, 0.0
        %497 = vst [vmem:[#allocation3 + $0x20] sm:$0xff] %v493
        %498 = vst [vmem:[#allocation3 + $0x28] sm:$0xff] %v494
        %499 = vst [vmem:[#allocation3 + $0x30] sm:$0xff] %v495
        %500 = vst [vmem:[#allocation3 + $0x38] sm:$0xff] %v496
        %v501 = vld [vmem:[#allocation2] sm:$0xff]
        %v502 = vld [vmem:[#allocation2 + $0x8] sm:$0xff]
        %v503 = vld [vmem:[#allocation2 + $0x10] sm:$0xff]
        %v504 = vld [vmem:[#allocation2 + $0x18] sm:$0xff]
        %v505 = vld [vmem:[#allocation2 + $0x20] sm:$0xff]
        %v506 = vsel %vm276, 1, 0
        %v507 = vperm.slane %v506, 0
        %v508 = vperm.slane %v506, 1
        %v509 = vperm.slane %v506, 2
        %v510 = vperm.slane %v506, 3
        %vm511 = vcmp.eq.s32.totalorder %v507, 1
        %vm512 = vcmp.eq.s32.totalorder %v508, 1
        %vm513 = vcmp.eq.s32.totalorder %v509, 1
        %vm514 = vcmp.eq.s32.totalorder %v510, 1
        %520 = vrot.lane.b32.xlu0 %v501, 71
        %v521 = vpop.permute.xlu0 %520
        %522 = vrot.lane.b32.xlu0 %v502, 71
        %v523 = vpop.permute.xlu0 %522
        %524 = vrot.lane.b32.xlu0 %v503, 71
        %v525 = vpop.permute.xlu0 %524
        %526 = vrot.lane.b32.xlu0 %v504, 71
        %v527 = vpop.permute.xlu0 %526
        %528 = vrot.lane.b32.xlu0 %v505, 71
        %v529 = vpop.permute.xlu0 %528
        %vm530 = vcmask 580608
        %v531 = vsel %vm530, %v521, %v523
        %v532 = vsel %vm530, %v523, %v525
        %v533 = vsel %vm530, %v525, %v527
        %v534 = vsel %vm530, %v527, %v529
        %v539 = vsel %vm511, %v531, 0.0
        %v540 = vsel %vm512, %v532, 0.0
        %v541 = vsel %vm513, %v533, 0.0
        %v542 = vsel %vm514, %v534, 0.0
        %543 = vst [vmem:[#allocation3 + $0x40] sm:$0xff] %v539
        %544 = vst [vmem:[#allocation3 + $0x48] sm:$0xff] %v540
        %545 = vst [vmem:[#allocation3 + $0x50] sm:$0xff] %v541
        %546 = vst [vmem:[#allocation3 + $0x58] sm:$0xff] %v542
        %v547 = vld [vmem:[#allocation2] sm:$0xff]
        %v548 = vld [vmem:[#allocation2 + $0x8] sm:$0xff]
        %v549 = vld [vmem:[#allocation2 + $0x10] sm:$0xff]
        %v550 = vld [vmem:[#allocation2 + $0x18] sm:$0xff]
        %v551 = vld [vmem:[#allocation2 + $0x20] sm:$0xff]
        %v552 = vsel %vm279, 1, 0
        %v553 = vperm.slane %v552, 0
        %v554 = vperm.slane %v552, 1
        %v555 = vperm.slane %v552, 2
        %v556 = vperm.slane %v552, 3
        %vm557 = vcmp.eq.s32.totalorder %v553, 1
        %vm558 = vcmp.eq.s32.totalorder %v554, 1
        %vm559 = vcmp.eq.s32.totalorder %v555, 1
        %vm560 = vcmp.eq.s32.totalorder %v556, 1
        %566 = vrot.lane.b32.xlu0 %v547, 65
        %v567 = vpop.permute.xlu0 %566
        %568 = vrot.lane.b32.xlu0 %v548, 65
        %v569 = vpop.permute.xlu0 %568
        %570 = vrot.lane.b32.xlu0 %v549, 65
        %v571 = vpop.permute.xlu0 %570
        %572 = vrot.lane.b32.xlu0 %v550, 65
        %v573 = vpop.permute.xlu0 %572
        %574 = vrot.lane.b32.xlu0 %v551, 65
        %v575 = vpop.permute.xlu0 %574
        %vm576 = vcmask 531456
        %v577 = vsel %vm576, %v567, %v569
        %v578 = vsel %vm576, %v569, %v571
        %v579 = vsel %vm576, %v571, %v573
        %v580 = vsel %vm576, %v573, %v575
        %v585 = vsel %vm557, %v577, 0.0
        %v586 = vsel %vm558, %v578, 0.0
        %v587 = vsel %vm559, %v579, 0.0
        %v588 = vsel %vm560, %v580, 0.0
        %589 = vst [vmem:[#allocation3 + $0x60] sm:$0xff] %v585
        %590 = vst [vmem:[#allocation3 + $0x68] sm:$0xff] %v586
        %591 = vst [vmem:[#allocation3 + $0x70] sm:$0xff] %v587
        %592 = vst [vmem:[#allocation3 + $0x78] sm:$0xff] %v588
        %v593 = vld [vmem:[#allocation2] sm:$0xff]
        %v594 = vld [vmem:[#allocation2 + $0x8] sm:$0xff]
        %v595 = vld [vmem:[#allocation2 + $0x10] sm:$0xff]
        %v596 = vld [vmem:[#allocation2 + $0x18] sm:$0xff]
        %v597 = vld [vmem:[#allocation2 + $0x20] sm:$0xff]
        %v598 = vsel %vm282, 1, 0
        %v599 = vperm.slane %v598, 0
        %v600 = vperm.slane %v598, 1
        %v601 = vperm.slane %v598, 2
        %v602 = vperm.slane %v598, 3
        %vm603 = vcmp.eq.s32.totalorder %v599, 1
        %vm604 = vcmp.eq.s32.totalorder %v600, 1
        %vm605 = vcmp.eq.s32.totalorder %v601, 1
        %vm606 = vcmp.eq.s32.totalorder %v602, 1
        %612 = vrot.lane.b32.xlu0 %v593, 64
        %v613 = vpop.permute.xlu0 %612
        %614 = vrot.lane.b32.xlu0 %v594, 64
        %v615 = vpop.permute.xlu0 %614
        %616 = vrot.lane.b32.xlu0 %v595, 64
        %v617 = vpop.permute.xlu0 %616
        %618 = vrot.lane.b32.xlu0 %v596, 64
        %v619 = vpop.permute.xlu0 %618
        %620 = vrot.lane.b32.xlu0 %v597, 64
        %v621 = vpop.permute.xlu0 %620
        %vm622 = vcmask 523264
        %v623 = vsel %vm622, %v613, %v615
        %v624 = vsel %vm622, %v615, %v617
        %v625 = vsel %vm622, %v617, %v619
        %v626 = vsel %vm622, %v619, %v621
        %v631 = vsel %vm603, %v623, 0.0
        %v632 = vsel %vm604, %v624, 0.0
        %v633 = vsel %vm605, %v625, 0.0
        %v634 = vsel %vm606, %v626, 0.0
        %635 = vst [vmem:[#allocation3 + $0x80] sm:$0xff] %v631
        %636 = vst [vmem:[#allocation3 + $0x88] sm:$0xff] %v632
        %637 = vst [vmem:[#allocation3 + $0x90] sm:$0xff] %v633
        %638 = vst [vmem:[#allocation3 + $0x98] sm:$0xff] %v634
        %v639 = vld [vmem:[#allocation2] sm:$0xff]
        %v640 = vld [vmem:[#allocation2 + $0x8] sm:$0xff]
        %v641 = vld [vmem:[#allocation2 + $0x10] sm:$0xff]
        %v642 = vld [vmem:[#allocation2 + $0x18] sm:$0xff]
        %v643 = vld [vmem:[#allocation2 + $0x20] sm:$0xff]
        %v644 = vsel %vm285, 1, 0
        %v645 = vperm.slane %v644, 0
        %v646 = vperm.slane %v644, 1
        %v647 = vperm.slane %v644, 2
        %v648 = vperm.slane %v644, 3
        %vm649 = vcmp.eq.s32.totalorder %v645, 1
        %vm650 = vcmp.eq.s32.totalorder %v646, 1
        %vm651 = vcmp.eq.s32.totalorder %v647, 1
        %vm652 = vcmp.eq.s32.totalorder %v648, 1
        %658 = vrot.lane.b32.xlu0 %v639, 63
        %v659 = vpop.permute.xlu0 %658
        %660 = vrot.lane.b32.xlu0 %v640, 63
        %v661 = vpop.permute.xlu0 %660
        %662 = vrot.lane.b32.xlu0 %v641, 63
        %v663 = vpop.permute.xlu0 %662
        %664 = vrot.lane.b32.xlu0 %v642, 63
        %v665 = vpop.permute.xlu0 %664
        %666 = vrot.lane.b32.xlu0 %v643, 63
        %v667 = vpop.permute.xlu0 %666
        %vm668 = vcmask 515072
        %v669 = vsel %vm668, %v659, %v661
        %v670 = vsel %vm668, %v661, %v663
        %v671 = vsel %vm668, %v663, %v665
        %v672 = vsel %vm668, %v665, %v667
        %v677 = vsel %vm649, %v669, 0.0
        %v678 = vsel %vm650, %v670, 0.0
        %v679 = vsel %vm651, %v671, 0.0
        %v680 = vsel %vm652, %v672, 0.0
        %681 = vst [vmem:[#allocation3 + $0xa0] sm:$0xff] %v677
        %682 = vst [vmem:[#allocation3 + $0xa8] sm:$0xff] %v678
        %683 = vst [vmem:[#allocation3 + $0xb0] sm:$0xff] %v679
        %684 = vst [vmem:[#allocation3 + $0xb8] sm:$0xff] %v680
        %v685 = vld [vmem:[#allocation2] sm:$0xff]
        %v686 = vld [vmem:[#allocation2 + $0x8] sm:$0xff]
        %v687 = vld [vmem:[#allocation2 + $0x10] sm:$0xff]
        %v688 = vld [vmem:[#allocation2 + $0x18] sm:$0xff]
        %v689 = vld [vmem:[#allocation2 + $0x20] sm:$0xff]
        %v690 = vsel %vm288, 1, 0
        %v691 = vperm.slane %v690, 0
        %v692 = vperm.slane %v690, 1
        %v693 = vperm.slane %v690, 2
        %v694 = vperm.slane %v690, 3
        %vm695 = vcmp.eq.s32.totalorder %v691, 1
        %vm696 = vcmp.eq.s32.totalorder %v692, 1
        %vm697 = vcmp.eq.s32.totalorder %v693, 1
        %vm698 = vcmp.eq.s32.totalorder %v694, 1
        %704 = vrot.lane.b32.xlu0 %v685, 57
        %v705 = vpop.permute.xlu0 %704
        %706 = vrot.lane.b32.xlu0 %v686, 57
        %v707 = vpop.permute.xlu0 %706
        %708 = vrot.lane.b32.xlu0 %v687, 57
        %v709 = vpop.permute.xlu0 %708
        %710 = vrot.lane.b32.xlu0 %v688, 57
        %v711 = vpop.permute.xlu0 %710
        %712 = vrot.lane.b32.xlu0 %v689, 57
        %v713 = vpop.permute.xlu0 %712
        %vm714 = vcmask 465920
        %v715 = vsel %vm714, %v705, %v707
        %v716 = vsel %vm714, %v707, %v709
        %v717 = vsel %vm714, %v709, %v711
        %v718 = vsel %vm714, %v711, %v713
        %v723 = vsel %vm695, %v715, 0.0
        %v724 = vsel %vm696, %v716, 0.0
        %v725 = vsel %vm697, %v717, 0.0
        %v726 = vsel %vm698, %v718, 0.0
        %727 = vst [vmem:[#allocation3 + $0xc0] sm:$0xff] %v723
        %728 = vst [vmem:[#allocation3 + $0xc8] sm:$0xff] %v724
        %729 = vst [vmem:[#allocation3 + $0xd0] sm:$0xff] %v725
        %730 = vst [vmem:[#allocation3 + $0xd8] sm:$0xff] %v726
        %v731 = vld [vmem:[#allocation2] sm:$0xff]
        %v732 = vld [vmem:[#allocation2 + $0x8] sm:$0xff]
        %v733 = vld [vmem:[#allocation2 + $0x10] sm:$0xff]
        %v734 = vld [vmem:[#allocation2 + $0x18] sm:$0xff]
        %v735 = vld [vmem:[#allocation2 + $0x20] sm:$0xff]
        %v736 = vsel %vm291, 1, 0
        %v737 = vperm.slane %v736, 0
        %v738 = vperm.slane %v736, 1
        %v739 = vperm.slane %v736, 2
        %v740 = vperm.slane %v736, 3
        %vm741 = vcmp.eq.s32.totalorder %v737, 1
        %vm742 = vcmp.eq.s32.totalorder %v738, 1
        %vm743 = vcmp.eq.s32.totalorder %v739, 1
        %vm744 = vcmp.eq.s32.totalorder %v740, 1
        %750 = vrot.lane.b32.xlu0 %v731, 56
        %v751 = vpop.permute.xlu0 %750
        %752 = vrot.lane.b32.xlu0 %v732, 56
        %v753 = vpop.permute.xlu0 %752
        %754 = vrot.lane.b32.xlu0 %v733, 56
        %v755 = vpop.permute.xlu0 %754
        %756 = vrot.lane.b32.xlu0 %v734, 56
        %v757 = vpop.permute.xlu0 %756
        %758 = vrot.lane.b32.xlu0 %v735, 56
        %v759 = vpop.permute.xlu0 %758
        %vm760 = vcmask 457728
        %v761 = vsel %vm760, %v751, %v753
        %v762 = vsel %vm760, %v753, %v755
        %v763 = vsel %vm760, %v755, %v757
        %v764 = vsel %vm760, %v757, %v759
        %v769 = vsel %vm741, %v761, 0.0
        %v770 = vsel %vm742, %v762, 0.0
        %v771 = vsel %vm743, %v763, 0.0
        %v772 = vsel %vm744, %v764, 0.0
        %773 = vst [vmem:[#allocation3 + $0xe0] sm:$0xff] %v769
        %774 = vst [vmem:[#allocation3 + $0xe8] sm:$0xff] %v770
        %775 = vst [vmem:[#allocation3 + $0xf0] sm:$0xff] %v771
        %776 = vst [vmem:[#allocation3 + $0xf8] sm:$0xff] %v772
        %v777 = vld [vmem:[#allocation2] sm:$0xff]
        %v778 = vld [vmem:[#allocation2 + $0x8] sm:$0xff]
        %v779 = vld [vmem:[#allocation2 + $0x10] sm:$0xff]
        %v780 = vld [vmem:[#allocation2 + $0x18] sm:$0xff]
        %v781 = vld [vmem:[#allocation2 + $0x20] sm:$0xff]
        %v782 = vsel %vm294, 1, 0
        %v783 = vperm.slane %v782, 0
        %v784 = vperm.slane %v782, 1
        %v785 = vperm.slane %v782, 2
        %v786 = vperm.slane %v782, 3
        %vm787 = vcmp.eq.s32.totalorder %v783, 1
        %vm788 = vcmp.eq.s32.totalorder %v784, 1
        %vm789 = vcmp.eq.s32.totalorder %v785, 1
        %vm790 = vcmp.eq.s32.totalorder %v786, 1
        %796 = vrot.lane.b32.xlu0 %v777, 55
        %v797 = vpop.permute.xlu0 %796
        %798 = vrot.lane.b32.xlu0 %v778, 55
        %v799 = vpop.permute.xlu0 %798
        %800 = vrot.lane.b32.xlu0 %v779, 55
        %v801 = vpop.permute.xlu0 %800
        %802 = vrot.lane.b32.xlu0 %v780, 55
        %v803 = vpop.permute.xlu0 %802
        %804 = vrot.lane.b32.xlu0 %v781, 55
        %v805 = vpop.permute.xlu0 %804
        %vm806 = vcmask 449536
        %v807 = vsel %vm806, %v797, %v799
        %v808 = vsel %vm806, %v799, %v801
        %v809 = vsel %vm806, %v801, %v803
        %v810 = vsel %vm806, %v803, %v805
        %v815 = vsel %vm787, %v807, 0.0
        %v816 = vsel %vm788, %v808, 0.0
        %v817 = vsel %vm789, %v809, 0.0
        %v818 = vsel %vm790, %v810, 0.0
        %819 = vst [vmem:[#allocation3 + $0x100] sm:$0xff] %v815
        %820 = vst [vmem:[#allocation3 + $0x108] sm:$0xff] %v816
        %821 = vst [vmem:[#allocation3 + $0x110] sm:$0xff] %v817
        %822 = vst [vmem:[#allocation3 + $0x118] sm:$0xff] %v818
        %v823 = vld [vmem:[#allocation2] sm:$0xff]
        %v824 = vld [vmem:[#allocation2 + $0x8] sm:$0xff]
        %v825 = vld [vmem:[#allocation2 + $0x10] sm:$0xff]
        %v826 = vld [vmem:[#allocation2 + $0x18] sm:$0xff]
        %v827 = vld [vmem:[#allocation2 + $0x20] sm:$0xff]
        %833 = vrot.lane.b32.xlu0 %v823, 9
        %v834 = vpop.permute.xlu0 %833
        %835 = vrot.lane.b32.xlu0 %v824, 9
        %v836 = vpop.permute.xlu0 %835
        %837 = vrot.lane.b32.xlu0 %v825, 9
        %v838 = vpop.permute.xlu0 %837
        %839 = vrot.lane.b32.xlu0 %v826, 9
        %v840 = vpop.permute.xlu0 %839
        %841 = vrot.lane.b32.xlu0 %v827, 9
        %v842 = vpop.permute.xlu0 %841
        %vm843 = vcmask 72704
        %v844 = vsel %vm843, %v834, %v836
        %v845 = vsel %vm843, %v836, %v838
        %v846 = vsel %vm843, %v838, %v840
        %v847 = vsel %vm843, %v840, %v842
        %v852 = vsel %vm419, %v844, 0.0
        %v853 = vsel %vm420, %v845, 0.0
        %v854 = vsel %vm421, %v846, 0.0
        %v855 = vsel %vm422, %v847, 0.0
        %856 = vst [vmem:[#allocation3 + $0x120] sm:$0xff] %v852
        %857 = vst [vmem:[#allocation3 + $0x128] sm:$0xff] %v853
        %858 = vst [vmem:[#allocation3 + $0x130] sm:$0xff] %v854
        %859 = vst [vmem:[#allocation3 + $0x138] sm:$0xff] %v855
        %v860 = vld [vmem:[#allocation2] sm:$0xff]
        %v861 = vld [vmem:[#allocation2 + $0x8] sm:$0xff]
        %v862 = vld [vmem:[#allocation2 + $0x10] sm:$0xff]
        %v863 = vld [vmem:[#allocation2 + $0x18] sm:$0xff]
        %v864 = vld [vmem:[#allocation2 + $0x20] sm:$0xff]
        %870 = vrot.lane.b32.xlu0 %v860, 8
        %v871 = vpop.permute.xlu0 %870
        %872 = vrot.lane.b32.xlu0 %v861, 8
        %v873 = vpop.permute.xlu0 %872
        %874 = vrot.lane.b32.xlu0 %v862, 8
        %v875 = vpop.permute.xlu0 %874
        %876 = vrot.lane.b32.xlu0 %v863, 8
        %v877 = vpop.permute.xlu0 %876
        %878 = vrot.lane.b32.xlu0 %v864, 8
        %v879 = vpop.permute.xlu0 %878
        %vm880 = vcmask 64512
        %v881 = vsel %vm880, %v871, %v873
        %v882 = vsel %vm880, %v873, %v875
        %v883 = vsel %vm880, %v875, %v877
        %v884 = vsel %vm880, %v877, %v879
        %v889 = vsel %vm465, %v881, 0.0
        %v890 = vsel %vm466, %v882, 0.0
        %v891 = vsel %vm467, %v883, 0.0
        %v892 = vsel %vm468, %v884, 0.0
        %893 = vst [vmem:[#allocation3 + $0x140] sm:$0xff] %v889
        %894 = vst [vmem:[#allocation3 + $0x148] sm:$0xff] %v890
        %895 = vst [vmem:[#allocation3 + $0x150] sm:$0xff] %v891
        %896 = vst [vmem:[#allocation3 + $0x158] sm:$0xff] %v892
        %v897 = vld [vmem:[#allocation2] sm:$0xff]
        %v898 = vld [vmem:[#allocation2 + $0x8] sm:$0xff]
        %v899 = vld [vmem:[#allocation2 + $0x10] sm:$0xff]
        %v900 = vld [vmem:[#allocation2 + $0x18] sm:$0xff]
        %v901 = vld [vmem:[#allocation2 + $0x20] sm:$0xff]
        %907 = vrot.lane.b32.xlu0 %v897, 7
        %v908 = vpop.permute.xlu0 %907
        %909 = vrot.lane.b32.xlu0 %v898, 7
        %v910 = vpop.permute.xlu0 %909
        %911 = vrot.lane.b32.xlu0 %v899, 7
        %v912 = vpop.permute.xlu0 %911
        %913 = vrot.lane.b32.xlu0 %v900, 7
        %v914 = vpop.permute.xlu0 %913
        %915 = vrot.lane.b32.xlu0 %v901, 7
        %v916 = vpop.permute.xlu0 %915
        %vm917 = vcmask 56320
        %v918 = vsel %vm917, %v908, %v910
        %v919 = vsel %vm917, %v910, %v912
        %v920 = vsel %vm917, %v912, %v914
        %v921 = vsel %vm917, %v914, %v916
        %v926 = vsel %vm511, %v918, 0.0
        %v927 = vsel %vm512, %v919, 0.0
        %v928 = vsel %vm513, %v920, 0.0
        %v929 = vsel %vm514, %v921, 0.0
        %930 = vst [vmem:[#allocation3 + $0x160] sm:$0xff] %v926
        %931 = vst [vmem:[#allocation3 + $0x168] sm:$0xff] %v927
        %932 = vst [vmem:[#allocation3 + $0x170] sm:$0xff] %v928
        %933 = vst [vmem:[#allocation3 + $0x178] sm:$0xff] %v929
        %v934 = vld [vmem:[#allocation2] sm:$0xff]
        %v935 = vld [vmem:[#allocation2 + $0x8] sm:$0xff]
        %v936 = vld [vmem:[#allocation2 + $0x10] sm:$0xff]
        %v937 = vld [vmem:[#allocation2 + $0x18] sm:$0xff]
        %v938 = vld [vmem:[#allocation2 + $0x20] sm:$0xff]
        %944 = vrot.lane.b32.xlu0 %v934, 1
        %v945 = vpop.permute.xlu0 %944
        %946 = vrot.lane.b32.xlu0 %v935, 1
        %v947 = vpop.permute.xlu0 %946
        %948 = vrot.lane.b32.xlu0 %v936, 1
        %v949 = vpop.permute.xlu0 %948
        %950 = vrot.lane.b32.xlu0 %v937, 1
        %v951 = vpop.permute.xlu0 %950
        %952 = vrot.lane.b32.xlu0 %v938, 1
        %v953 = vpop.permute.xlu0 %952
        %vm954 = vcmask 7168
        %v955 = vsel %vm954, %v945, %v947
        %v956 = vsel %vm954, %v947, %v949
        %v957 = vsel %vm954, %v949, %v951
        %v958 = vsel %vm954, %v951, %v953
        %v963 = vsel %vm557, %v955, 0.0
        %v964 = vsel %vm558, %v956, 0.0
        %v965 = vsel %vm559, %v957, 0.0
        %v966 = vsel %vm560, %v958, 0.0
        %967 = vst [vmem:[#allocation3 + $0x180] sm:$0xff] %v963
        %968 = vst [vmem:[#allocation3 + $0x188] sm:$0xff] %v964
        %969 = vst [vmem:[#allocation3 + $0x190] sm:$0xff] %v965
        %970 = vst [vmem:[#allocation3 + $0x198] sm:$0xff] %v966
        %v971 = vld [vmem:[#allocation2 + $0x8] sm:$0xff]
        %v972 = vld [vmem:[#allocation2 + $0x10] sm:$0xff]
        %v973 = vld [vmem:[#allocation2 + $0x18] sm:$0xff]
        %v974 = vld [vmem:[#allocation2 + $0x20] sm:$0xff]
        %v975 = vsel %vm603, %v971, 0.0
        %v976 = vsel %vm604, %v972, 0.0
        %v977 = vsel %vm605, %v973, 0.0
        %v978 = vsel %vm606, %v974, 0.0
        %979 = vst [vmem:[#allocation3 + $0x1a0] sm:$0xff] %v975
        %980 = vst [vmem:[#allocation3 + $0x1a8] sm:$0xff] %v976
        %981 = vst [vmem:[#allocation3 + $0x1b0] sm:$0xff] %v977
        %982 = vst [vmem:[#allocation3 + $0x1b8] sm:$0xff] %v978
        %v983 = vld [vmem:[#allocation2 + $0x8] sm:$0xff]
        %v984 = vld [vmem:[#allocation2 + $0x10] sm:$0xff]
        %v985 = vld [vmem:[#allocation2 + $0x18] sm:$0xff]
        %v986 = vld [vmem:[#allocation2 + $0x20] sm:$0xff]
        %v987 = vld [vmem:[#allocation2 + $0x28] sm:$0xff]
        %993 = vrot.lane.b32.xlu0 %v983, 127
        %v994 = vpop.permute.xlu0 %993
        %995 = vrot.lane.b32.xlu0 %v984, 127
        %v996 = vpop.permute.xlu0 %995
        %997 = vrot.lane.b32.xlu0 %v985, 127
        %v998 = vpop.permute.xlu0 %997
        %999 = vrot.lane.b32.xlu0 %v986, 127
        %v1000 = vpop.permute.xlu0 %999
        %1001 = vrot.lane.b32.xlu0 %v987, 127
        %v1002 = vpop.permute.xlu0 %1001
        %vm1003 = vcmask 1039360
        %v1004 = vsel %vm1003, %v994, %v996
        %v1005 = vsel %vm1003, %v996, %v998
        %v1006 = vsel %vm1003, %v998, %v1000
        %v1007 = vsel %vm1003, %v1000, %v1002
        %v1012 = vsel %vm649, %v1004, 0.0
        %v1013 = vsel %vm650, %v1005, 0.0
        %v1014 = vsel %vm651, %v1006, 0.0
        %v1015 = vsel %vm652, %v1007, 0.0
        %1016 = vst [vmem:[#allocation3 + $0x1c0] sm:$0xff] %v1012
        %1017 = vst [vmem:[#allocation3 + $0x1c8] sm:$0xff] %v1013
        %1018 = vst [vmem:[#allocation3 + $0x1d0] sm:$0xff] %v1014
        %1019 = vst [vmem:[#allocation3 + $0x1d8] sm:$0xff] %v1015
        %v1020 = vld [vmem:[#allocation2 + $0x8] sm:$0xff]
        %v1021 = vld [vmem:[#allocation2 + $0x10] sm:$0xff]
        %v1022 = vld [vmem:[#allocation2 + $0x18] sm:$0xff]
        %v1023 = vld [vmem:[#allocation2 + $0x20] sm:$0xff]
        %v1024 = vld [vmem:[#allocation2 + $0x28] sm:$0xff]
        %1030 = vrot.lane.b32.xlu0 %v1020, 121
        %v1031 = vpop.permute.xlu0 %1030
        %1032 = vrot.lane.b32.xlu0 %v1021, 121
        %v1033 = vpop.permute.xlu0 %1032
        %1034 = vrot.lane.b32.xlu0 %v1022, 121
        %v1035 = vpop.permute.xlu0 %1034
        %1036 = vrot.lane.b32.xlu0 %v1023, 121
        %v1037 = vpop.permute.xlu0 %1036
        %1038 = vrot.lane.b32.xlu0 %v1024, 121
        %v1039 = vpop.permute.xlu0 %1038
        %vm1040 = vcmask 990208
        %v1041 = vsel %vm1040, %v1031, %v1033
        %v1042 = vsel %vm1040, %v1033, %v1035
        %v1043 = vsel %vm1040, %v1035, %v1037
        %v1044 = vsel %vm1040, %v1037, %v1039
        %v1049 = vsel %vm695, %v1041, 0.0
        %v1050 = vsel %vm696, %v1042, 0.0
        %v1051 = vsel %vm697, %v1043, 0.0
        %v1052 = vsel %vm698, %v1044, 0.0
        %1053 = vst [vmem:[#allocation3 + $0x1e0] sm:$0xff] %v1049
        %1054 = vst [vmem:[#allocation3 + $0x1e8] sm:$0xff] %v1050
        %1055 = vst [vmem:[#allocation3 + $0x1f0] sm:$0xff] %v1051
        %1056 = vst [vmem:[#allocation3 + $0x1f8] sm:$0xff] %v1052
        %v1057 = vld [vmem:[#allocation2 + $0x8] sm:$0xff]
        %v1058 = vld [vmem:[#allocation2 + $0x10] sm:$0xff]
        %v1059 = vld [vmem:[#allocation2 + $0x18] sm:$0xff]
        %v1060 = vld [vmem:[#allocation2 + $0x20] sm:$0xff]
        %v1061 = vld [vmem:[#allocation2 + $0x28] sm:$0xff]
        %1067 = vrot.lane.b32.xlu0 %v1057, 120
        %v1068 = vpop.permute.xlu0 %1067
        %1069 = vrot.lane.b32.xlu0 %v1058, 120
        %v1070 = vpop.permute.xlu0 %1069
        %1071 = vrot.lane.b32.xlu0 %v1059, 120
        %v1072 = vpop.permute.xlu0 %1071
        %1073 = vrot.lane.b32.xlu0 %v1060, 120
        %v1074 = vpop.permute.xlu0 %1073
        %1075 = vrot.lane.b32.xlu0 %v1061, 120
        %v1076 = vpop.permute.xlu0 %1075
        %vm1077 = vcmask 982016
        %v1078 = vsel %vm1077, %v1068, %v1070
        %v1079 = vsel %vm1077, %v1070, %v1072
        %v1080 = vsel %vm1077, %v1072, %v1074
        %v1081 = vsel %vm1077, %v1074, %v1076
        %v1086 = vsel %vm741, %v1078, 0.0
        %v1087 = vsel %vm742, %v1079, 0.0
        %v1088 = vsel %vm743, %v1080, 0.0
        %v1089 = vsel %vm744, %v1081, 0.0
        %1090 = vst [vmem:[#allocation3 + $0x200] sm:$0xff] %v1086
        %1091 = vst [vmem:[#allocation3 + $0x208] sm:$0xff] %v1087
        %1092 = vst [vmem:[#allocation3 + $0x210] sm:$0xff] %v1088
        %1093 = vst [vmem:[#allocation3 + $0x218] sm:$0xff] %v1089
        %v1094 = vld [vmem:[#allocation2 + $0x8] sm:$0xff]
        %v1095 = vld [vmem:[#allocation2 + $0x10] sm:$0xff]
        %v1096 = vld [vmem:[#allocation2 + $0x18] sm:$0xff]
        %v1097 = vld [vmem:[#allocation2 + $0x20] sm:$0xff]
        %v1098 = vld [vmem:[#allocation2 + $0x28] sm:$0xff]
        %1104 = vrot.lane.b32.xlu0 %v1094, 119
        %v1105 = vpop.permute.xlu0 %1104
        %1106 = vrot.lane.b32.xlu0 %v1095, 119
        %v1107 = vpop.permute.xlu0 %1106
        %1108 = vrot.lane.b32.xlu0 %v1096, 119
        %v1109 = vpop.permute.xlu0 %1108
        %1110 = vrot.lane.b32.xlu0 %v1097, 119
        %v1111 = vpop.permute.xlu0 %1110
        %1112 = vrot.lane.b32.xlu0 %v1098, 119
        %v1113 = vpop.permute.xlu0 %1112
        %vm1114 = vcmask 973824
        %v1115 = vsel %vm1114, %v1105, %v1107
        %v1116 = vsel %vm1114, %v1107, %v1109
        %v1117 = vsel %vm1114, %v1109, %v1111
        %v1118 = vsel %vm1114, %v1111, %v1113
        %v1123 = vsel %vm787, %v1115, 0.0
        %v1124 = vsel %vm788, %v1116, 0.0
        %v1125 = vsel %vm789, %v1117, 0.0
        %v1126 = vsel %vm790, %v1118, 0.0
        %1127 = vst [vmem:[#allocation3 + $0x220] sm:$0xff] %v1123
        %1128 = vst [vmem:[#allocation3 + $0x228] sm:$0xff] %v1124
        %1129 = vst [vmem:[#allocation3 + $0x230] sm:$0xff] %v1125
        %1130 = vst [vmem:[#allocation3 + $0x238] sm:$0xff] %v1126
        %v1131 = vld [vmem:[#allocation2 + $0x8] sm:$0xff]
        %v1132 = vld [vmem:[#allocation2 + $0x10] sm:$0xff]
        %v1133 = vld [vmem:[#allocation2 + $0x18] sm:$0xff]
        %v1134 = vld [vmem:[#allocation2 + $0x20] sm:$0xff]
        %v1135 = vld [vmem:[#allocation2 + $0x28] sm:$0xff]
        %1141 = vrot.lane.b32.xlu0 %v1131, 73
        %v1142 = vpop.permute.xlu0 %1141
        %1143 = vrot.lane.b32.xlu0 %v1132, 73
        %v1144 = vpop.permute.xlu0 %1143
        %1145 = vrot.lane.b32.xlu0 %v1133, 73
        %v1146 = vpop.permute.xlu0 %1145
        %1147 = vrot.lane.b32.xlu0 %v1134, 73
        %v1148 = vpop.permute.xlu0 %1147
        %1149 = vrot.lane.b32.xlu0 %v1135, 73
        %v1150 = vpop.permute.xlu0 %1149
        %v1151 = vsel %vm438, %v1142, %v1144
        %v1152 = vsel %vm438, %v1144, %v1146
        %v1153 = vsel %vm438, %v1146, %v1148
        %v1154 = vsel %vm438, %v1148, %v1150
        %v1159 = vsel %vm419, %v1151, 0.0
        %v1160 = vsel %vm420, %v1152, 0.0
        %v1161 = vsel %vm421, %v1153, 0.0
        %v1162 = vsel %vm422, %v1154, 0.0
        %1163 = vst [vmem:[#allocation3 + $0x240] sm:$0xff] %v1159
        %1164 = vst [vmem:[#allocation3 + $0x248] sm:$0xff] %v1160
        %1165 = vst [vmem:[#allocation3 + $0x250] sm:$0xff] %v1161
        %1166 = vst [vmem:[#allocation3 + $0x258] sm:$0xff] %v1162
        %v1167 = vld [vmem:[#allocation2 + $0x8] sm:$0xff]
        %v1168 = vld [vmem:[#allocation2 + $0x10] sm:$0xff]
        %v1169 = vld [vmem:[#allocation2 + $0x18] sm:$0xff]
        %v1170 = vld [vmem:[#allocation2 + $0x20] sm:$0xff]
        %v1171 = vld [vmem:[#allocation2 + $0x28] sm:$0xff]
        %1177 = vrot.lane.b32.xlu0 %v1167, 72
        %v1178 = vpop.permute.xlu0 %1177
        %1179 = vrot.lane.b32.xlu0 %v1168, 72
        %v1180 = vpop.permute.xlu0 %1179
        %1181 = vrot.lane.b32.xlu0 %v1169, 72
        %v1182 = vpop.permute.xlu0 %1181
        %1183 = vrot.lane.b32.xlu0 %v1170, 72
        %v1184 = vpop.permute.xlu0 %1183
        %1185 = vrot.lane.b32.xlu0 %v1171, 72
        %v1186 = vpop.permute.xlu0 %1185
        %v1187 = vsel %vm484, %v1178, %v1180
        %v1188 = vsel %vm484, %v1180, %v1182
        %v1189 = vsel %vm484, %v1182, %v1184
        %v1190 = vsel %vm484, %v1184, %v1186
        %v1195 = vsel %vm465, %v1187, 0.0
        %v1196 = vsel %vm466, %v1188, 0.0
        %v1197 = vsel %vm467, %v1189, 0.0
        %v1198 = vsel %vm468, %v1190, 0.0
        %1199 = vst [vmem:[#allocation3 + $0x260] sm:$0xff] %v1195
        %1200 = vst [vmem:[#allocation3 + $0x268] sm:$0xff] %v1196
        %1201 = vst [vmem:[#allocation3 + $0x270] sm:$0xff] %v1197
        %1202 = vst [vmem:[#allocation3 + $0x278] sm:$0xff] %v1198
        %v1203 = vld [vmem:[#allocation2 + $0x8] sm:$0xff]
        %v1204 = vld [vmem:[#allocation2 + $0x10] sm:$0xff]
        %v1205 = vld [vmem:[#allocation2 + $0x18] sm:$0xff]
        %v1206 = vld [vmem:[#allocation2 + $0x20] sm:$0xff]
        %v1207 = vld [vmem:[#allocation2 + $0x28] sm:$0xff]
        %1213 = vrot.lane.b32.xlu0 %v1203, 71
        %v1214 = vpop.permute.xlu0 %1213
        %1215 = vrot.lane.b32.xlu0 %v1204, 71
        %v1216 = vpop.permute.xlu0 %1215
        %1217 = vrot.lane.b32.xlu0 %v1205, 71
        %v1218 = vpop.permute.xlu0 %1217
        %1219 = vrot.lane.b32.xlu0 %v1206, 71
        %v1220 = vpop.permute.xlu0 %1219
        %1221 = vrot.lane.b32.xlu0 %v1207, 71
        %v1222 = vpop.permute.xlu0 %1221
        %v1223 = vsel %vm530, %v1214, %v1216
        %v1224 = vsel %vm530, %v1216, %v1218
        %v1225 = vsel %vm530, %v1218, %v1220
        %v1226 = vsel %vm530, %v1220, %v1222
        %v1231 = vsel %vm511, %v1223, 0.0
        %v1232 = vsel %vm512, %v1224, 0.0
        %v1233 = vsel %vm513, %v1225, 0.0
        %v1234 = vsel %vm514, %v1226, 0.0
        %1235 = vst [vmem:[#allocation3 + $0x280] sm:$0xff] %v1231
        %1236 = vst [vmem:[#allocation3 + $0x288] sm:$0xff] %v1232
        %1237 = vst [vmem:[#allocation3 + $0x290] sm:$0xff] %v1233
        %1238 = vst [vmem:[#allocation3 + $0x298] sm:$0xff] %v1234
        %v1239 = vld [vmem:[#allocation2 + $0x8] sm:$0xff]
        %v1240 = vld [vmem:[#allocation2 + $0x10] sm:$0xff]
        %v1241 = vld [vmem:[#allocation2 + $0x18] sm:$0xff]
        %v1242 = vld [vmem:[#allocation2 + $0x20] sm:$0xff]
        %v1243 = vld [vmem:[#allocation2 + $0x28] sm:$0xff]
        %1249 = vrot.lane.b32.xlu0 %v1239, 65
        %v1250 = vpop.permute.xlu0 %1249
        %1251 = vrot.lane.b32.xlu0 %v1240, 65
        %v1252 = vpop.permute.xlu0 %1251
        %1253 = vrot.lane.b32.xlu0 %v1241, 65
        %v1254 = vpop.permute.xlu0 %1253
        %1255 = vrot.lane.b32.xlu0 %v1242, 65
        %v1256 = vpop.permute.xlu0 %1255
        %1257 = vrot.lane.b32.xlu0 %v1243, 65
        %v1258 = vpop.permute.xlu0 %1257
        %v1259 = vsel %vm576, %v1250, %v1252
        %v1260 = vsel %vm576, %v1252, %v1254
        %v1261 = vsel %vm576, %v1254, %v1256
        %v1262 = vsel %vm576, %v1256, %v1258
        %v1267 = vsel %vm557, %v1259, 0.0
        %v1268 = vsel %vm558, %v1260, 0.0
        %v1269 = vsel %vm559, %v1261, 0.0
        %v1270 = vsel %vm560, %v1262, 0.0
        %1271 = vst [vmem:[#allocation3 + $0x2a0] sm:$0xff] %v1267
        %1272 = vst [vmem:[#allocation3 + $0x2a8] sm:$0xff] %v1268
        %1273 = vst [vmem:[#allocation3 + $0x2b0] sm:$0xff] %v1269
        %1274 = vst [vmem:[#allocation3 + $0x2b8] sm:$0xff] %v1270
        %v1275 = vld [vmem:[#allocation2 + $0x8] sm:$0xff]
        %v1276 = vld [vmem:[#allocation2 + $0x10] sm:$0xff]
        %v1277 = vld [vmem:[#allocation2 + $0x18] sm:$0xff]
        %v1278 = vld [vmem:[#allocation2 + $0x20] sm:$0xff]
        %v1279 = vld [vmem:[#allocation2 + $0x28] sm:$0xff]
        %1285 = vrot.lane.b32.xlu0 %v1275, 64
        %v1286 = vpop.permute.xlu0 %1285
        %1287 = vrot.lane.b32.xlu0 %v1276, 64
        %v1288 = vpop.permute.xlu0 %1287
        %1289 = vrot.lane.b32.xlu0 %v1277, 64
        %v1290 = vpop.permute.xlu0 %1289
        %1291 = vrot.lane.b32.xlu0 %v1278, 64
        %v1292 = vpop.permute.xlu0 %1291
        %1293 = vrot.lane.b32.xlu0 %v1279, 64
        %v1294 = vpop.permute.xlu0 %1293
        %v1295 = vsel %vm622, %v1286, %v1288
        %v1296 = vsel %vm622, %v1288, %v1290
        %v1297 = vsel %vm622, %v1290, %v1292
        %v1298 = vsel %vm622, %v1292, %v1294
        %v1303 = vsel %vm603, %v1295, 0.0
        %v1304 = vsel %vm604, %v1296, 0.0
        %v1305 = vsel %vm605, %v1297, 0.0
        %v1306 = vsel %vm606, %v1298, 0.0
        %1307 = vst [vmem:[#allocation3 + $0x2c0] sm:$0xff] %v1303
        %1308 = vst [vmem:[#allocation3 + $0x2c8] sm:$0xff] %v1304
        %1309 = vst [vmem:[#allocation3 + $0x2d0] sm:$0xff] %v1305
        %1310 = vst [vmem:[#allocation3 + $0x2d8] sm:$0xff] %v1306
        %v1311 = vld [vmem:[#allocation2 + $0x8] sm:$0xff]
        %v1312 = vld [vmem:[#allocation2 + $0x10] sm:$0xff]
        %v1313 = vld [vmem:[#allocation2 + $0x18] sm:$0xff]
        %v1314 = vld [vmem:[#allocation2 + $0x20] sm:$0xff]
        %v1315 = vld [vmem:[#allocation2 + $0x28] sm:$0xff]
        %1321 = vrot.lane.b32.xlu0 %v1311, 63
        %v1322 = vpop.permute.xlu0 %1321
        %1323 = vrot.lane.b32.xlu0 %v1312, 63
        %v1324 = vpop.permute.xlu0 %1323
        %1325 = vrot.lane.b32.xlu0 %v1313, 63
        %v1326 = vpop.permute.xlu0 %1325
        %1327 = vrot.lane.b32.xlu0 %v1314, 63
        %v1328 = vpop.permute.xlu0 %1327
        %1329 = vrot.lane.b32.xlu0 %v1315, 63
        %v1330 = vpop.permute.xlu0 %1329
        %v1331 = vsel %vm668, %v1322, %v1324
        %v1332 = vsel %vm668, %v1324, %v1326
        %v1333 = vsel %vm668, %v1326, %v1328
        %v1334 = vsel %vm668, %v1328, %v1330
        %v1339 = vsel %vm649, %v1331, 0.0
        %v1340 = vsel %vm650, %v1332, 0.0
        %v1341 = vsel %vm651, %v1333, 0.0
        %v1342 = vsel %vm652, %v1334, 0.0
        %1343 = vst [vmem:[#allocation3 + $0x2e0] sm:$0xff] %v1339
        %1344 = vst [vmem:[#allocation3 + $0x2e8] sm:$0xff] %v1340
        %1345 = vst [vmem:[#allocation3 + $0x2f0] sm:$0xff] %v1341
        %1346 = vst [vmem:[#allocation3 + $0x2f8] sm:$0xff] %v1342
        %v1347 = vld [vmem:[#allocation2 + $0x8] sm:$0xff]
        %v1348 = vld [vmem:[#allocation2 + $0x10] sm:$0xff]
        %v1349 = vld [vmem:[#allocation2 + $0x18] sm:$0xff]
        %v1350 = vld [vmem:[#allocation2 + $0x20] sm:$0xff]
        %v1351 = vld [vmem:[#allocation2 + $0x28] sm:$0xff]
        %1357 = vrot.lane.b32.xlu0 %v1347, 57
        %v1358 = vpop.permute.xlu0 %1357
        %1359 = vrot.lane.b32.xlu0 %v1348, 57
        %v1360 = vpop.permute.xlu0 %1359
        %1361 = vrot.lane.b32.xlu0 %v1349, 57
        %v1362 = vpop.permute.xlu0 %1361
        %1363 = vrot.lane.b32.xlu0 %v1350, 57
        %v1364 = vpop.permute.xlu0 %1363
        %1365 = vrot.lane.b32.xlu0 %v1351, 57
        %v1366 = vpop.permute.xlu0 %1365
        %v1367 = vsel %vm714, %v1358, %v1360
        %v1368 = vsel %vm714, %v1360, %v1362
        %v1369 = vsel %vm714, %v1362, %v1364
        %v1370 = vsel %vm714, %v1364, %v1366
        %v1375 = vsel %vm695, %v1367, 0.0
        %v1376 = vsel %vm696, %v1368, 0.0
        %v1377 = vsel %vm697, %v1369, 0.0
        %v1378 = vsel %vm698, %v1370, 0.0
        %1379 = vst [vmem:[#allocation3 + $0x300] sm:$0xff] %v1375
        %1380 = vst [vmem:[#allocation3 + $0x308] sm:$0xff] %v1376
        %1381 = vst [vmem:[#allocation3 + $0x310] sm:$0xff] %v1377
        %1382 = vst [vmem:[#allocation3 + $0x318] sm:$0xff] %v1378
        %v1383 = vld [vmem:[#allocation2 + $0x8] sm:$0xff]
        %v1384 = vld [vmem:[#allocation2 + $0x10] sm:$0xff]
        %v1385 = vld [vmem:[#allocation2 + $0x18] sm:$0xff]
        %v1386 = vld [vmem:[#allocation2 + $0x20] sm:$0xff]
        %v1387 = vld [vmem:[#allocation2 + $0x28] sm:$0xff]
        %1393 = vrot.lane.b32.xlu0 %v1383, 56
        %v1394 = vpop.permute.xlu0 %1393
        %1395 = vrot.lane.b32.xlu0 %v1384, 56
        %v1396 = vpop.permute.xlu0 %1395
        %1397 = vrot.lane.b32.xlu0 %v1385, 56
        %v1398 = vpop.permute.xlu0 %1397
        %1399 = vrot.lane.b32.xlu0 %v1386, 56
        %v1400 = vpop.permute.xlu0 %1399
        %1401 = vrot.lane.b32.xlu0 %v1387, 56
        %v1402 = vpop.permute.xlu0 %1401
        %v1403 = vsel %vm760, %v1394, %v1396
        %v1404 = vsel %vm760, %v1396, %v1398
        %v1405 = vsel %vm760, %v1398, %v1400
        %v1406 = vsel %vm760, %v1400, %v1402
        %v1411 = vsel %vm741, %v1403, 0.0
        %v1412 = vsel %vm742, %v1404, 0.0
        %v1413 = vsel %vm743, %v1405, 0.0
        %v1414 = vsel %vm744, %v1406, 0.0
        %1415 = vst [vmem:[#allocation3 + $0x320] sm:$0xff] %v1411
        %1416 = vst [vmem:[#allocation3 + $0x328] sm:$0xff] %v1412
        %1417 = vst [vmem:[#allocation3 + $0x330] sm:$0xff] %v1413
        %1418 = vst [vmem:[#allocation3 + $0x338] sm:$0xff] %v1414
        %v1419 = vld [vmem:[#allocation2 + $0x8] sm:$0xff]
        %v1420 = vld [vmem:[#allocation2 + $0x10] sm:$0xff]
        %v1421 = vld [vmem:[#allocation2 + $0x18] sm:$0xff]
        %v1422 = vld [vmem:[#allocation2 + $0x20] sm:$0xff]
        %v1423 = vld [vmem:[#allocation2 + $0x28] sm:$0xff]
        %1429 = vrot.lane.b32.xlu0 %v1419, 55
        %v1430 = vpop.permute.xlu0 %1429
        %1431 = vrot.lane.b32.xlu0 %v1420, 55
        %v1432 = vpop.permute.xlu0 %1431
        %1433 = vrot.lane.b32.xlu0 %v1421, 55
        %v1434 = vpop.permute.xlu0 %1433
        %1435 = vrot.lane.b32.xlu0 %v1422, 55
        %v1436 = vpop.permute.xlu0 %1435
        %1437 = vrot.lane.b32.xlu0 %v1423, 55
        %v1438 = vpop.permute.xlu0 %1437
        %v1439 = vsel %vm806, %v1430, %v1432
        %v1440 = vsel %vm806, %v1432, %v1434
        %v1441 = vsel %vm806, %v1434, %v1436
        %v1442 = vsel %vm806, %v1436, %v1438
        %v1447 = vsel %vm787, %v1439, 0.0
        %v1448 = vsel %vm788, %v1440, 0.0
        %v1449 = vsel %vm789, %v1441, 0.0
        %v1450 = vsel %vm790, %v1442, 0.0
        %1451 = vst [vmem:[#allocation3 + $0x340] sm:$0xff] %v1447
        %1452 = vst [vmem:[#allocation3 + $0x348] sm:$0xff] %v1448
        %1453 = vst [vmem:[#allocation3 + $0x350] sm:$0xff] %v1449
        %1454 = vst [vmem:[#allocation3 + $0x358] sm:$0xff] %v1450
        %v1455 = vld [vmem:[%s2] sm:$0xf]
        %v1456 = vld [vmem:[#allocation3] sm:$0xff]
        %v1457 = vld [vmem:[#allocation3 + $0x8] sm:$0xff]
        %v1458 = vld [vmem:[#allocation3 + $0x10] sm:$0xff]
        %v1459 = vld [vmem:[#allocation3 + $0x18] sm:$0xff]
        %v1460 = vld [vmem:[#allocation3 + $0x20] sm:$0xff]
        %v1461 = vld [vmem:[#allocation3 + $0x28] sm:$0xff]
        %v1462 = vld [vmem:[#allocation3 + $0x30] sm:$0xff]
        %v1463 = vld [vmem:[#allocation3 + $0x38] sm:$0xff]
        %v1464 = vld [vmem:[#allocation3 + $0x40] sm:$0xff]
        %v1465 = vld [vmem:[#allocation3 + $0x48] sm:$0xff]
        %v1466 = vld [vmem:[#allocation3 + $0x50] sm:$0xff]
        %v1467 = vld [vmem:[#allocation3 + $0x58] sm:$0xff]
        %v1468 = vld [vmem:[#allocation3 + $0x60] sm:$0xff]
        %v1469 = vld [vmem:[#allocation3 + $0x68] sm:$0xff]
        %v1470 = vld [vmem:[#allocation3 + $0x70] sm:$0xff]
        %v1471 = vld [vmem:[#allocation3 + $0x78] sm:$0xff]
        %v1472 = vld [vmem:[#allocation3 + $0x80] sm:$0xff]
        %v1473 = vld [vmem:[#allocation3 + $0x88] sm:$0xff]
        %v1474 = vld [vmem:[#allocation3 + $0x90] sm:$0xff]
        %v1475 = vld [vmem:[#allocation3 + $0x98] sm:$0xff]
        %v1476 = vld [vmem:[#allocation3 + $0xa0] sm:$0xff]
        %v1477 = vld [vmem:[#allocation3 + $0xa8] sm:$0xff]
        %v1478 = vld [vmem:[#allocation3 + $0xb0] sm:$0xff]
        %v1479 = vld [vmem:[#allocation3 + $0xb8] sm:$0xff]
        %v1480 = vld [vmem:[#allocation3 + $0xc0] sm:$0xff]
        %v1481 = vld [vmem:[#allocation3 + $0xc8] sm:$0xff]
        %v1482 = vld [vmem:[#allocation3 + $0xd0] sm:$0xff]
        %v1483 = vld [vmem:[#allocation3 + $0xd8] sm:$0xff]
        %v1484 = vld [vmem:[#allocation3 + $0xe0] sm:$0xff]
        %v1485 = vld [vmem:[#allocation3 + $0xe8] sm:$0xff]
        %v1486 = vld [vmem:[#allocation3 + $0xf0] sm:$0xff]
        %v1487 = vld [vmem:[#allocation3 + $0xf8] sm:$0xff]
        %v1488 = vld [vmem:[#allocation3 + $0x100] sm:$0xff]
        %v1489 = vld [vmem:[#allocation3 + $0x108] sm:$0xff]
        %v1490 = vld [vmem:[#allocation3 + $0x110] sm:$0xff]
        %v1491 = vld [vmem:[#allocation3 + $0x118] sm:$0xff]
        %v1492 = vld [vmem:[#allocation3 + $0x120] sm:$0xff]
        %v1493 = vld [vmem:[#allocation3 + $0x128] sm:$0xff]
        %v1494 = vld [vmem:[#allocation3 + $0x130] sm:$0xff]
        %v1495 = vld [vmem:[#allocation3 + $0x138] sm:$0xff]
        %v1496 = vld [vmem:[#allocation3 + $0x140] sm:$0xff]
        %v1497 = vld [vmem:[#allocation3 + $0x148] sm:$0xff]
        %v1498 = vld [vmem:[#allocation3 + $0x150] sm:$0xff]
        %v1499 = vld [vmem:[#allocation3 + $0x158] sm:$0xff]
        %v1500 = vld [vmem:[#allocation3 + $0x160] sm:$0xff]
        %v1501 = vld [vmem:[#allocation3 + $0x168] sm:$0xff]
        %v1502 = vld [vmem:[#allocation3 + $0x170] sm:$0xff]
        %v1503 = vld [vmem:[#allocation3 + $0x178] sm:$0xff]
        %v1504 = vld [vmem:[#allocation3 + $0x180] sm:$0xff]
        %v1505 = vld [vmem:[#allocation3 + $0x188] sm:$0xff]
        %v1506 = vld [vmem:[#allocation3 + $0x190] sm:$0xff]
        %v1507 = vld [vmem:[#allocation3 + $0x198] sm:$0xff]
        %v1508 = vld [vmem:[#allocation3 + $0x1a0] sm:$0xff]
        %v1509 = vld [vmem:[#allocation3 + $0x1a8] sm:$0xff]
        %v1510 = vld [vmem:[#allocation3 + $0x1b0] sm:$0xff]
        %v1511 = vld [vmem:[#allocation3 + $0x1b8] sm:$0xff]
        %v1512 = vld [vmem:[#allocation3 + $0x1c0] sm:$0xff]
        %v1513 = vld [vmem:[#allocation3 + $0x1c8] sm:$0xff]
        %v1514 = vld [vmem:[#allocation3 + $0x1d0] sm:$0xff]
        %v1515 = vld [vmem:[#allocation3 + $0x1d8] sm:$0xff]
        %v1516 = vld [vmem:[#allocation3 + $0x1e0] sm:$0xff]
        %v1517 = vld [vmem:[#allocation3 + $0x1e8] sm:$0xff]
        %v1518 = vld [vmem:[#allocation3 + $0x1f0] sm:$0xff]
        %v1519 = vld [vmem:[#allocation3 + $0x1f8] sm:$0xff]
        %v1520 = vld [vmem:[#allocation3 + $0x200] sm:$0xff]
        %v1521 = vld [vmem:[#allocation3 + $0x208] sm:$0xff]
        %v1522 = vld [vmem:[#allocation3 + $0x210] sm:$0xff]
        %v1523 = vld [vmem:[#allocation3 + $0x218] sm:$0xff]
        %v1524 = vld [vmem:[#allocation3 + $0x220] sm:$0xff]
        %v1525 = vld [vmem:[#allocation3 + $0x228] sm:$0xff]
        %v1526 = vld [vmem:[#allocation3 + $0x230] sm:$0xff]
        %v1527 = vld [vmem:[#allocation3 + $0x238] sm:$0xff]
        %v1528 = vld [vmem:[#allocation3 + $0x240] sm:$0xff]
        %v1529 = vld [vmem:[#allocation3 + $0x248] sm:$0xff]
        %v1530 = vld [vmem:[#allocation3 + $0x250] sm:$0xff]
        %v1531 = vld [vmem:[#allocation3 + $0x258] sm:$0xff]
        %v1532 = vld [vmem:[#allocation3 + $0x260] sm:$0xff]
        %v1533 = vld [vmem:[#allocation3 + $0x268] sm:$0xff]
        %v1534 = vld [vmem:[#allocation3 + $0x270] sm:$0xff]
        %v1535 = vld [vmem:[#allocation3 + $0x278] sm:$0xff]
        %v1536 = vld [vmem:[#allocation3 + $0x280] sm:$0xff]
        %v1537 = vld [vmem:[#allocation3 + $0x288] sm:$0xff]
        %v1538 = vld [vmem:[#allocation3 + $0x290] sm:$0xff]
        %v1539 = vld [vmem:[#allocation3 + $0x298] sm:$0xff]
        %v1540 = vld [vmem:[#allocation3 + $0x2a0] sm:$0xff]
        %v1541 = vld [vmem:[#allocation3 + $0x2a8] sm:$0xff]
        %v1542 = vld [vmem:[#allocation3 + $0x2b0] sm:$0xff]
        %v1543 = vld [vmem:[#allocation3 + $0x2b8] sm:$0xff]
        %v1544 = vld [vmem:[#allocation3 + $0x2c0] sm:$0xff]
        %v1545 = vld [vmem:[#allocation3 + $0x2c8] sm:$0xff]
        %v1546 = vld [vmem:[#allocation3 + $0x2d0] sm:$0xff]
        %v1547 = vld [vmem:[#allocation3 + $0x2d8] sm:$0xff]
        %v1548 = vld [vmem:[#allocation3 + $0x2e0] sm:$0xff]
        %v1549 = vld [vmem:[#allocation3 + $0x2e8] sm:$0xff]
        %v1550 = vld [vmem:[#allocation3 + $0x2f0] sm:$0xff]
        %v1551 = vld [vmem:[#allocation3 + $0x2f8] sm:$0xff]
        %v1552 = vld [vmem:[#allocation3 + $0x300] sm:$0xff]
        %v1553 = vld [vmem:[#allocation3 + $0x308] sm:$0xff]
        %v1554 = vld [vmem:[#allocation3 + $0x310] sm:$0xff]
        %v1555 = vld [vmem:[#allocation3 + $0x318] sm:$0xff]
        %v1556 = vld [vmem:[#allocation3 + $0x320] sm:$0xff]
        %v1557 = vld [vmem:[#allocation3 + $0x328] sm:$0xff]
        %v1558 = vld [vmem:[#allocation3 + $0x330] sm:$0xff]
        %v1559 = vld [vmem:[#allocation3 + $0x338] sm:$0xff]
        %v1560 = vld [vmem:[#allocation3 + $0x340] sm:$0xff]
        %v1561 = vld [vmem:[#allocation3 + $0x348] sm:$0xff]
        %v1562 = vld [vmem:[#allocation3 + $0x350] sm:$0xff]
        %v1563 = vld [vmem:[#allocation3 + $0x358] sm:$0xff]
        %v1564 = vpack.c.bf16 %v1460, %v1456
        %v1565 = vpack.c.bf16 %v1461, %v1457
        %v1566 = vpack.c.bf16 %v1462, %v1458
        %v1567 = vpack.c.bf16 %v1463, %v1459
        %v1568 = vpack.c.bf16 %v1468, %v1464
        %v1569 = vpack.c.bf16 %v1469, %v1465
        %v1570 = vpack.c.bf16 %v1470, %v1466
        %v1571 = vpack.c.bf16 %v1471, %v1467
        %v1572 = vpack.c.bf16 %v1476, %v1472
        %v1573 = vpack.c.bf16 %v1477, %v1473
        %v1574 = vpack.c.bf16 %v1478, %v1474
        %v1575 = vpack.c.bf16 %v1479, %v1475
        %v1576 = vpack.c.bf16 %v1484, %v1480
        %v1577 = vpack.c.bf16 %v1485, %v1481
        %v1578 = vpack.c.bf16 %v1486, %v1482
        %v1579 = vpack.c.bf16 %v1487, %v1483
        %v1580 = vpack.c.bf16 %v1492, %v1488
        %v1581 = vpack.c.bf16 %v1493, %v1489
        %v1582 = vpack.c.bf16 %v1494, %v1490
        %v1583 = vpack.c.bf16 %v1495, %v1491
        %v1584 = vpack.c.bf16 %v1500, %v1496
        %v1585 = vpack.c.bf16 %v1501, %v1497
        %v1586 = vpack.c.bf16 %v1502, %v1498
        %v1587 = vpack.c.bf16 %v1503, %v1499
        %v1588 = vpack.c.bf16 %v1508, %v1504
        %v1589 = vpack.c.bf16 %v1509, %v1505
        %v1590 = vpack.c.bf16 %v1510, %v1506
        %v1591 = vpack.c.bf16 %v1511, %v1507
        %v1592 = vpack.c.bf16 %v1516, %v1512
        %v1593 = vpack.c.bf16 %v1517, %v1513
        %v1594 = vpack.c.bf16 %v1518, %v1514
        %v1595 = vpack.c.bf16 %v1519, %v1515
        %v1596 = vpack.c.bf16 %v1524, %v1520
        %v1597 = vpack.c.bf16 %v1525, %v1521
        %v1598 = vpack.c.bf16 %v1526, %v1522
        %v1599 = vpack.c.bf16 %v1527, %v1523
        %v1600 = vpack.c.bf16 %v1532, %v1528
        %v1601 = vpack.c.bf16 %v1533, %v1529
        %v1602 = vpack.c.bf16 %v1534, %v1530
        %v1603 = vpack.c.bf16 %v1535, %v1531
        %v1604 = vpack.c.bf16 %v1540, %v1536
        %v1605 = vpack.c.bf16 %v1541, %v1537
        %v1606 = vpack.c.bf16 %v1542, %v1538
        %v1607 = vpack.c.bf16 %v1543, %v1539
        %v1608 = vpack.c.bf16 %v1548, %v1544
        %v1609 = vpack.c.bf16 %v1549, %v1545
        %v1610 = vpack.c.bf16 %v1550, %v1546
        %v1611 = vpack.c.bf16 %v1551, %v1547
        %v1612 = vpack.c.bf16 %v1556, %v1552
        %v1613 = vpack.c.bf16 %v1557, %v1553
        %v1614 = vpack.c.bf16 %v1558, %v1554
        %v1615 = vpack.c.bf16 %v1559, %v1555
        %v1616 = vpack.c.bf16 %v1560, %v1560
        %v1617 = vpack.c.bf16 %v1561, %v1561
        %v1618 = vpack.c.bf16 %v1562, %v1562
        %v1619 = vpack.c.bf16 %v1563, %v1563
        %1621 = vst [vmem:[#allocation1] ss:$4 sm:$0xff] %v1455
        %v1622 = vld.sshfl [vmem:[#allocation1] sm:$0xff pattern:$0x73625140]
        %v1623 = vld.sshfl [vmem:[#allocation1 + $0x8] sm:$0xff pattern:$0x73625140]
        %vm1625 = vcmask 719872
        %v1626 = vsel %vm1625, %v1623, 0
        %v1629 = vsel %vm316, %v1616, 0
        %v1632 = vsel %vm316, %v1617, 0
        %v1635 = vsel %vm316, %v1618, 0
        %v1638 = vsel %vm316, %v1619, 0
        %1640 = vmatpush.bf16.msra.mxu0 %v1592
        %1641 = vmatpush.bf16.msra.mxu0 %v1588
        %1642 = vmatpush.bf16.msra.mxu0 %v1584
        %1643 = vmatpush.bf16.msra.mxu0 %v1580
        %1644 = vmatpush.bf16.msra.mxu0 %v1576
        %1645 = vmatpush.bf16.msra.mxu0 %v1572
        %1646 = vmatpush.bf16.msra.mxu0 %v1568
        %1647 = vmatpush.bf16.msra.mxu0 %v1564
        %1648 = vmatmul.bf16.gmra.mxu0 %v1622
        %v1649 = vpop.f32.mrf.mxu0
        %v1650 = vadd.f32 0.0, %v1649
        %v1651 = vpop.f32.mrf.mxu0
        %1652 = vdwg.mxu0
        %1653 = vmatpush.bf16.msra.mxu0 0
        %1654 = vmatpush.bf16.msra.mxu0 0
        %1655 = vmatpush.bf16.msra.mxu0 %v1629
        %1656 = vmatpush.bf16.msra.mxu0 %v1612
        %1657 = vmatpush.bf16.msra.mxu0 %v1608
        %1658 = vmatpush.bf16.msra.mxu0 %v1604
        %1659 = vmatpush.bf16.msra.mxu0 %v1600
        %1660 = vmatpush.bf16.msra.mxu0 %v1596
        %1661 = vmatmul.bf16.gmra.mxu0 %v1626
        %v1662 = vpop.f32.mrf.mxu0
        %v1663 = vadd.f32 %v1650, %v1662
        %v1664 = vpop.f32.mrf.mxu0
        %1665 = vdwg.mxu0
        %1666 = vmatpush.bf16.msra.mxu0 %v1593
        %1667 = vmatpush.bf16.msra.mxu0 %v1589
        %1668 = vmatpush.bf16.msra.mxu0 %v1585
        %1669 = vmatpush.bf16.msra.mxu0 %v1581
        %1670 = vmatpush.bf16.msra.mxu0 %v1577
        %1671 = vmatpush.bf16.msra.mxu0 %v1573
        %1672 = vmatpush.bf16.msra.mxu0 %v1569
        %1673 = vmatpush.bf16.msra.mxu0 %v1565
        %1674 = vmatmul.bf16.gmra.mxu0 %v1622
        %v1675 = vpop.f32.mrf.mxu0
        %v1676 = vadd.f32 0.0, %v1675
        %v1677 = vpop.f32.mrf.mxu0
        %1678 = vdwg.mxu0
        %1679 = vmatpush.bf16.msra.mxu0 0
        %1680 = vmatpush.bf16.msra.mxu0 0
        %1681 = vmatpush.bf16.msra.mxu0 %v1632
        %1682 = vmatpush.bf16.msra.mxu0 %v1613
        %1683 = vmatpush.bf16.msra.mxu0 %v1609
        %1684 = vmatpush.bf16.msra.mxu0 %v1605
        %1685 = vmatpush.bf16.msra.mxu0 %v1601
        %1686 = vmatpush.bf16.msra.mxu0 %v1597
        %1687 = vmatmul.bf16.gmra.mxu0 %v1626
        %v1688 = vpop.f32.mrf.mxu0
        %v1689 = vadd.f32 %v1676, %v1688
        %v1690 = vpop.f32.mrf.mxu0
        %1691 = vdwg.mxu0
        %1692 = vmatpush.bf16.msra.mxu0 %v1594
        %1693 = vmatpush.bf16.msra.mxu0 %v1590
        %1694 = vmatpush.bf16.msra.mxu0 %v1586
        %1695 = vmatpush.bf16.msra.mxu0 %v1582
        %1696 = vmatpush.bf16.msra.mxu0 %v1578
        %1697 = vmatpush.bf16.msra.mxu0 %v1574
        %1698 = vmatpush.bf16.msra.mxu0 %v1570
        %1699 = vmatpush.bf16.msra.mxu0 %v1566
        %1700 = vmatmul.bf16.gmra.mxu0 %v1622
        %v1701 = vpop.f32.mrf.mxu0
        %v1702 = vadd.f32 0.0, %v1701
        %v1703 = vpop.f32.mrf.mxu0
        %1704 = vdwg.mxu0
        %1705 = vmatpush.bf16.msra.mxu0 0
        %1706 = vmatpush.bf16.msra.mxu0 0
        %1707 = vmatpush.bf16.msra.mxu0 %v1635
        %1708 = vmatpush.bf16.msra.mxu0 %v1614
        %1709 = vmatpush.bf16.msra.mxu0 %v1610
        %1710 = vmatpush.bf16.msra.mxu0 %v1606
        %1711 = vmatpush.bf16.msra.mxu0 %v1602
        %1712 = vmatpush.bf16.msra.mxu0 %v1598
        %1713 = vmatmul.bf16.gmra.mxu0 %v1626
        %v1714 = vpop.f32.mrf.mxu0
        %v1715 = vadd.f32 %v1702, %v1714
        %v1716 = vpop.f32.mrf.mxu0
        %1717 = vdwg.mxu0
        %1718 = vmatpush.bf16.msra.mxu0 %v1595
        %1719 = vmatpush.bf16.msra.mxu0 %v1591
        %1720 = vmatpush.bf16.msra.mxu0 %v1587
        %1721 = vmatpush.bf16.msra.mxu0 %v1583
        %1722 = vmatpush.bf16.msra.mxu0 %v1579
        %1723 = vmatpush.bf16.msra.mxu0 %v1575
        %1724 = vmatpush.bf16.msra.mxu0 %v1571
        %1725 = vmatpush.bf16.msra.mxu0 %v1567
        %1726 = vmatmul.bf16.gmra.mxu0 %v1622
        %v1727 = vpop.f32.mrf.mxu0
        %v1728 = vadd.f32 0.0, %v1727
        %v1729 = vpop.f32.mrf.mxu0
        %1730 = vdwg.mxu0
        %1731 = vmatpush.bf16.msra.mxu0 0
        %1732 = vmatpush.bf16.msra.mxu0 0
        %1733 = vmatpush.bf16.msra.mxu0 %v1638
        %1734 = vmatpush.bf16.msra.mxu0 %v1615
        %1735 = vmatpush.bf16.msra.mxu0 %v1611
        %1736 = vmatpush.bf16.msra.mxu0 %v1607
        %1737 = vmatpush.bf16.msra.mxu0 %v1603
        %1738 = vmatpush.bf16.msra.mxu0 %v1599
        %1739 = vmatmul.bf16.gmra.mxu0 %v1626
        %v1740 = vpop.f32.mrf.mxu0
        %v1741 = vadd.f32 %v1728, %v1740
        %v1742 = vpop.f32.mrf.mxu0
        %1743 = vdwg.mxu0
        %v1744 = vsel %vm316, %v1663, 0.0
        %v1745 = vsel %vm316, %v1689, 0.0
        %v1746 = vadd.f32 %v1744, %v1745
        %v1747 = vsel %vm316, %v1715, 0.0
        %v1748 = vadd.f32 %v1746, %v1747
        %v1749 = vsel %vm316, %v1741, 0.0
        %v1750 = vadd.f32 %v1748, %v1749
        %1751 = vadd.xlane.f32.xlu0 %v1750
        %v1752 = vpop.xlane.xlu0 %1751
        %v1753 = vmul.f32 %v1752, %v332
        %v1754 = vsub.f32 %v1663, %v1753
        %v1755 = vsub.f32 %v1689, %v1753
        %v1756 = vsub.f32 %v1715, %v1753
        %v1757 = vsub.f32 %v1741, %v1753
        %v1758 = vmul.f32 %v1754, %v1754
        %v1759 = vmul.f32 %v1755, %v1755
        %v1760 = vmul.f32 %v1756, %v1756
        %v1761 = vmul.f32 %v1757, %v1757
        %v1762 = vsel %vm316, %v1758, 0.0
        %v1763 = vsel %vm316, %v1759, 0.0
        %v1764 = vadd.f32 %v1762, %v1763
        %v1765 = vsel %vm316, %v1760, 0.0
        %v1766 = vadd.f32 %v1764, %v1765
        %v1767 = vsel %vm316, %v1761, 0.0
        %v1768 = vadd.f32 %v1766, %v1767
        %1769 = vadd.xlane.f32.xlu0 %v1768
        %v1770 = vpop.xlane.xlu0 %1769
        %v1771 = vmul.f32 %v1770, %v332
        %v1772 = vadd.f32 %v1771, 1e-05
        %v1773 = vrsqrt.pop %v1772
        %v1774 = vmul.f32 %v1773, %v1772
        %v1775 = vmul.f32 %v1774, %v1773
        %v1776 = vmul.f32 0.5, %v1775
        %v1777 = vsub.f32 1.5, %v1776
        %v1778 = vmul.f32 %v1773, %v1777
        %vm1779 = vweird.f32 %v1772
        %vm1780 = vweird.f32 %v1773
        %vm1781 = vmor %vm1779, %vm1780
        %v1782 = vsel %vm1781, %v1773, %v1778
        %v1783 = vmul.f32 %v1754, %v1782
        %v1784 = vmul.f32 %v1755, %v1782
        %v1785 = vmul.f32 %v1756, %v1782
        %v1786 = vmul.f32 %v1757, %v1782
        %vm1787 = vcmp.ge.f32.partialorder %v1783, 0.0
        %vm1788 = vcmp.ge.f32.partialorder %v1784, 0.0
        %vm1789 = vcmp.ge.f32.partialorder %v1785, 0.0
        %vm1790 = vcmp.ge.f32.partialorder %v1786, 0.0
        %v1791 = vmul.f32 %v1783, 0.01
        %v1792 = vmul.f32 %v1784, 0.01
        %v1793 = vmul.f32 %v1785, 0.01
        %v1794 = vmul.f32 %v1786, 0.01
        %v1795 = vsel %vm1787, %v1783, %v1791
        %v1796 = vsel %vm1788, %v1784, %v1792
        %v1797 = vsel %vm1789, %v1785, %v1793
        %v1798 = vsel %vm1790, %v1786, %v1794
        %1799 = vst [vmem:[#allocation2 + $0x8] sm:$0xf] %v1795
        %1800 = vst [vmem:[#allocation2 + $0x10] sm:$0xf] %v1796
        %1801 = vst [vmem:[#allocation2 + $0x18] sm:$0xf] %v1797
        %1802 = vst [vmem:[#allocation2 + $0x20] sm:$0xf] %v1798
        %v1803 = vld [vmem:[#allocation2] sm:$0xff]
        %v1804 = vld [vmem:[#allocation2 + $0x8] sm:$0xff]
        %v1805 = vld [vmem:[#allocation2 + $0x10] sm:$0xff]
        %v1806 = vld [vmem:[#allocation2 + $0x18] sm:$0xff]
        %v1807 = vld [vmem:[#allocation2 + $0x20] sm:$0xff]
        %1813 = vrot.lane.b32.xlu0 %v1803, 73
        %v1814 = vpop.permute.xlu0 %1813
        %1815 = vrot.lane.b32.xlu0 %v1804, 73
        %v1816 = vpop.permute.xlu0 %1815
        %1817 = vrot.lane.b32.xlu0 %v1805, 73
        %v1818 = vpop.permute.xlu0 %1817
        %1819 = vrot.lane.b32.xlu0 %v1806, 73
        %v1820 = vpop.permute.xlu0 %1819
        %1821 = vrot.lane.b32.xlu0 %v1807, 73
        %v1822 = vpop.permute.xlu0 %1821
        %v1823 = vsel %vm438, %v1814, %v1816
        %v1824 = vsel %vm438, %v1816, %v1818
        %v1825 = vsel %vm438, %v1818, %v1820
        %v1826 = vsel %vm438, %v1820, %v1822
        %v1831 = vsel %vm419, %v1823, 0.0
        %v1832 = vsel %vm420, %v1824, 0.0
        %v1833 = vsel %vm421, %v1825, 0.0
        %v1834 = vsel %vm422, %v1826, 0.0
        %1835 = vst [vmem:[#allocation3] sm:$0xff] %v1831
        %1836 = vst [vmem:[#allocation3 + $0x8] sm:$0xff] %v1832
        %1837 = vst [vmem:[#allocation3 + $0x10] sm:$0xff] %v1833
        %1838 = vst [vmem:[#allocation3 + $0x18] sm:$0xff] %v1834
        %v1839 = vld [vmem:[#allocation2] sm:$0xff]
        %v1840 = vld [vmem:[#allocation2 + $0x8] sm:$0xff]
        %v1841 = vld [vmem:[#allocation2 + $0x10] sm:$0xff]
        %v1842 = vld [vmem:[#allocation2 + $0x18] sm:$0xff]
        %v1843 = vld [vmem:[#allocation2 + $0x20] sm:$0xff]
        %1849 = vrot.lane.b32.xlu0 %v1839, 72
        %v1850 = vpop.permute.xlu0 %1849
        %1851 = vrot.lane.b32.xlu0 %v1840, 72
        %v1852 = vpop.permute.xlu0 %1851
        %1853 = vrot.lane.b32.xlu0 %v1841, 72
        %v1854 = vpop.permute.xlu0 %1853
        %1855 = vrot.lane.b32.xlu0 %v1842, 72
        %v1856 = vpop.permute.xlu0 %1855
        %1857 = vrot.lane.b32.xlu0 %v1843, 72
        %v1858 = vpop.permute.xlu0 %1857
        %v1859 = vsel %vm484, %v1850, %v1852
        %v1860 = vsel %vm484, %v1852, %v1854
        %v1861 = vsel %vm484, %v1854, %v1856
        %v1862 = vsel %vm484, %v1856, %v1858
        %v1867 = vsel %vm465, %v1859, 0.0
        %v1868 = vsel %vm466, %v1860, 0.0
        %v1869 = vsel %vm467, %v1861, 0.0
        %v1870 = vsel %vm468, %v1862, 0.0
        %1871 = vst [vmem:[#allocation3 + $0x20] sm:$0xff] %v1867
        %1872 = vst [vmem:[#allocation3 + $0x28] sm:$0xff] %v1868
        %1873 = vst [vmem:[#allocation3 + $0x30] sm:$0xff] %v1869
        %1874 = vst [vmem:[#allocation3 + $0x38] sm:$0xff] %v1870
        %v1875 = vld [vmem:[#allocation2] sm:$0xff]
        %v1876 = vld [vmem:[#allocation2 + $0x8] sm:$0xff]
        %v1877 = vld [vmem:[#allocation2 + $0x10] sm:$0xff]
        %v1878 = vld [vmem:[#allocation2 + $0x18] sm:$0xff]
        %v1879 = vld [vmem:[#allocation2 + $0x20] sm:$0xff]
        %1885 = vrot.lane.b32.xlu0 %v1875, 71
        %v1886 = vpop.permute.xlu0 %1885
        %1887 = vrot.lane.b32.xlu0 %v1876, 71
        %v1888 = vpop.permute.xlu0 %1887
        %1889 = vrot.lane.b32.xlu0 %v1877, 71
        %v1890 = vpop.permute.xlu0 %1889
        %1891 = vrot.lane.b32.xlu0 %v1878, 71
        %v1892 = vpop.permute.xlu0 %1891
        %1893 = vrot.lane.b32.xlu0 %v1879, 71
        %v1894 = vpop.permute.xlu0 %1893
        %v1895 = vsel %vm530, %v1886, %v1888
        %v1896 = vsel %vm530, %v1888, %v1890
        %v1897 = vsel %vm530, %v1890, %v1892
        %v1898 = vsel %vm530, %v1892, %v1894
        %v1903 = vsel %vm511, %v1895, 0.0
        %v1904 = vsel %vm512, %v1896, 0.0
        %v1905 = vsel %vm513, %v1897, 0.0
        %v1906 = vsel %vm514, %v1898, 0.0
        %1907 = vst [vmem:[#allocation3 + $0x40] sm:$0xff] %v1903
        %1908 = vst [vmem:[#allocation3 + $0x48] sm:$0xff] %v1904
        %1909 = vst [vmem:[#allocation3 + $0x50] sm:$0xff] %v1905
        %1910 = vst [vmem:[#allocation3 + $0x58] sm:$0xff] %v1906
        %v1911 = vld [vmem:[#allocation2] sm:$0xff]
        %v1912 = vld [vmem:[#allocation2 + $0x8] sm:$0xff]
        %v1913 = vld [vmem:[#allocation2 + $0x10] sm:$0xff]
        %v1914 = vld [vmem:[#allocation2 + $0x18] sm:$0xff]
        %v1915 = vld [vmem:[#allocation2 + $0x20] sm:$0xff]
        %1921 = vrot.lane.b32.xlu0 %v1911, 65
        %v1922 = vpop.permute.xlu0 %1921
        %1923 = vrot.lane.b32.xlu0 %v1912, 65
        %v1924 = vpop.permute.xlu0 %1923
        %1925 = vrot.lane.b32.xlu0 %v1913, 65
        %v1926 = vpop.permute.xlu0 %1925
        %1927 = vrot.lane.b32.xlu0 %v1914, 65
        %v1928 = vpop.permute.xlu0 %1927
        %1929 = vrot.lane.b32.xlu0 %v1915, 65
        %v1930 = vpop.permute.xlu0 %1929
        %v1931 = vsel %vm576, %v1922, %v1924
        %v1932 = vsel %vm576, %v1924, %v1926
        %v1933 = vsel %vm576, %v1926, %v1928
        %v1934 = vsel %vm576, %v1928, %v1930
        %v1939 = vsel %vm557, %v1931, 0.0
        %v1940 = vsel %vm558, %v1932, 0.0
        %v1941 = vsel %vm559, %v1933, 0.0
        %v1942 = vsel %vm560, %v1934, 0.0
        %1943 = vst [vmem:[#allocation3 + $0x60] sm:$0xff] %v1939
        %1944 = vst [vmem:[#allocation3 + $0x68] sm:$0xff] %v1940
        %1945 = vst [vmem:[#allocation3 + $0x70] sm:$0xff] %v1941
        %1946 = vst [vmem:[#allocation3 + $0x78] sm:$0xff] %v1942
        %v1947 = vld [vmem:[#allocation2] sm:$0xff]
        %v1948 = vld [vmem:[#allocation2 + $0x8] sm:$0xff]
        %v1949 = vld [vmem:[#allocation2 + $0x10] sm:$0xff]
        %v1950 = vld [vmem:[#allocation2 + $0x18] sm:$0xff]
        %v1951 = vld [vmem:[#allocation2 + $0x20] sm:$0xff]
        %1957 = vrot.lane.b32.xlu0 %v1947, 64
        %v1958 = vpop.permute.xlu0 %1957
        %1959 = vrot.lane.b32.xlu0 %v1948, 64
        %v1960 = vpop.permute.xlu0 %1959
        %1961 = vrot.lane.b32.xlu0 %v1949, 64
        %v1962 = vpop.permute.xlu0 %1961
        %1963 = vrot.lane.b32.xlu0 %v1950, 64
        %v1964 = vpop.permute.xlu0 %1963
        %1965 = vrot.lane.b32.xlu0 %v1951, 64
        %v1966 = vpop.permute.xlu0 %1965
        %v1967 = vsel %vm622, %v1958, %v1960
        %v1968 = vsel %vm622, %v1960, %v1962
        %v1969 = vsel %vm622, %v1962, %v1964
        %v1970 = vsel %vm622, %v1964, %v1966
        %v1975 = vsel %vm603, %v1967, 0.0
        %v1976 = vsel %vm604, %v1968, 0.0
        %v1977 = vsel %vm605, %v1969, 0.0
        %v1978 = vsel %vm606, %v1970, 0.0
        %1979 = vst [vmem:[#allocation3 + $0x80] sm:$0xff] %v1975
        %1980 = vst [vmem:[#allocation3 + $0x88] sm:$0xff] %v1976
        %1981 = vst [vmem:[#allocation3 + $0x90] sm:$0xff] %v1977
        %1982 = vst [vmem:[#allocation3 + $0x98] sm:$0xff] %v1978
        %v1983 = vld [vmem:[#allocation2] sm:$0xff]
        %v1984 = vld [vmem:[#allocation2 + $0x8] sm:$0xff]
        %v1985 = vld [vmem:[#allocation2 + $0x10] sm:$0xff]
        %v1986 = vld [vmem:[#allocation2 + $0x18] sm:$0xff]
        %v1987 = vld [vmem:[#allocation2 + $0x20] sm:$0xff]
        %1993 = vrot.lane.b32.xlu0 %v1983, 63
        %v1994 = vpop.permute.xlu0 %1993
        %1995 = vrot.lane.b32.xlu0 %v1984, 63
        %v1996 = vpop.permute.xlu0 %1995
        %1997 = vrot.lane.b32.xlu0 %v1985, 63
        %v1998 = vpop.permute.xlu0 %1997
        %1999 = vrot.lane.b32.xlu0 %v1986, 63
        %v2000 = vpop.permute.xlu0 %1999
        %2001 = vrot.lane.b32.xlu0 %v1987, 63
        %v2002 = vpop.permute.xlu0 %2001
        %v2003 = vsel %vm668, %v1994, %v1996
        %v2004 = vsel %vm668, %v1996, %v1998
        %v2005 = vsel %vm668, %v1998, %v2000
        %v2006 = vsel %vm668, %v2000, %v2002
        %v2011 = vsel %vm649, %v2003, 0.0
        %v2012 = vsel %vm650, %v2004, 0.0
        %v2013 = vsel %vm651, %v2005, 0.0
        %v2014 = vsel %vm652, %v2006, 0.0
        %2015 = vst [vmem:[#allocation3 + $0xa0] sm:$0xff] %v2011
        %2016 = vst [vmem:[#allocation3 + $0xa8] sm:$0xff] %v2012
        %2017 = vst [vmem:[#allocation3 + $0xb0] sm:$0xff] %v2013
        %2018 = vst [vmem:[#allocation3 + $0xb8] sm:$0xff] %v2014
        %v2019 = vld [vmem:[#allocation2] sm:$0xff]
        %v2020 = vld [vmem:[#allocation2 + $0x8] sm:$0xff]
        %v2021 = vld [vmem:[#allocation2 + $0x10] sm:$0xff]
        %v2022 = vld [vmem:[#allocation2 + $0x18] sm:$0xff]
        %v2023 = vld [vmem:[#allocation2 + $0x20] sm:$0xff]
        %2029 = vrot.lane.b32.xlu0 %v2019, 57
        %v2030 = vpop.permute.xlu0 %2029
        %2031 = vrot.lane.b32.xlu0 %v2020, 57
        %v2032 = vpop.permute.xlu0 %2031
        %2033 = vrot.lane.b32.xlu0 %v2021, 57
        %v2034 = vpop.permute.xlu0 %2033
        %2035 = vrot.lane.b32.xlu0 %v2022, 57
        %v2036 = vpop.permute.xlu0 %2035
        %2037 = vrot.lane.b32.xlu0 %v2023, 57
        %v2038 = vpop.permute.xlu0 %2037
        %v2039 = vsel %vm714, %v2030, %v2032
        %v2040 = vsel %vm714, %v2032, %v2034
        %v2041 = vsel %vm714, %v2034, %v2036
        %v2042 = vsel %vm714, %v2036, %v2038
        %v2047 = vsel %vm695, %v2039, 0.0
        %v2048 = vsel %vm696, %v2040, 0.0
        %v2049 = vsel %vm697, %v2041, 0.0
        %v2050 = vsel %vm698, %v2042, 0.0
        %2051 = vst [vmem:[#allocation3 + $0xc0] sm:$0xff] %v2047
        %2052 = vst [vmem:[#allocation3 + $0xc8] sm:$0xff] %v2048
        %2053 = vst [vmem:[#allocation3 + $0xd0] sm:$0xff] %v2049
        %2054 = vst [vmem:[#allocation3 + $0xd8] sm:$0xff] %v2050
        %v2055 = vld [vmem:[#allocation2] sm:$0xff]
        %v2056 = vld [vmem:[#allocation2 + $0x8] sm:$0xff]
        %v2057 = vld [vmem:[#allocation2 + $0x10] sm:$0xff]
        %v2058 = vld [vmem:[#allocation2 + $0x18] sm:$0xff]
        %v2059 = vld [vmem:[#allocation2 + $0x20] sm:$0xff]
        %2065 = vrot.lane.b32.xlu0 %v2055, 56
        %v2066 = vpop.permute.xlu0 %2065
        %2067 = vrot.lane.b32.xlu0 %v2056, 56
        %v2068 = vpop.permute.xlu0 %2067
        %2069 = vrot.lane.b32.xlu0 %v2057, 56
        %v2070 = vpop.permute.xlu0 %2069
        %2071 = vrot.lane.b32.xlu0 %v2058, 56
        %v2072 = vpop.permute.xlu0 %2071
        %2073 = vrot.lane.b32.xlu0 %v2059, 56
        %v2074 = vpop.permute.xlu0 %2073
        %v2075 = vsel %vm760, %v2066, %v2068
        %v2076 = vsel %vm760, %v2068, %v2070
        %v2077 = vsel %vm760, %v2070, %v2072
        %v2078 = vsel %vm760, %v2072, %v2074
        %v2083 = vsel %vm741, %v2075, 0.0
        %v2084 = vsel %vm742, %v2076, 0.0
        %v2085 = vsel %vm743, %v2077, 0.0
        %v2086 = vsel %vm744, %v2078, 0.0
        %2087 = vst [vmem:[#allocation3 + $0xe0] sm:$0xff] %v2083
        %2088 = vst [vmem:[#allocation3 + $0xe8] sm:$0xff] %v2084
        %2089 = vst [vmem:[#allocation3 + $0xf0] sm:$0xff] %v2085
        %2090 = vst [vmem:[#allocation3 + $0xf8] sm:$0xff] %v2086
        %v2091 = vld [vmem:[#allocation2] sm:$0xff]
        %v2092 = vld [vmem:[#allocation2 + $0x8] sm:$0xff]
        %v2093 = vld [vmem:[#allocation2 + $0x10] sm:$0xff]
        %v2094 = vld [vmem:[#allocation2 + $0x18] sm:$0xff]
        %v2095 = vld [vmem:[#allocation2 + $0x20] sm:$0xff]
        %2101 = vrot.lane.b32.xlu0 %v2091, 55
        %v2102 = vpop.permute.xlu0 %2101
        %2103 = vrot.lane.b32.xlu0 %v2092, 55
        %v2104 = vpop.permute.xlu0 %2103
        %2105 = vrot.lane.b32.xlu0 %v2093, 55
        %v2106 = vpop.permute.xlu0 %2105
        %2107 = vrot.lane.b32.xlu0 %v2094, 55
        %v2108 = vpop.permute.xlu0 %2107
        %2109 = vrot.lane.b32.xlu0 %v2095, 55
        %v2110 = vpop.permute.xlu0 %2109
        %v2111 = vsel %vm806, %v2102, %v2104
        %v2112 = vsel %vm806, %v2104, %v2106
        %v2113 = vsel %vm806, %v2106, %v2108
        %v2114 = vsel %vm806, %v2108, %v2110
        %v2119 = vsel %vm787, %v2111, 0.0
        %v2120 = vsel %vm788, %v2112, 0.0
        %v2121 = vsel %vm789, %v2113, 0.0
        %v2122 = vsel %vm790, %v2114, 0.0
        %2123 = vst [vmem:[#allocation3 + $0x100] sm:$0xff] %v2119
        %2124 = vst [vmem:[#allocation3 + $0x108] sm:$0xff] %v2120
        %2125 = vst [vmem:[#allocation3 + $0x110] sm:$0xff] %v2121
        %2126 = vst [vmem:[#allocation3 + $0x118] sm:$0xff] %v2122
        %v2127 = vld [vmem:[#allocation2] sm:$0xff]
        %v2128 = vld [vmem:[#allocation2 + $0x8] sm:$0xff]
        %v2129 = vld [vmem:[#allocation2 + $0x10] sm:$0xff]
        %v2130 = vld [vmem:[#allocation2 + $0x18] sm:$0xff]
        %v2131 = vld [vmem:[#allocation2 + $0x20] sm:$0xff]
        %2137 = vrot.lane.b32.xlu0 %v2127, 9
        %v2138 = vpop.permute.xlu0 %2137
        %2139 = vrot.lane.b32.xlu0 %v2128, 9
        %v2140 = vpop.permute.xlu0 %2139
        %2141 = vrot.lane.b32.xlu0 %v2129, 9
        %v2142 = vpop.permute.xlu0 %2141
        %2143 = vrot.lane.b32.xlu0 %v2130, 9
        %v2144 = vpop.permute.xlu0 %2143
        %2145 = vrot.lane.b32.xlu0 %v2131, 9
        %v2146 = vpop.permute.xlu0 %2145
        %v2147 = vsel %vm843, %v2138, %v2140
        %v2148 = vsel %vm843, %v2140, %v2142
        %v2149 = vsel %vm843, %v2142, %v2144
        %v2150 = vsel %vm843, %v2144, %v2146
        %v2155 = vsel %vm419, %v2147, 0.0
        %v2156 = vsel %vm420, %v2148, 0.0
        %v2157 = vsel %vm421, %v2149, 0.0
        %v2158 = vsel %vm422, %v2150, 0.0
        %2159 = vst [vmem:[#allocation3 + $0x120] sm:$0xff] %v2155
        %2160 = vst [vmem:[#allocation3 + $0x128] sm:$0xff] %v2156
        %2161 = vst [vmem:[#allocation3 + $0x130] sm:$0xff] %v2157
        %2162 = vst [vmem:[#allocation3 + $0x138] sm:$0xff] %v2158
        %v2163 = vld [vmem:[#allocation2] sm:$0xff]
        %v2164 = vld [vmem:[#allocation2 + $0x8] sm:$0xff]
        %v2165 = vld [vmem:[#allocation2 + $0x10] sm:$0xff]
        %v2166 = vld [vmem:[#allocation2 + $0x18] sm:$0xff]
        %v2167 = vld [vmem:[#allocation2 + $0x20] sm:$0xff]
        %2173 = vrot.lane.b32.xlu0 %v2163, 8
        %v2174 = vpop.permute.xlu0 %2173
        %2175 = vrot.lane.b32.xlu0 %v2164, 8
        %v2176 = vpop.permute.xlu0 %2175
        %2177 = vrot.lane.b32.xlu0 %v2165, 8
        %v2178 = vpop.permute.xlu0 %2177
        %2179 = vrot.lane.b32.xlu0 %v2166, 8
        %v2180 = vpop.permute.xlu0 %2179
        %2181 = vrot.lane.b32.xlu0 %v2167, 8
        %v2182 = vpop.permute.xlu0 %2181
        %v2183 = vsel %vm880, %v2174, %v2176
        %v2184 = vsel %vm880, %v2176, %v2178
        %v2185 = vsel %vm880, %v2178, %v2180
        %v2186 = vsel %vm880, %v2180, %v2182
        %v2191 = vsel %vm465, %v2183, 0.0
        %v2192 = vsel %vm466, %v2184, 0.0
        %v2193 = vsel %vm467, %v2185, 0.0
        %v2194 = vsel %vm468, %v2186, 0.0
        %2195 = vst [vmem:[#allocation3 + $0x140] sm:$0xff] %v2191
        %2196 = vst [vmem:[#allocation3 + $0x148] sm:$0xff] %v2192
        %2197 = vst [vmem:[#allocation3 + $0x150] sm:$0xff] %v2193
        %2198 = vst [vmem:[#allocation3 + $0x158] sm:$0xff] %v2194
        %v2199 = vld [vmem:[#allocation2] sm:$0xff]
        %v2200 = vld [vmem:[#allocation2 + $0x8] sm:$0xff]
        %v2201 = vld [vmem:[#allocation2 + $0x10] sm:$0xff]
        %v2202 = vld [vmem:[#allocation2 + $0x18] sm:$0xff]
        %v2203 = vld [vmem:[#allocation2 + $0x20] sm:$0xff]
        %2209 = vrot.lane.b32.xlu0 %v2199, 7
        %v2210 = vpop.permute.xlu0 %2209
        %2211 = vrot.lane.b32.xlu0 %v2200, 7
        %v2212 = vpop.permute.xlu0 %2211
        %2213 = vrot.lane.b32.xlu0 %v2201, 7
        %v2214 = vpop.permute.xlu0 %2213
        %2215 = vrot.lane.b32.xlu0 %v2202, 7
        %v2216 = vpop.permute.xlu0 %2215
        %2217 = vrot.lane.b32.xlu0 %v2203, 7
        %v2218 = vpop.permute.xlu0 %2217
        %v2219 = vsel %vm917, %v2210, %v2212
        %v2220 = vsel %vm917, %v2212, %v2214
        %v2221 = vsel %vm917, %v2214, %v2216
        %v2222 = vsel %vm917, %v2216, %v2218
        %v2227 = vsel %vm511, %v2219, 0.0
        %v2228 = vsel %vm512, %v2220, 0.0
        %v2229 = vsel %vm513, %v2221, 0.0
        %v2230 = vsel %vm514, %v2222, 0.0
        %2231 = vst [vmem:[#allocation3 + $0x160] sm:$0xff] %v2227
        %2232 = vst [vmem:[#allocation3 + $0x168] sm:$0xff] %v2228
        %2233 = vst [vmem:[#allocation3 + $0x170] sm:$0xff] %v2229
        %2234 = vst [vmem:[#allocation3 + $0x178] sm:$0xff] %v2230
        %v2235 = vld [vmem:[#allocation2] sm:$0xff]
        %v2236 = vld [vmem:[#allocation2 + $0x8] sm:$0xff]
        %v2237 = vld [vmem:[#allocation2 + $0x10] sm:$0xff]
        %v2238 = vld [vmem:[#allocation2 + $0x18] sm:$0xff]
        %v2239 = vld [vmem:[#allocation2 + $0x20] sm:$0xff]
        %2245 = vrot.lane.b32.xlu0 %v2235, 1
        %v2246 = vpop.permute.xlu0 %2245
        %2247 = vrot.lane.b32.xlu0 %v2236, 1
        %v2248 = vpop.permute.xlu0 %2247
        %2249 = vrot.lane.b32.xlu0 %v2237, 1
        %v2250 = vpop.permute.xlu0 %2249
        %2251 = vrot.lane.b32.xlu0 %v2238, 1
        %v2252 = vpop.permute.xlu0 %2251
        %2253 = vrot.lane.b32.xlu0 %v2239, 1
        %v2254 = vpop.permute.xlu0 %2253
        %v2255 = vsel %vm954, %v2246, %v2248
        %v2256 = vsel %vm954, %v2248, %v2250
        %v2257 = vsel %vm954, %v2250, %v2252
        %v2258 = vsel %vm954, %v2252, %v2254
        %v2263 = vsel %vm557, %v2255, 0.0
        %v2264 = vsel %vm558, %v2256, 0.0
        %v2265 = vsel %vm559, %v2257, 0.0
        %v2266 = vsel %vm560, %v2258, 0.0
        %2267 = vst [vmem:[#allocation3 + $0x180] sm:$0xff] %v2263
        %2268 = vst [vmem:[#allocation3 + $0x188] sm:$0xff] %v2264
        %2269 = vst [vmem:[#allocation3 + $0x190] sm:$0xff] %v2265
        %2270 = vst [vmem:[#allocation3 + $0x198] sm:$0xff] %v2266
        %v2271 = vld [vmem:[#allocation2 + $0x8] sm:$0xff]
        %v2272 = vld [vmem:[#allocation2 + $0x10] sm:$0xff]
        %v2273 = vld [vmem:[#allocation2 + $0x18] sm:$0xff]
        %v2274 = vld [vmem:[#allocation2 + $0x20] sm:$0xff]
        %v2275 = vsel %vm603, %v2271, 0.0
        %v2276 = vsel %vm604, %v2272, 0.0
        %v2277 = vsel %vm605, %v2273, 0.0
        %v2278 = vsel %vm606, %v2274, 0.0
        %2279 = vst [vmem:[#allocation3 + $0x1a0] sm:$0xff] %v2275
        %2280 = vst [vmem:[#allocation3 + $0x1a8] sm:$0xff] %v2276
        %2281 = vst [vmem:[#allocation3 + $0x1b0] sm:$0xff] %v2277
        %2282 = vst [vmem:[#allocation3 + $0x1b8] sm:$0xff] %v2278
        %v2283 = vld [vmem:[#allocation2 + $0x8] sm:$0xff]
        %v2284 = vld [vmem:[#allocation2 + $0x10] sm:$0xff]
        %v2285 = vld [vmem:[#allocation2 + $0x18] sm:$0xff]
        %v2286 = vld [vmem:[#allocation2 + $0x20] sm:$0xff]
        %v2287 = vld [vmem:[#allocation2 + $0x28] sm:$0xff]
        %2293 = vrot.lane.b32.xlu0 %v2283, 127
        %v2294 = vpop.permute.xlu0 %2293
        %2295 = vrot.lane.b32.xlu0 %v2284, 127
        %v2296 = vpop.permute.xlu0 %2295
        %2297 = vrot.lane.b32.xlu0 %v2285, 127
        %v2298 = vpop.permute.xlu0 %2297
        %2299 = vrot.lane.b32.xlu0 %v2286, 127
        %v2300 = vpop.permute.xlu0 %2299
        %2301 = vrot.lane.b32.xlu0 %v2287, 127
        %v2302 = vpop.permute.xlu0 %2301
        %v2303 = vsel %vm1003, %v2294, %v2296
        %v2304 = vsel %vm1003, %v2296, %v2298
        %v2305 = vsel %vm1003, %v2298, %v2300
        %v2306 = vsel %vm1003, %v2300, %v2302
        %v2311 = vsel %vm649, %v2303, 0.0
        %v2312 = vsel %vm650, %v2304, 0.0
        %v2313 = vsel %vm651, %v2305, 0.0
        %v2314 = vsel %vm652, %v2306, 0.0
        %2315 = vst [vmem:[#allocation3 + $0x1c0] sm:$0xff] %v2311
        %2316 = vst [vmem:[#allocation3 + $0x1c8] sm:$0xff] %v2312
        %2317 = vst [vmem:[#allocation3 + $0x1d0] sm:$0xff] %v2313
        %2318 = vst [vmem:[#allocation3 + $0x1d8] sm:$0xff] %v2314
        %v2319 = vld [vmem:[#allocation2 + $0x8] sm:$0xff]
        %v2320 = vld [vmem:[#allocation2 + $0x10] sm:$0xff]
        %v2321 = vld [vmem:[#allocation2 + $0x18] sm:$0xff]
        %v2322 = vld [vmem:[#allocation2 + $0x20] sm:$0xff]
        %v2323 = vld [vmem:[#allocation2 + $0x28] sm:$0xff]
        %2329 = vrot.lane.b32.xlu0 %v2319, 121
        %v2330 = vpop.permute.xlu0 %2329
        %2331 = vrot.lane.b32.xlu0 %v2320, 121
        %v2332 = vpop.permute.xlu0 %2331
        %2333 = vrot.lane.b32.xlu0 %v2321, 121
        %v2334 = vpop.permute.xlu0 %2333
        %2335 = vrot.lane.b32.xlu0 %v2322, 121
        %v2336 = vpop.permute.xlu0 %2335
        %2337 = vrot.lane.b32.xlu0 %v2323, 121
        %v2338 = vpop.permute.xlu0 %2337
        %v2339 = vsel %vm1040, %v2330, %v2332
        %v2340 = vsel %vm1040, %v2332, %v2334
        %v2341 = vsel %vm1040, %v2334, %v2336
        %v2342 = vsel %vm1040, %v2336, %v2338
        %v2347 = vsel %vm695, %v2339, 0.0
        %v2348 = vsel %vm696, %v2340, 0.0
        %v2349 = vsel %vm697, %v2341, 0.0
        %v2350 = vsel %vm698, %v2342, 0.0
        %2351 = vst [vmem:[#allocation3 + $0x1e0] sm:$0xff] %v2347
        %2352 = vst [vmem:[#allocation3 + $0x1e8] sm:$0xff] %v2348
        %2353 = vst [vmem:[#allocation3 + $0x1f0] sm:$0xff] %v2349
        %2354 = vst [vmem:[#allocation3 + $0x1f8] sm:$0xff] %v2350
        %v2355 = vld [vmem:[#allocation2 + $0x8] sm:$0xff]
        %v2356 = vld [vmem:[#allocation2 + $0x10] sm:$0xff]
        %v2357 = vld [vmem:[#allocation2 + $0x18] sm:$0xff]
        %v2358 = vld [vmem:[#allocation2 + $0x20] sm:$0xff]
        %v2359 = vld [vmem:[#allocation2 + $0x28] sm:$0xff]
        %2365 = vrot.lane.b32.xlu0 %v2355, 120
        %v2366 = vpop.permute.xlu0 %2365
        %2367 = vrot.lane.b32.xlu0 %v2356, 120
        %v2368 = vpop.permute.xlu0 %2367
        %2369 = vrot.lane.b32.xlu0 %v2357, 120
        %v2370 = vpop.permute.xlu0 %2369
        %2371 = vrot.lane.b32.xlu0 %v2358, 120
        %v2372 = vpop.permute.xlu0 %2371
        %2373 = vrot.lane.b32.xlu0 %v2359, 120
        %v2374 = vpop.permute.xlu0 %2373
        %v2375 = vsel %vm1077, %v2366, %v2368
        %v2376 = vsel %vm1077, %v2368, %v2370
        %v2377 = vsel %vm1077, %v2370, %v2372
        %v2378 = vsel %vm1077, %v2372, %v2374
        %v2383 = vsel %vm741, %v2375, 0.0
        %v2384 = vsel %vm742, %v2376, 0.0
        %v2385 = vsel %vm743, %v2377, 0.0
        %v2386 = vsel %vm744, %v2378, 0.0
        %2387 = vst [vmem:[#allocation3 + $0x200] sm:$0xff] %v2383
        %2388 = vst [vmem:[#allocation3 + $0x208] sm:$0xff] %v2384
        %2389 = vst [vmem:[#allocation3 + $0x210] sm:$0xff] %v2385
        %2390 = vst [vmem:[#allocation3 + $0x218] sm:$0xff] %v2386
        %v2391 = vld [vmem:[#allocation2 + $0x8] sm:$0xff]
        %v2392 = vld [vmem:[#allocation2 + $0x10] sm:$0xff]
        %v2393 = vld [vmem:[#allocation2 + $0x18] sm:$0xff]
        %v2394 = vld [vmem:[#allocation2 + $0x20] sm:$0xff]
        %v2395 = vld [vmem:[#allocation2 + $0x28] sm:$0xff]
        %2401 = vrot.lane.b32.xlu0 %v2391, 119
        %v2402 = vpop.permute.xlu0 %2401
        %2403 = vrot.lane.b32.xlu0 %v2392, 119
        %v2404 = vpop.permute.xlu0 %2403
        %2405 = vrot.lane.b32.xlu0 %v2393, 119
        %v2406 = vpop.permute.xlu0 %2405
        %2407 = vrot.lane.b32.xlu0 %v2394, 119
        %v2408 = vpop.permute.xlu0 %2407
        %2409 = vrot.lane.b32.xlu0 %v2395, 119
        %v2410 = vpop.permute.xlu0 %2409
        %v2411 = vsel %vm1114, %v2402, %v2404
        %v2412 = vsel %vm1114, %v2404, %v2406
        %v2413 = vsel %vm1114, %v2406, %v2408
        %v2414 = vsel %vm1114, %v2408, %v2410
        %v2419 = vsel %vm787, %v2411, 0.0
        %v2420 = vsel %vm788, %v2412, 0.0
        %v2421 = vsel %vm789, %v2413, 0.0
        %v2422 = vsel %vm790, %v2414, 0.0
        %2423 = vst [vmem:[#allocation3 + $0x220] sm:$0xff] %v2419
        %2424 = vst [vmem:[#allocation3 + $0x228] sm:$0xff] %v2420
        %2425 = vst [vmem:[#allocation3 + $0x230] sm:$0xff] %v2421
        %2426 = vst [vmem:[#allocation3 + $0x238] sm:$0xff] %v2422
        %v2427 = vld [vmem:[#allocation2 + $0x8] sm:$0xff]
        %v2428 = vld [vmem:[#allocation2 + $0x10] sm:$0xff]
        %v2429 = vld [vmem:[#allocation2 + $0x18] sm:$0xff]
        %v2430 = vld [vmem:[#allocation2 + $0x20] sm:$0xff]
        %v2431 = vld [vmem:[#allocation2 + $0x28] sm:$0xff]
        %2437 = vrot.lane.b32.xlu0 %v2427, 73
        %v2438 = vpop.permute.xlu0 %2437
        %2439 = vrot.lane.b32.xlu0 %v2428, 73
        %v2440 = vpop.permute.xlu0 %2439
        %2441 = vrot.lane.b32.xlu0 %v2429, 73
        %v2442 = vpop.permute.xlu0 %2441
        %2443 = vrot.lane.b32.xlu0 %v2430, 73
        %v2444 = vpop.permute.xlu0 %2443
        %2445 = vrot.lane.b32.xlu0 %v2431, 73
        %v2446 = vpop.permute.xlu0 %2445
        %v2447 = vsel %vm438, %v2438, %v2440
        %v2448 = vsel %vm438, %v2440, %v2442
        %v2449 = vsel %vm438, %v2442, %v2444
        %v2450 = vsel %vm438, %v2444, %v2446
        %v2455 = vsel %vm419, %v2447, 0.0
        %v2456 = vsel %vm420, %v2448, 0.0
        %v2457 = vsel %vm421, %v2449, 0.0
        %v2458 = vsel %vm422, %v2450, 0.0
        %2459 = vst [vmem:[#allocation3 + $0x240] sm:$0xff] %v2455
        %2460 = vst [vmem:[#allocation3 + $0x248] sm:$0xff] %v2456
        %2461 = vst [vmem:[#allocation3 + $0x250] sm:$0xff] %v2457
        %2462 = vst [vmem:[#allocation3 + $0x258] sm:$0xff] %v2458
        %v2463 = vld [vmem:[#allocation2 + $0x8] sm:$0xff]
        %v2464 = vld [vmem:[#allocation2 + $0x10] sm:$0xff]
        %v2465 = vld [vmem:[#allocation2 + $0x18] sm:$0xff]
        %v2466 = vld [vmem:[#allocation2 + $0x20] sm:$0xff]
        %v2467 = vld [vmem:[#allocation2 + $0x28] sm:$0xff]
        %2473 = vrot.lane.b32.xlu0 %v2463, 72
        %v2474 = vpop.permute.xlu0 %2473
        %2475 = vrot.lane.b32.xlu0 %v2464, 72
        %v2476 = vpop.permute.xlu0 %2475
        %2477 = vrot.lane.b32.xlu0 %v2465, 72
        %v2478 = vpop.permute.xlu0 %2477
        %2479 = vrot.lane.b32.xlu0 %v2466, 72
        %v2480 = vpop.permute.xlu0 %2479
        %2481 = vrot.lane.b32.xlu0 %v2467, 72
        %v2482 = vpop.permute.xlu0 %2481
        %v2483 = vsel %vm484, %v2474, %v2476
        %v2484 = vsel %vm484, %v2476, %v2478
        %v2485 = vsel %vm484, %v2478, %v2480
        %v2486 = vsel %vm484, %v2480, %v2482
        %v2491 = vsel %vm465, %v2483, 0.0
        %v2492 = vsel %vm466, %v2484, 0.0
        %v2493 = vsel %vm467, %v2485, 0.0
        %v2494 = vsel %vm468, %v2486, 0.0
        %2495 = vst [vmem:[#allocation3 + $0x260] sm:$0xff] %v2491
        %2496 = vst [vmem:[#allocation3 + $0x268] sm:$0xff] %v2492
        %2497 = vst [vmem:[#allocation3 + $0x270] sm:$0xff] %v2493
        %2498 = vst [vmem:[#allocation3 + $0x278] sm:$0xff] %v2494
        %v2499 = vld [vmem:[#allocation2 + $0x8] sm:$0xff]
        %v2500 = vld [vmem:[#allocation2 + $0x10] sm:$0xff]
        %v2501 = vld [vmem:[#allocation2 + $0x18] sm:$0xff]
        %v2502 = vld [vmem:[#allocation2 + $0x20] sm:$0xff]
        %v2503 = vld [vmem:[#allocation2 + $0x28] sm:$0xff]
        %2509 = vrot.lane.b32.xlu0 %v2499, 71
        %v2510 = vpop.permute.xlu0 %2509
        %2511 = vrot.lane.b32.xlu0 %v2500, 71
        %v2512 = vpop.permute.xlu0 %2511
        %2513 = vrot.lane.b32.xlu0 %v2501, 71
        %v2514 = vpop.permute.xlu0 %2513
        %2515 = vrot.lane.b32.xlu0 %v2502, 71
        %v2516 = vpop.permute.xlu0 %2515
        %2517 = vrot.lane.b32.xlu0 %v2503, 71
        %v2518 = vpop.permute.xlu0 %2517
        %v2519 = vsel %vm530, %v2510, %v2512
        %v2520 = vsel %vm530, %v2512, %v2514
        %v2521 = vsel %vm530, %v2514, %v2516
        %v2522 = vsel %vm530, %v2516, %v2518
        %v2527 = vsel %vm511, %v2519, 0.0
        %v2528 = vsel %vm512, %v2520, 0.0
        %v2529 = vsel %vm513, %v2521, 0.0
        %v2530 = vsel %vm514, %v2522, 0.0
        %2531 = vst [vmem:[#allocation3 + $0x280] sm:$0xff] %v2527
        %2532 = vst [vmem:[#allocation3 + $0x288] sm:$0xff] %v2528
        %2533 = vst [vmem:[#allocation3 + $0x290] sm:$0xff] %v2529
        %2534 = vst [vmem:[#allocation3 + $0x298] sm:$0xff] %v2530
        %v2535 = vld [vmem:[#allocation2 + $0x8] sm:$0xff]
        %v2536 = vld [vmem:[#allocation2 + $0x10] sm:$0xff]
        %v2537 = vld [vmem:[#allocation2 + $0x18] sm:$0xff]
        %v2538 = vld [vmem:[#allocation2 + $0x20] sm:$0xff]
        %v2539 = vld [vmem:[#allocation2 + $0x28] sm:$0xff]
        %2545 = vrot.lane.b32.xlu0 %v2535, 65
        %v2546 = vpop.permute.xlu0 %2545
        %2547 = vrot.lane.b32.xlu0 %v2536, 65
        %v2548 = vpop.permute.xlu0 %2547
        %2549 = vrot.lane.b32.xlu0 %v2537, 65
        %v2550 = vpop.permute.xlu0 %2549
        %2551 = vrot.lane.b32.xlu0 %v2538, 65
        %v2552 = vpop.permute.xlu0 %2551
        %2553 = vrot.lane.b32.xlu0 %v2539, 65
        %v2554 = vpop.permute.xlu0 %2553
        %v2555 = vsel %vm576, %v2546, %v2548
        %v2556 = vsel %vm576, %v2548, %v2550
        %v2557 = vsel %vm576, %v2550, %v2552
        %v2558 = vsel %vm576, %v2552, %v2554
        %v2563 = vsel %vm557, %v2555, 0.0
        %v2564 = vsel %vm558, %v2556, 0.0
        %v2565 = vsel %vm559, %v2557, 0.0
        %v2566 = vsel %vm560, %v2558, 0.0
        %2567 = vst [vmem:[#allocation3 + $0x2a0] sm:$0xff] %v2563
        %2568 = vst [vmem:[#allocation3 + $0x2a8] sm:$0xff] %v2564
        %2569 = vst [vmem:[#allocation3 + $0x2b0] sm:$0xff] %v2565
        %2570 = vst [vmem:[#allocation3 + $0x2b8] sm:$0xff] %v2566
        %v2571 = vld [vmem:[#allocation2 + $0x8] sm:$0xff]
        %v2572 = vld [vmem:[#allocation2 + $0x10] sm:$0xff]
        %v2573 = vld [vmem:[#allocation2 + $0x18] sm:$0xff]
        %v2574 = vld [vmem:[#allocation2 + $0x20] sm:$0xff]
        %v2575 = vld [vmem:[#allocation2 + $0x28] sm:$0xff]
        %2581 = vrot.lane.b32.xlu0 %v2571, 64
        %v2582 = vpop.permute.xlu0 %2581
        %2583 = vrot.lane.b32.xlu0 %v2572, 64
        %v2584 = vpop.permute.xlu0 %2583
        %2585 = vrot.lane.b32.xlu0 %v2573, 64
        %v2586 = vpop.permute.xlu0 %2585
        %2587 = vrot.lane.b32.xlu0 %v2574, 64
        %v2588 = vpop.permute.xlu0 %2587
        %2589 = vrot.lane.b32.xlu0 %v2575, 64
        %v2590 = vpop.permute.xlu0 %2589
        %v2591 = vsel %vm622, %v2582, %v2584
        %v2592 = vsel %vm622, %v2584, %v2586
        %v2593 = vsel %vm622, %v2586, %v2588
        %v2594 = vsel %vm622, %v2588, %v2590
        %v2599 = vsel %vm603, %v2591, 0.0
        %v2600 = vsel %vm604, %v2592, 0.0
        %v2601 = vsel %vm605, %v2593, 0.0
        %v2602 = vsel %vm606, %v2594, 0.0
        %2603 = vst [vmem:[#allocation3 + $0x2c0] sm:$0xff] %v2599
        %2604 = vst [vmem:[#allocation3 + $0x2c8] sm:$0xff] %v2600
        %2605 = vst [vmem:[#allocation3 + $0x2d0] sm:$0xff] %v2601
        %2606 = vst [vmem:[#allocation3 + $0x2d8] sm:$0xff] %v2602
        %v2607 = vld [vmem:[#allocation2 + $0x8] sm:$0xff]
        %v2608 = vld [vmem:[#allocation2 + $0x10] sm:$0xff]
        %v2609 = vld [vmem:[#allocation2 + $0x18] sm:$0xff]
        %v2610 = vld [vmem:[#allocation2 + $0x20] sm:$0xff]
        %v2611 = vld [vmem:[#allocation2 + $0x28] sm:$0xff]
        %2617 = vrot.lane.b32.xlu0 %v2607, 63
        %v2618 = vpop.permute.xlu0 %2617
        %2619 = vrot.lane.b32.xlu0 %v2608, 63
        %v2620 = vpop.permute.xlu0 %2619
        %2621 = vrot.lane.b32.xlu0 %v2609, 63
        %v2622 = vpop.permute.xlu0 %2621
        %2623 = vrot.lane.b32.xlu0 %v2610, 63
        %v2624 = vpop.permute.xlu0 %2623
        %2625 = vrot.lane.b32.xlu0 %v2611, 63
        %v2626 = vpop.permute.xlu0 %2625
        %v2627 = vsel %vm668, %v2618, %v2620
        %v2628 = vsel %vm668, %v2620, %v2622
        %v2629 = vsel %vm668, %v2622, %v2624
        %v2630 = vsel %vm668, %v2624, %v2626
        %v2635 = vsel %vm649, %v2627, 0.0
        %v2636 = vsel %vm650, %v2628, 0.0
        %v2637 = vsel %vm651, %v2629, 0.0
        %v2638 = vsel %vm652, %v2630, 0.0
        %2639 = vst [vmem:[#allocation3 + $0x2e0] sm:$0xff] %v2635
        %2640 = vst [vmem:[#allocation3 + $0x2e8] sm:$0xff] %v2636
        %2641 = vst [vmem:[#allocation3 + $0x2f0] sm:$0xff] %v2637
        %2642 = vst [vmem:[#allocation3 + $0x2f8] sm:$0xff] %v2638
        %v2643 = vld [vmem:[#allocation2 + $0x8] sm:$0xff]
        %v2644 = vld [vmem:[#allocation2 + $0x10] sm:$0xff]
        %v2645 = vld [vmem:[#allocation2 + $0x18] sm:$0xff]
        %v2646 = vld [vmem:[#allocation2 + $0x20] sm:$0xff]
        %v2647 = vld [vmem:[#allocation2 + $0x28] sm:$0xff]
        %2653 = vrot.lane.b32.xlu0 %v2643, 57
        %v2654 = vpop.permute.xlu0 %2653
        %2655 = vrot.lane.b32.xlu0 %v2644, 57
        %v2656 = vpop.permute.xlu0 %2655
        %2657 = vrot.lane.b32.xlu0 %v2645, 57
        %v2658 = vpop.permute.xlu0 %2657
        %2659 = vrot.lane.b32.xlu0 %v2646, 57
        %v2660 = vpop.permute.xlu0 %2659
        %2661 = vrot.lane.b32.xlu0 %v2647, 57
        %v2662 = vpop.permute.xlu0 %2661
        %v2663 = vsel %vm714, %v2654, %v2656
        %v2664 = vsel %vm714, %v2656, %v2658
        %v2665 = vsel %vm714, %v2658, %v2660
        %v2666 = vsel %vm714, %v2660, %v2662
        %v2671 = vsel %vm695, %v2663, 0.0
        %v2672 = vsel %vm696, %v2664, 0.0
        %v2673 = vsel %vm697, %v2665, 0.0
        %v2674 = vsel %vm698, %v2666, 0.0
        %2675 = vst [vmem:[#allocation3 + $0x300] sm:$0xff] %v2671
        %2676 = vst [vmem:[#allocation3 + $0x308] sm:$0xff] %v2672
        %2677 = vst [vmem:[#allocation3 + $0x310] sm:$0xff] %v2673
        %2678 = vst [vmem:[#allocation3 + $0x318] sm:$0xff] %v2674
        %v2679 = vld [vmem:[#allocation2 + $0x8] sm:$0xff]
        %v2680 = vld [vmem:[#allocation2 + $0x10] sm:$0xff]
        %v2681 = vld [vmem:[#allocation2 + $0x18] sm:$0xff]
        %v2682 = vld [vmem:[#allocation2 + $0x20] sm:$0xff]
        %v2683 = vld [vmem:[#allocation2 + $0x28] sm:$0xff]
        %2689 = vrot.lane.b32.xlu0 %v2679, 56
        %v2690 = vpop.permute.xlu0 %2689
        %2691 = vrot.lane.b32.xlu0 %v2680, 56
        %v2692 = vpop.permute.xlu0 %2691
        %2693 = vrot.lane.b32.xlu0 %v2681, 56
        %v2694 = vpop.permute.xlu0 %2693
        %2695 = vrot.lane.b32.xlu0 %v2682, 56
        %v2696 = vpop.permute.xlu0 %2695
        %2697 = vrot.lane.b32.xlu0 %v2683, 56
        %v2698 = vpop.permute.xlu0 %2697
        %v2699 = vsel %vm760, %v2690, %v2692
        %v2700 = vsel %vm760, %v2692, %v2694
        %v2701 = vsel %vm760, %v2694, %v2696
        %v2702 = vsel %vm760, %v2696, %v2698
        %v2707 = vsel %vm741, %v2699, 0.0
        %v2708 = vsel %vm742, %v2700, 0.0
        %v2709 = vsel %vm743, %v2701, 0.0
        %v2710 = vsel %vm744, %v2702, 0.0
        %2711 = vst [vmem:[#allocation3 + $0x320] sm:$0xff] %v2707
        %2712 = vst [vmem:[#allocation3 + $0x328] sm:$0xff] %v2708
        %2713 = vst [vmem:[#allocation3 + $0x330] sm:$0xff] %v2709
        %2714 = vst [vmem:[#allocation3 + $0x338] sm:$0xff] %v2710
        %v2715 = vld [vmem:[#allocation2 + $0x8] sm:$0xff]
        %v2716 = vld [vmem:[#allocation2 + $0x10] sm:$0xff]
        %v2717 = vld [vmem:[#allocation2 + $0x18] sm:$0xff]
        %v2718 = vld [vmem:[#allocation2 + $0x20] sm:$0xff]
        %v2719 = vld [vmem:[#allocation2 + $0x28] sm:$0xff]
        %2725 = vrot.lane.b32.xlu0 %v2715, 55
        %v2726 = vpop.permute.xlu0 %2725
        %2727 = vrot.lane.b32.xlu0 %v2716, 55
        %v2728 = vpop.permute.xlu0 %2727
        %2729 = vrot.lane.b32.xlu0 %v2717, 55
        %v2730 = vpop.permute.xlu0 %2729
        %2731 = vrot.lane.b32.xlu0 %v2718, 55
        %v2732 = vpop.permute.xlu0 %2731
        %2733 = vrot.lane.b32.xlu0 %v2719, 55
        %v2734 = vpop.permute.xlu0 %2733
        %v2735 = vsel %vm806, %v2726, %v2728
        %v2736 = vsel %vm806, %v2728, %v2730
        %v2737 = vsel %vm806, %v2730, %v2732
        %v2738 = vsel %vm806, %v2732, %v2734
        %v2743 = vsel %vm787, %v2735, 0.0
        %v2744 = vsel %vm788, %v2736, 0.0
        %v2745 = vsel %vm789, %v2737, 0.0
        %v2746 = vsel %vm790, %v2738, 0.0
        %2747 = vst [vmem:[#allocation3 + $0x340] sm:$0xff] %v2743
        %2748 = vst [vmem:[#allocation3 + $0x348] sm:$0xff] %v2744
        %2749 = vst [vmem:[#allocation3 + $0x350] sm:$0xff] %v2745
        %2750 = vst [vmem:[#allocation3 + $0x358] sm:$0xff] %v2746
        %v2751 = vld [vmem:[%s3] sm:$0xf]
        %v2752 = vld [vmem:[#allocation3] sm:$0xff]
        %v2753 = vld [vmem:[#allocation3 + $0x8] sm:$0xff]
        %v2754 = vld [vmem:[#allocation3 + $0x10] sm:$0xff]
        %v2755 = vld [vmem:[#allocation3 + $0x18] sm:$0xff]
        %v2756 = vld [vmem:[#allocation3 + $0x20] sm:$0xff]
        %v2757 = vld [vmem:[#allocation3 + $0x28] sm:$0xff]
        %v2758 = vld [vmem:[#allocation3 + $0x30] sm:$0xff]
        %v2759 = vld [vmem:[#allocation3 + $0x38] sm:$0xff]
        %v2760 = vld [vmem:[#allocation3 + $0x40] sm:$0xff]
        %v2761 = vld [vmem:[#allocation3 + $0x48] sm:$0xff]
        %v2762 = vld [vmem:[#allocation3 + $0x50] sm:$0xff]
        %v2763 = vld [vmem:[#allocation3 + $0x58] sm:$0xff]
        %v2764 = vld [vmem:[#allocation3 + $0x60] sm:$0xff]
        %v2765 = vld [vmem:[#allocation3 + $0x68] sm:$0xff]
        %v2766 = vld [vmem:[#allocation3 + $0x70] sm:$0xff]
        %v2767 = vld [vmem:[#allocation3 + $0x78] sm:$0xff]
        %v2768 = vld [vmem:[#allocation3 + $0x80] sm:$0xff]
        %v2769 = vld [vmem:[#allocation3 + $0x88] sm:$0xff]
        %v2770 = vld [vmem:[#allocation3 + $0x90] sm:$0xff]
        %v2771 = vld [vmem:[#allocation3 + $0x98] sm:$0xff]
        %v2772 = vld [vmem:[#allocation3 + $0xa0] sm:$0xff]
        %v2773 = vld [vmem:[#allocation3 + $0xa8] sm:$0xff]
        %v2774 = vld [vmem:[#allocation3 + $0xb0] sm:$0xff]
        %v2775 = vld [vmem:[#allocation3 + $0xb8] sm:$0xff]
        %v2776 = vld [vmem:[#allocation3 + $0xc0] sm:$0xff]
        %v2777 = vld [vmem:[#allocation3 + $0xc8] sm:$0xff]
        %v2778 = vld [vmem:[#allocation3 + $0xd0] sm:$0xff]
        %v2779 = vld [vmem:[#allocation3 + $0xd8] sm:$0xff]
        %v2780 = vld [vmem:[#allocation3 + $0xe0] sm:$0xff]
        %v2781 = vld [vmem:[#allocation3 + $0xe8] sm:$0xff]
        %v2782 = vld [vmem:[#allocation3 + $0xf0] sm:$0xff]
        %v2783 = vld [vmem:[#allocation3 + $0xf8] sm:$0xff]
        %v2784 = vld [vmem:[#allocation3 + $0x100] sm:$0xff]
        %v2785 = vld [vmem:[#allocation3 + $0x108] sm:$0xff]
        %v2786 = vld [vmem:[#allocation3 + $0x110] sm:$0xff]
        %v2787 = vld [vmem:[#allocation3 + $0x118] sm:$0xff]
        %v2788 = vld [vmem:[#allocation3 + $0x120] sm:$0xff]
        %v2789 = vld [vmem:[#allocation3 + $0x128] sm:$0xff]
        %v2790 = vld [vmem:[#allocation3 + $0x130] sm:$0xff]
        %v2791 = vld [vmem:[#allocation3 + $0x138] sm:$0xff]
        %v2792 = vld [vmem:[#allocation3 + $0x140] sm:$0xff]
        %v2793 = vld [vmem:[#allocation3 + $0x148] sm:$0xff]
        %v2794 = vld [vmem:[#allocation3 + $0x150] sm:$0xff]
        %v2795 = vld [vmem:[#allocation3 + $0x158] sm:$0xff]
        %v2796 = vld [vmem:[#allocation3 + $0x160] sm:$0xff]
        %v2797 = vld [vmem:[#allocation3 + $0x168] sm:$0xff]
        %v2798 = vld [vmem:[#allocation3 + $0x170] sm:$0xff]
        %v2799 = vld [vmem:[#allocation3 + $0x178] sm:$0xff]
        %v2800 = vld [vmem:[#allocation3 + $0x180] sm:$0xff]
        %v2801 = vld [vmem:[#allocation3 + $0x188] sm:$0xff]
        %v2802 = vld [vmem:[#allocation3 + $0x190] sm:$0xff]
        %v2803 = vld [vmem:[#allocation3 + $0x198] sm:$0xff]
        %v2804 = vld [vmem:[#allocation3 + $0x1a0] sm:$0xff]
        %v2805 = vld [vmem:[#allocation3 + $0x1a8] sm:$0xff]
        %v2806 = vld [vmem:[#allocation3 + $0x1b0] sm:$0xff]
        %v2807 = vld [vmem:[#allocation3 + $0x1b8] sm:$0xff]
        %v2808 = vld [vmem:[#allocation3 + $0x1c0] sm:$0xff]
        %v2809 = vld [vmem:[#allocation3 + $0x1c8] sm:$0xff]
        %v2810 = vld [vmem:[#allocation3 + $0x1d0] sm:$0xff]
        %v2811 = vld [vmem:[#allocation3 + $0x1d8] sm:$0xff]
        %v2812 = vld [vmem:[#allocation3 + $0x1e0] sm:$0xff]
        %v2813 = vld [vmem:[#allocation3 + $0x1e8] sm:$0xff]
        %v2814 = vld [vmem:[#allocation3 + $0x1f0] sm:$0xff]
        %v2815 = vld [vmem:[#allocation3 + $0x1f8] sm:$0xff]
        %v2816 = vld [vmem:[#allocation3 + $0x200] sm:$0xff]
        %v2817 = vld [vmem:[#allocation3 + $0x208] sm:$0xff]
        %v2818 = vld [vmem:[#allocation3 + $0x210] sm:$0xff]
        %v2819 = vld [vmem:[#allocation3 + $0x218] sm:$0xff]
        %v2820 = vld [vmem:[#allocation3 + $0x220] sm:$0xff]
        %v2821 = vld [vmem:[#allocation3 + $0x228] sm:$0xff]
        %v2822 = vld [vmem:[#allocation3 + $0x230] sm:$0xff]
        %v2823 = vld [vmem:[#allocation3 + $0x238] sm:$0xff]
        %v2824 = vld [vmem:[#allocation3 + $0x240] sm:$0xff]
        %v2825 = vld [vmem:[#allocation3 + $0x248] sm:$0xff]
        %v2826 = vld [vmem:[#allocation3 + $0x250] sm:$0xff]
        %v2827 = vld [vmem:[#allocation3 + $0x258] sm:$0xff]
        %v2828 = vld [vmem:[#allocation3 + $0x260] sm:$0xff]
        %v2829 = vld [vmem:[#allocation3 + $0x268] sm:$0xff]
        %v2830 = vld [vmem:[#allocation3 + $0x270] sm:$0xff]
        %v2831 = vld [vmem:[#allocation3 + $0x278] sm:$0xff]
        %v2832 = vld [vmem:[#allocation3 + $0x280] sm:$0xff]
        %v2833 = vld [vmem:[#allocation3 + $0x288] sm:$0xff]
        %v2834 = vld [vmem:[#allocation3 + $0x290] sm:$0xff]
        %v2835 = vld [vmem:[#allocation3 + $0x298] sm:$0xff]
        %v2836 = vld [vmem:[#allocation3 + $0x2a0] sm:$0xff]
        %v2837 = vld [vmem:[#allocation3 + $0x2a8] sm:$0xff]
        %v2838 = vld [vmem:[#allocation3 + $0x2b0] sm:$0xff]
        %v2839 = vld [vmem:[#allocation3 + $0x2b8] sm:$0xff]
        %v2840 = vld [vmem:[#allocation3 + $0x2c0] sm:$0xff]
        %v2841 = vld [vmem:[#allocation3 + $0x2c8] sm:$0xff]
        %v2842 = vld [vmem:[#allocation3 + $0x2d0] sm:$0xff]
        %v2843 = vld [vmem:[#allocation3 + $0x2d8] sm:$0xff]
        %v2844 = vld [vmem:[#allocation3 + $0x2e0] sm:$0xff]
        %v2845 = vld [vmem:[#allocation3 + $0x2e8] sm:$0xff]
        %v2846 = vld [vmem:[#allocation3 + $0x2f0] sm:$0xff]
        %v2847 = vld [vmem:[#allocation3 + $0x2f8] sm:$0xff]
        %v2848 = vld [vmem:[#allocation3 + $0x300] sm:$0xff]
        %v2849 = vld [vmem:[#allocation3 + $0x308] sm:$0xff]
        %v2850 = vld [vmem:[#allocation3 + $0x310] sm:$0xff]
        %v2851 = vld [vmem:[#allocation3 + $0x318] sm:$0xff]
        %v2852 = vld [vmem:[#allocation3 + $0x320] sm:$0xff]
        %v2853 = vld [vmem:[#allocation3 + $0x328] sm:$0xff]
        %v2854 = vld [vmem:[#allocation3 + $0x330] sm:$0xff]
        %v2855 = vld [vmem:[#allocation3 + $0x338] sm:$0xff]
        %v2856 = vld [vmem:[#allocation3 + $0x340] sm:$0xff]
        %v2857 = vld [vmem:[#allocation3 + $0x348] sm:$0xff]
        %v2858 = vld [vmem:[#allocation3 + $0x350] sm:$0xff]
        %v2859 = vld [vmem:[#allocation3 + $0x358] sm:$0xff]
        %v2860 = vpack.c.bf16 %v2756, %v2752
        %v2861 = vpack.c.bf16 %v2757, %v2753
        %v2862 = vpack.c.bf16 %v2758, %v2754
        %v2863 = vpack.c.bf16 %v2759, %v2755
        %v2864 = vpack.c.bf16 %v2764, %v2760
        %v2865 = vpack.c.bf16 %v2765, %v2761
        %v2866 = vpack.c.bf16 %v2766, %v2762
        %v2867 = vpack.c.bf16 %v2767, %v2763
        %v2868 = vpack.c.bf16 %v2772, %v2768
        %v2869 = vpack.c.bf16 %v2773, %v2769
        %v2870 = vpack.c.bf16 %v2774, %v2770
        %v2871 = vpack.c.bf16 %v2775, %v2771
        %v2872 = vpack.c.bf16 %v2780, %v2776
        %v2873 = vpack.c.bf16 %v2781, %v2777
        %v2874 = vpack.c.bf16 %v2782, %v2778
        %v2875 = vpack.c.bf16 %v2783, %v2779
        %v2876 = vpack.c.bf16 %v2788, %v2784
        %v2877 = vpack.c.bf16 %v2789, %v2785
        %v2878 = vpack.c.bf16 %v2790, %v2786
        %v2879 = vpack.c.bf16 %v2791, %v2787
        %v2880 = vpack.c.bf16 %v2796, %v2792
        %v2881 = vpack.c.bf16 %v2797, %v2793
        %v2882 = vpack.c.bf16 %v2798, %v2794
        %v2883 = vpack.c.bf16 %v2799, %v2795
        %v2884 = vpack.c.bf16 %v2804, %v2800
        %v2885 = vpack.c.bf16 %v2805, %v2801
        %v2886 = vpack.c.bf16 %v2806, %v2802
        %v2887 = vpack.c.bf16 %v2807, %v2803
        %v2888 = vpack.c.bf16 %v2812, %v2808
        %v2889 = vpack.c.bf16 %v2813, %v2809
        %v2890 = vpack.c.bf16 %v2814, %v2810
        %v2891 = vpack.c.bf16 %v2815, %v2811
        %v2892 = vpack.c.bf16 %v2820, %v2816
        %v2893 = vpack.c.bf16 %v2821, %v2817
        %v2894 = vpack.c.bf16 %v2822, %v2818
        %v2895 = vpack.c.bf16 %v2823, %v2819
        %v2896 = vpack.c.bf16 %v2828, %v2824
        %v2897 = vpack.c.bf16 %v2829, %v2825
        %v2898 = vpack.c.bf16 %v2830, %v2826
        %v2899 = vpack.c.bf16 %v2831, %v2827
        %v2900 = vpack.c.bf16 %v2836, %v2832
        %v2901 = vpack.c.bf16 %v2837, %v2833
        %v2902 = vpack.c.bf16 %v2838, %v2834
        %v2903 = vpack.c.bf16 %v2839, %v2835
        %v2904 = vpack.c.bf16 %v2844, %v2840
        %v2905 = vpack.c.bf16 %v2845, %v2841
        %v2906 = vpack.c.bf16 %v2846, %v2842
        %v2907 = vpack.c.bf16 %v2847, %v2843
        %v2908 = vpack.c.bf16 %v2852, %v2848
        %v2909 = vpack.c.bf16 %v2853, %v2849
        %v2910 = vpack.c.bf16 %v2854, %v2850
        %v2911 = vpack.c.bf16 %v2855, %v2851
        %v2912 = vpack.c.bf16 %v2856, %v2856
        %v2913 = vpack.c.bf16 %v2857, %v2857
        %v2914 = vpack.c.bf16 %v2858, %v2858
        %v2915 = vpack.c.bf16 %v2859, %v2859
        %2917 = vst [vmem:[#allocation1] ss:$4 sm:$0xff] %v2751
        %v2918 = vld.sshfl [vmem:[#allocation1] sm:$0xff pattern:$0x73625140]
        %v2919 = vld.sshfl [vmem:[#allocation1 + $0x8] sm:$0xff pattern:$0x73625140]
        %v2921 = vsel %vm1625, %v2919, 0
        %v2924 = vsel %vm316, %v2912, 0
        %v2927 = vsel %vm316, %v2913, 0
        %v2930 = vsel %vm316, %v2914, 0
        %v2933 = vsel %vm316, %v2915, 0
        %2935 = vmatpush.bf16.msra.mxu0 %v2888
        %2936 = vmatpush.bf16.msra.mxu0 %v2884
        %2937 = vmatpush.bf16.msra.mxu0 %v2880
        %2938 = vmatpush.bf16.msra.mxu0 %v2876
        %2939 = vmatpush.bf16.msra.mxu0 %v2872
        %2940 = vmatpush.bf16.msra.mxu0 %v2868
        %2941 = vmatpush.bf16.msra.mxu0 %v2864
        %2942 = vmatpush.bf16.msra.mxu0 %v2860
        %2943 = vmatmul.bf16.gmra.mxu0 %v2918
        %v2944 = vpop.f32.mrf.mxu0
        %v2945 = vadd.f32 0.0, %v2944
        %v2946 = vpop.f32.mrf.mxu0
        %2947 = vdwg.mxu0
        %2948 = vmatpush.bf16.msra.mxu0 0
        %2949 = vmatpush.bf16.msra.mxu0 0
        %2950 = vmatpush.bf16.msra.mxu0 %v2924
        %2951 = vmatpush.bf16.msra.mxu0 %v2908
        %2952 = vmatpush.bf16.msra.mxu0 %v2904
        %2953 = vmatpush.bf16.msra.mxu0 %v2900
        %2954 = vmatpush.bf16.msra.mxu0 %v2896
        %2955 = vmatpush.bf16.msra.mxu0 %v2892
        %2956 = vmatmul.bf16.gmra.mxu0 %v2921
        %v2957 = vpop.f32.mrf.mxu0
        %v2958 = vadd.f32 %v2945, %v2957
        %v2959 = vpop.f32.mrf.mxu0
        %2960 = vdwg.mxu0
        %2961 = vmatpush.bf16.msra.mxu0 %v2889
        %2962 = vmatpush.bf16.msra.mxu0 %v2885
        %2963 = vmatpush.bf16.msra.mxu0 %v2881
        %2964 = vmatpush.bf16.msra.mxu0 %v2877
        %2965 = vmatpush.bf16.msra.mxu0 %v2873
        %2966 = vmatpush.bf16.msra.mxu0 %v2869
        %2967 = vmatpush.bf16.msra.mxu0 %v2865
        %2968 = vmatpush.bf16.msra.mxu0 %v2861
        %2969 = vmatmul.bf16.gmra.mxu0 %v2918
        %v2970 = vpop.f32.mrf.mxu0
        %v2971 = vadd.f32 0.0, %v2970
        %v2972 = vpop.f32.mrf.mxu0
        %2973 = vdwg.mxu0
        %2974 = vmatpush.bf16.msra.mxu0 0
        %2975 = vmatpush.bf16.msra.mxu0 0
        %2976 = vmatpush.bf16.msra.mxu0 %v2927
        %2977 = vmatpush.bf16.msra.mxu0 %v2909
        %2978 = vmatpush.bf16.msra.mxu0 %v2905
        %2979 = vmatpush.bf16.msra.mxu0 %v2901
        %2980 = vmatpush.bf16.msra.mxu0 %v2897
        %2981 = vmatpush.bf16.msra.mxu0 %v2893
        %2982 = vmatmul.bf16.gmra.mxu0 %v2921
        %v2983 = vpop.f32.mrf.mxu0
        %v2984 = vadd.f32 %v2971, %v2983
        %v2985 = vpop.f32.mrf.mxu0
        %2986 = vdwg.mxu0
        %2987 = vmatpush.bf16.msra.mxu0 %v2890
        %2988 = vmatpush.bf16.msra.mxu0 %v2886
        %2989 = vmatpush.bf16.msra.mxu0 %v2882
        %2990 = vmatpush.bf16.msra.mxu0 %v2878
        %2991 = vmatpush.bf16.msra.mxu0 %v2874
        %2992 = vmatpush.bf16.msra.mxu0 %v2870
        %2993 = vmatpush.bf16.msra.mxu0 %v2866
        %2994 = vmatpush.bf16.msra.mxu0 %v2862
        %2995 = vmatmul.bf16.gmra.mxu0 %v2918
        %v2996 = vpop.f32.mrf.mxu0
        %v2997 = vadd.f32 0.0, %v2996
        %v2998 = vpop.f32.mrf.mxu0
        %2999 = vdwg.mxu0
        %3000 = vmatpush.bf16.msra.mxu0 0
        %3001 = vmatpush.bf16.msra.mxu0 0
        %3002 = vmatpush.bf16.msra.mxu0 %v2930
        %3003 = vmatpush.bf16.msra.mxu0 %v2910
        %3004 = vmatpush.bf16.msra.mxu0 %v2906
        %3005 = vmatpush.bf16.msra.mxu0 %v2902
        %3006 = vmatpush.bf16.msra.mxu0 %v2898
        %3007 = vmatpush.bf16.msra.mxu0 %v2894
        %3008 = vmatmul.bf16.gmra.mxu0 %v2921
        %v3009 = vpop.f32.mrf.mxu0
        %v3010 = vadd.f32 %v2997, %v3009
        %v3011 = vpop.f32.mrf.mxu0
        %3012 = vdwg.mxu0
        %3013 = vmatpush.bf16.msra.mxu0 %v2891
        %3014 = vmatpush.bf16.msra.mxu0 %v2887
        %3015 = vmatpush.bf16.msra.mxu0 %v2883
        %3016 = vmatpush.bf16.msra.mxu0 %v2879
        %3017 = vmatpush.bf16.msra.mxu0 %v2875
        %3018 = vmatpush.bf16.msra.mxu0 %v2871
        %3019 = vmatpush.bf16.msra.mxu0 %v2867
        %3020 = vmatpush.bf16.msra.mxu0 %v2863
        %3021 = vmatmul.bf16.gmra.mxu0 %v2918
        %v3022 = vpop.f32.mrf.mxu0
        %v3023 = vadd.f32 0.0, %v3022
        %v3024 = vpop.f32.mrf.mxu0
        %3025 = vdwg.mxu0
        %3026 = vmatpush.bf16.msra.mxu0 0
        %3027 = vmatpush.bf16.msra.mxu0 0
        %3028 = vmatpush.bf16.msra.mxu0 %v2933
        %3029 = vmatpush.bf16.msra.mxu0 %v2911
        %3030 = vmatpush.bf16.msra.mxu0 %v2907
        %3031 = vmatpush.bf16.msra.mxu0 %v2903
        %3032 = vmatpush.bf16.msra.mxu0 %v2899
        %3033 = vmatpush.bf16.msra.mxu0 %v2895
        %3034 = vmatmul.bf16.gmra.mxu0 %v2921
        %v3035 = vpop.f32.mrf.mxu0
        %v3036 = vadd.f32 %v3023, %v3035
        %v3037 = vpop.f32.mrf.mxu0
        %3038 = vdwg.mxu0
        %v3039 = vld [vmem:[%s4] sm:$0x1]
        %v3040 = vpack.c.bf16 %v2958, %v2958
        %v3041 = vpack.c.bf16 %v2984, %v2984
        %v3042 = vpack.c.bf16 %v3010, %v3010
        %v3043 = vpack.c.bf16 %v3036, %v3036
        %v3044 = vld [vmem:[%s5] sm:$0x3]
        %3046 = vset.pattern.permute.xlu0 0
        %3047 = vperm.xlu0 %3046, %v3044
        %v3048 = vpop.permute.xlu0 %3047
        %vm3050 = vcmask 31744
        %v3052 = vsel %vm3050, %v3039, 0
        %vm3054 = vcmask 1041408
        %v3056 = vsel %vm3054, %v3040, 0
        %v3059 = vsel %vm3054, %v3041, 0
        %v3062 = vsel %vm3054, %v3042, 0
        %v3065 = vsel %vm3054, %v3043, 0
        %3067 = vmatpush.bf16.msra.mxu0 0
        %3068 = vmatpush.bf16.msra.mxu0 0
        %3069 = vmatpush.bf16.msra.mxu0 0
        %3070 = vmatpush.bf16.msra.mxu0 0
        %3071 = vmatpush.bf16.msra.mxu0 0
        %3072 = vmatpush.bf16.msra.mxu0 0
        %3073 = vmatpush.bf16.msra.mxu0 0
        %3074 = vmatpush.bf16.msra.mxu0 %v3056
        %3075 = vmatmul.bf16.gmra.mxu0 %v3052
        %v3076 = vpop.f32.mrf.mxu0
        %v3077 = vadd.f32 %v3048, %v3076
        %v3078 = vpop.f32.mrf.mxu0
        %3079 = vdwg.mxu0
        %3080 = vmatpush.bf16.msra.mxu0 0
        %3081 = vmatpush.bf16.msra.mxu0 0
        %3082 = vmatpush.bf16.msra.mxu0 0
        %3083 = vmatpush.bf16.msra.mxu0 0
        %3084 = vmatpush.bf16.msra.mxu0 0
        %3085 = vmatpush.bf16.msra.mxu0 0
        %3086 = vmatpush.bf16.msra.mxu0 0
        %3087 = vmatpush.bf16.msra.mxu0 %v3059
        %3088 = vmatmul.bf16.gmra.mxu0 %v3052
        %v3089 = vpop.f32.mrf.mxu0
        %v3090 = vadd.f32 %v3048, %v3089
        %v3091 = vpop.f32.mrf.mxu0
        %3092 = vdwg.mxu0
        %3093 = vmatpush.bf16.msra.mxu0 0
        %3094 = vmatpush.bf16.msra.mxu0 0
        %3095 = vmatpush.bf16.msra.mxu0 0
        %3096 = vmatpush.bf16.msra.mxu0 0
        %3097 = vmatpush.bf16.msra.mxu0 0
        %3098 = vmatpush.bf16.msra.mxu0 0
        %3099 = vmatpush.bf16.msra.mxu0 0
        %3100 = vmatpush.bf16.msra.mxu0 %v3062
        %3101 = vmatmul.bf16.gmra.mxu0 %v3052
        %v3102 = vpop.f32.mrf.mxu0
        %v3103 = vadd.f32 %v3048, %v3102
        %v3104 = vpop.f32.mrf.mxu0
        %3105 = vdwg.mxu0
        %3106 = vmatpush.bf16.msra.mxu0 0
        %3107 = vmatpush.bf16.msra.mxu0 0
        %3108 = vmatpush.bf16.msra.mxu0 0
        %3109 = vmatpush.bf16.msra.mxu0 0
        %3110 = vmatpush.bf16.msra.mxu0 0
        %3111 = vmatpush.bf16.msra.mxu0 0
        %3112 = vmatpush.bf16.msra.mxu0 0
        %3113 = vmatpush.bf16.msra.mxu0 %v3065
        %3114 = vmatmul.bf16.gmra.mxu0 %v3052
        %v3115 = vpop.f32.mrf.mxu0
        %v3116 = vadd.f32 %v3048, %v3115
        %v3117 = vpop.f32.mrf.mxu0
        %3118 = vdwg.mxu0
        %s3119 = scalar_lea.vmem [#allocation4], 1
        %v3120 = vld [vmem:[%s3119] ss:$8 sm:$0xf]
        %v3121 = vand.u32 %v3120, 1
        %vm3122 = vcmp.ne.s32.totalorder %v3121, 0
        %v3123 = vshra.s32 %v3120, 1
        %v3124 = vand.u32 %v3123, 1
        %vm3125 = vcmp.ne.s32.totalorder %v3124, 0
        %v3126 = vshra.s32 %v3120, 2
        %v3127 = vand.u32 %v3126, 1
        %vm3128 = vcmp.ne.s32.totalorder %v3127, 0
        %v3129 = vshra.s32 %v3120, 3
        %v3130 = vand.u32 %v3129, 1
        %vm3131 = vcmp.ne.s32.totalorder %v3130, 0
        %v3132 = vshra.s32 %v3120, 4
        %v3133 = vand.u32 %v3132, 1
        %vm3134 = vcmp.ne.s32.totalorder %v3133, 0
        %v3135 = vshra.s32 %v3120, 5
        %v3136 = vand.u32 %v3135, 1
        %vm3137 = vcmp.ne.s32.totalorder %v3136, 0
        %3138 = vrot.lane.b32.xlu0 %v3077, 64
        %v3139 = vpop.permute.xlu0 %3138
        %3140 = vrot.lane.b32.xlu0 %v3090, 64
        %v3141 = vpop.permute.xlu0 %3140
        %3142 = vrot.lane.b32.xlu0 %v3103, 64
        %v3143 = vpop.permute.xlu0 %3142
        %3144 = vrot.lane.b32.xlu0 %v3116, 64
        %v3145 = vpop.permute.xlu0 %3144
        %v3146 = vlaneseq
        %v3147 = vand.u32 %v3146, 127
        %vm3148 = vcmp.lt.s32.totalorder %v3147, 64
        %v3149 = vsel %vm3148, %v3143, %v3145
        %v3150 = vsel %vm3148, %v3141, %v3143
        %v3151 = vsel %vm3148, %v3139, %v3141
        %v3152 = vsel %vm3148, %v3145, %v3139
        %v3153 = vsel %vm3122, 1, 0
        %v3154 = vperm.slane %v3153, 0
        %v3155 = vperm.slane %v3153, 1
        %v3156 = vperm.slane %v3153, 2
        %v3157 = vperm.slane %v3153, 3
        %vm3158 = vcmp.eq.s32.totalorder %v3154, 1
        %vm3159 = vcmp.eq.s32.totalorder %v3155, 1
        %vm3160 = vcmp.eq.s32.totalorder %v3156, 1
        %vm3161 = vcmp.eq.s32.totalorder %v3157, 1
        %v3162 = vsel %vm3158, %v3077, %v3152
        %v3163 = vsel %vm3159, %v3090, %v3151
        %v3164 = vsel %vm3160, %v3103, %v3150
        %v3165 = vsel %vm3161, %v3116, %v3149
        %v3166 = vmul.f32 %v3162, 0.25
        %v3167 = vmul.f32 %v3163, 0.25
        %v3168 = vmul.f32 %v3164, 0.25
        %v3169 = vmul.f32 %v3165, 0.25
        %v3170 = vmul.f32 %v3077, 0.75
        %v3171 = vmul.f32 %v3090, 0.75
        %v3172 = vmul.f32 %v3103, 0.75
        %v3173 = vmul.f32 %v3116, 0.75
        %v3174 = vadd.f32 %v3166, %v3170
        %v3175 = vadd.f32 %v3167, %v3171
        %v3176 = vadd.f32 %v3168, %v3172
        %v3177 = vadd.f32 %v3169, %v3173
        %3178 = vrot.lane.b32.xlu0 %v3174, 8
        %v3179 = vpop.permute.xlu0 %3178
        %3180 = vrot.lane.b32.xlu0 %v3175, 8
        %v3181 = vpop.permute.xlu0 %3180
        %3182 = vrot.lane.b32.xlu0 %v3176, 8
        %v3183 = vpop.permute.xlu0 %3182
        %3184 = vrot.lane.b32.xlu0 %v3177, 8
        %v3185 = vpop.permute.xlu0 %3184
        %vm3186 = vcmp.lt.s32.totalorder %v3147, 8
        %v3187 = vsel %vm3186, %v3183, %v3185
        %v3188 = vsel %vm3186, %v3181, %v3183
        %v3189 = vsel %vm3186, %v3179, %v3181
        %v3190 = vsel %vm3186, %v3185, %v3179
        %v3191 = vsel %vm3128, 1, 0
        %v3192 = vperm.slane %v3191, 0
        %v3193 = vperm.slane %v3191, 1
        %v3194 = vperm.slane %v3191, 2
        %v3195 = vperm.slane %v3191, 3
        %vm3196 = vcmp.eq.s32.totalorder %v3192, 1
        %vm3197 = vcmp.eq.s32.totalorder %v3193, 1
        %vm3198 = vcmp.eq.s32.totalorder %v3194, 1
        %vm3199 = vcmp.eq.s32.totalorder %v3195, 1
        %v3200 = vsel %vm3196, %v3174, %v3190
        %v3201 = vsel %vm3197, %v3175, %v3189
        %v3202 = vsel %vm3198, %v3176, %v3188
        %v3203 = vsel %vm3199, %v3177, %v3187
        %v3204 = vmul.f32 %v3200, 0.25
        %v3205 = vmul.f32 %v3201, 0.25
        %v3206 = vmul.f32 %v3202, 0.25
        %v3207 = vmul.f32 %v3203, 0.25
        %v3208 = vmul.f32 %v3174, 0.75
        %v3209 = vmul.f32 %v3175, 0.75
        %v3210 = vmul.f32 %v3176, 0.75
        %v3211 = vmul.f32 %v3177, 0.75
        %v3212 = vadd.f32 %v3204, %v3208
        %v3213 = vadd.f32 %v3205, %v3209
        %v3214 = vadd.f32 %v3206, %v3210
        %v3215 = vadd.f32 %v3207, %v3211
        %3216 = vrot.lane.b32.xlu0 %v3212, 1
        %v3217 = vpop.permute.xlu0 %3216
        %3218 = vrot.lane.b32.xlu0 %v3213, 1
        %v3219 = vpop.permute.xlu0 %3218
        %3220 = vrot.lane.b32.xlu0 %v3214, 1
        %v3221 = vpop.permute.xlu0 %3220
        %3222 = vrot.lane.b32.xlu0 %v3215, 1
        %v3223 = vpop.permute.xlu0 %3222
        %vm3224 = vcmp.lt.s32.totalorder %v3147, 1
        %v3225 = vsel %vm3224, %v3221, %v3223
        %v3226 = vsel %vm3224, %v3219, %v3221
        %v3227 = vsel %vm3224, %v3217, %v3219
        %v3228 = vsel %vm3224, %v3223, %v3217
        %v3229 = vsel %vm3134, 1, 0
        %v3230 = vperm.slane %v3229, 0
        %v3231 = vperm.slane %v3229, 1
        %v3232 = vperm.slane %v3229, 2
        %v3233 = vperm.slane %v3229, 3
        %vm3234 = vcmp.eq.s32.totalorder %v3230, 1
        %vm3235 = vcmp.eq.s32.totalorder %v3231, 1
        %vm3236 = vcmp.eq.s32.totalorder %v3232, 1
        %vm3237 = vcmp.eq.s32.totalorder %v3233, 1
        %v3238 = vsel %vm3234, %v3212, %v3228
        %v3239 = vsel %vm3235, %v3213, %v3227
        %v3240 = vsel %vm3236, %v3214, %v3226
        %v3241 = vsel %vm3237, %v3215, %v3225
        %v3242 = vmul.f32 %v3238, 0.25
        %v3243 = vmul.f32 %v3239, 0.25
        %v3244 = vmul.f32 %v3240, 0.25
        %v3245 = vmul.f32 %v3241, 0.25
        %v3246 = vmul.f32 %v3212, 0.75
        %v3247 = vmul.f32 %v3213, 0.75
        %v3248 = vmul.f32 %v3214, 0.75
        %v3249 = vmul.f32 %v3215, 0.75
        %v3250 = vadd.f32 %v3242, %v3246
        %v3251 = vadd.f32 %v3243, %v3247
        %v3252 = vadd.f32 %v3244, %v3248
        %v3253 = vadd.f32 %v3245, %v3249
        %3254 = vrot.lane.b32.xlu0 %v3212, 127
        %v3255 = vpop.permute.xlu0 %3254
        %3256 = vrot.lane.b32.xlu0 %v3213, 127
        %v3257 = vpop.permute.xlu0 %3256
        %3258 = vrot.lane.b32.xlu0 %v3214, 127
        %v3259 = vpop.permute.xlu0 %3258
        %3260 = vrot.lane.b32.xlu0 %v3215, 127
        %v3261 = vpop.permute.xlu0 %3260
        %vm3262 = vcmp.lt.s32.totalorder %v3147, 127
        %v3263 = vsel %vm3262, %v3259, %v3261
        %v3264 = vsel %vm3262, %v3257, %v3259
        %v3265 = vsel %vm3262, %v3255, %v3257
        %v3266 = vsel %vm3262, %v3261, %v3255
        %v3267 = vsel %vm3137, 1, 0
        %v3268 = vperm.slane %v3267, 0
        %v3269 = vperm.slane %v3267, 1
        %v3270 = vperm.slane %v3267, 2
        %v3271 = vperm.slane %v3267, 3
        %vm3272 = vcmp.eq.s32.totalorder %v3268, 1
        %vm3273 = vcmp.eq.s32.totalorder %v3269, 1
        %vm3274 = vcmp.eq.s32.totalorder %v3270, 1
        %vm3275 = vcmp.eq.s32.totalorder %v3271, 1
        %v3276 = vsel %vm3272, %v3212, %v3265
        %v3277 = vsel %vm3273, %v3213, %v3264
        %v3278 = vsel %vm3274, %v3214, %v3263
        %v3279 = vsel %vm3275, %v3215, %v3266
        %v3280 = vmul.f32 %v3276, 0.25
        %v3281 = vmul.f32 %v3277, 0.25
        %v3282 = vmul.f32 %v3278, 0.25
        %v3283 = vmul.f32 %v3279, 0.25
        %v3284 = vadd.f32 %v3246, %v3280
        %v3285 = vadd.f32 %v3247, %v3281
        %v3286 = vadd.f32 %v3248, %v3282
        %v3287 = vadd.f32 %v3249, %v3283
        %3288 = vrot.lane.b32.xlu0 %v3174, 120
        %v3289 = vpop.permute.xlu0 %3288
        %3290 = vrot.lane.b32.xlu0 %v3175, 120
        %v3291 = vpop.permute.xlu0 %3290
        %3292 = vrot.lane.b32.xlu0 %v3176, 120
        %v3293 = vpop.permute.xlu0 %3292
        %3294 = vrot.lane.b32.xlu0 %v3177, 120
        %v3295 = vpop.permute.xlu0 %3294
        %vm3296 = vcmp.lt.s32.totalorder %v3147, 120
        %v3297 = vsel %vm3296, %v3293, %v3295
        %v3298 = vsel %vm3296, %v3291, %v3293
        %v3299 = vsel %vm3296, %v3289, %v3291
        %v3300 = vsel %vm3296, %v3295, %v3289
        %v3301 = vsel %vm3131, 1, 0
        %v3302 = vperm.slane %v3301, 0
        %v3303 = vperm.slane %v3301, 1
        %v3304 = vperm.slane %v3301, 2
        %v3305 = vperm.slane %v3301, 3
        %vm3306 = vcmp.eq.s32.totalorder %v3302, 1
        %vm3307 = vcmp.eq.s32.totalorder %v3303, 1
        %vm3308 = vcmp.eq.s32.totalorder %v3304, 1
        %vm3309 = vcmp.eq.s32.totalorder %v3305, 1
        %v3310 = vsel %vm3306, %v3174, %v3299
        %v3311 = vsel %vm3307, %v3175, %v3298
        %v3312 = vsel %vm3308, %v3176, %v3297
        %v3313 = vsel %vm3309, %v3177, %v3300
        %v3314 = vmul.f32 %v3310, 0.25
        %v3315 = vmul.f32 %v3311, 0.25
        %v3316 = vmul.f32 %v3312, 0.25
        %v3317 = vmul.f32 %v3313, 0.25
        %v3318 = vadd.f32 %v3208, %v3314
        %v3319 = vadd.f32 %v3209, %v3315
        %v3320 = vadd.f32 %v3210, %v3316
        %v3321 = vadd.f32 %v3211, %v3317
        %3322 = vrot.lane.b32.xlu0 %v3318, 1
        %v3323 = vpop.permute.xlu0 %3322
        %3324 = vrot.lane.b32.xlu0 %v3319, 1
        %v3325 = vpop.permute.xlu0 %3324
        %3326 = vrot.lane.b32.xlu0 %v3320, 1
        %v3327 = vpop.permute.xlu0 %3326
        %3328 = vrot.lane.b32.xlu0 %v3321, 1
        %v3329 = vpop.permute.xlu0 %3328
        %v3330 = vsel %vm3224, %v3327, %v3329
        %v3331 = vsel %vm3224, %v3325, %v3327
        %v3332 = vsel %vm3224, %v3323, %v3325
        %v3333 = vsel %vm3224, %v3329, %v3323
        %v3334 = vsel %vm3234, %v3318, %v3333
        %v3335 = vsel %vm3235, %v3319, %v3332
        %v3336 = vsel %vm3236, %v3320, %v3331
        %v3337 = vsel %vm3237, %v3321, %v3330
        %v3338 = vmul.f32 %v3334, 0.25
        %v3339 = vmul.f32 %v3335, 0.25
        %v3340 = vmul.f32 %v3336, 0.25
        %v3341 = vmul.f32 %v3337, 0.25
        %v3342 = vmul.f32 %v3318, 0.75
        %v3343 = vmul.f32 %v3319, 0.75
        %v3344 = vmul.f32 %v3320, 0.75
        %v3345 = vmul.f32 %v3321, 0.75
        %v3346 = vadd.f32 %v3338, %v3342
        %v3347 = vadd.f32 %v3339, %v3343
        %v3348 = vadd.f32 %v3340, %v3344
        %v3349 = vadd.f32 %v3341, %v3345
        %3350 = vrot.lane.b32.xlu0 %v3318, 127
        %v3351 = vpop.permute.xlu0 %3350
        %3352 = vrot.lane.b32.xlu0 %v3319, 127
        %v3353 = vpop.permute.xlu0 %3352
        %3354 = vrot.lane.b32.xlu0 %v3320, 127
        %v3355 = vpop.permute.xlu0 %3354
        %3356 = vrot.lane.b32.xlu0 %v3321, 127
        %v3357 = vpop.permute.xlu0 %3356
        %v3358 = vsel %vm3262, %v3355, %v3357
        %v3359 = vsel %vm3262, %v3353, %v3355
        %v3360 = vsel %vm3262, %v3351, %v3353
        %v3361 = vsel %vm3262, %v3357, %v3351
        %v3362 = vsel %vm3272, %v3318, %v3360
        %v3363 = vsel %vm3273, %v3319, %v3359
        %v3364 = vsel %vm3274, %v3320, %v3358
        %v3365 = vsel %vm3275, %v3321, %v3361
        %v3366 = vmul.f32 %v3362, 0.25
        %v3367 = vmul.f32 %v3363, 0.25
        %v3368 = vmul.f32 %v3364, 0.25
        %v3369 = vmul.f32 %v3365, 0.25
        %v3370 = vadd.f32 %v3342, %v3366
        %v3371 = vadd.f32 %v3343, %v3367
        %v3372 = vadd.f32 %v3344, %v3368
        %v3373 = vadd.f32 %v3345, %v3369
        %v3374 = vsel %vm3125, 1, 0
        %v3375 = vperm.slane %v3374, 0
        %v3376 = vperm.slane %v3374, 1
        %v3377 = vperm.slane %v3374, 2
        %v3378 = vperm.slane %v3374, 3
        %vm3379 = vcmp.eq.s32.totalorder %v3375, 1
        %vm3380 = vcmp.eq.s32.totalorder %v3376, 1
        %vm3381 = vcmp.eq.s32.totalorder %v3377, 1
        %vm3382 = vcmp.eq.s32.totalorder %v3378, 1
        %v3383 = vsel %vm3379, %v3077, %v3151
        %v3384 = vsel %vm3380, %v3090, %v3150
        %v3385 = vsel %vm3381, %v3103, %v3149
        %v3386 = vsel %vm3382, %v3116, %v3152
        %v3387 = vmul.f32 %v3383, 0.25
        %v3388 = vmul.f32 %v3384, 0.25
        %v3389 = vmul.f32 %v3385, 0.25
        %v3390 = vmul.f32 %v3386, 0.25
        %v3391 = vadd.f32 %v3170, %v3387
        %v3392 = vadd.f32 %v3171, %v3388
        %v3393 = vadd.f32 %v3172, %v3389
        %v3394 = vadd.f32 %v3173, %v3390
        %3395 = vrot.lane.b32.xlu0 %v3391, 8
        %v3396 = vpop.permute.xlu0 %3395
        %3397 = vrot.lane.b32.xlu0 %v3392, 8
        %v3398 = vpop.permute.xlu0 %3397
        %3399 = vrot.lane.b32.xlu0 %v3393, 8
        %v3400 = vpop.permute.xlu0 %3399
        %3401 = vrot.lane.b32.xlu0 %v3394, 8
        %v3402 = vpop.permute.xlu0 %3401
        %v3403 = vsel %vm3186, %v3400, %v3402
        %v3404 = vsel %vm3186, %v3398, %v3400
        %v3405 = vsel %vm3186, %v3396, %v3398
        %v3406 = vsel %vm3186, %v3402, %v3396
        %v3407 = vsel %vm3196, %v3391, %v3406
        %v3408 = vsel %vm3197, %v3392, %v3405
        %v3409 = vsel %vm3198, %v3393, %v3404
        %v3410 = vsel %vm3199, %v3394, %v3403
        %v3411 = vmul.f32 %v3407, 0.25
        %v3412 = vmul.f32 %v3408, 0.25
        %v3413 = vmul.f32 %v3409, 0.25
        %v3414 = vmul.f32 %v3410, 0.25
        %v3415 = vmul.f32 %v3391, 0.75
        %v3416 = vmul.f32 %v3392, 0.75
        %v3417 = vmul.f32 %v3393, 0.75
        %v3418 = vmul.f32 %v3394, 0.75
        %v3419 = vadd.f32 %v3411, %v3415
        %v3420 = vadd.f32 %v3412, %v3416
        %v3421 = vadd.f32 %v3413, %v3417
        %v3422 = vadd.f32 %v3414, %v3418
        %3423 = vrot.lane.b32.xlu0 %v3419, 1
        %v3424 = vpop.permute.xlu0 %3423
        %3425 = vrot.lane.b32.xlu0 %v3420, 1
        %v3426 = vpop.permute.xlu0 %3425
        %3427 = vrot.lane.b32.xlu0 %v3421, 1
        %v3428 = vpop.permute.xlu0 %3427
        %3429 = vrot.lane.b32.xlu0 %v3422, 1
        %v3430 = vpop.permute.xlu0 %3429
        %v3431 = vsel %vm3224, %v3428, %v3430
        %v3432 = vsel %vm3224, %v3426, %v3428
        %v3433 = vsel %vm3224, %v3424, %v3426
        %v3434 = vsel %vm3224, %v3430, %v3424
        %v3435 = vsel %vm3234, %v3419, %v3434
        %v3436 = vsel %vm3235, %v3420, %v3433
        %v3437 = vsel %vm3236, %v3421, %v3432
        %v3438 = vsel %vm3237, %v3422, %v3431
        %v3439 = vmul.f32 %v3435, 0.25
        %v3440 = vmul.f32 %v3436, 0.25
        %v3441 = vmul.f32 %v3437, 0.25
        %v3442 = vmul.f32 %v3438, 0.25
        %v3443 = vmul.f32 %v3419, 0.75
        %v3444 = vmul.f32 %v3420, 0.75
        %v3445 = vmul.f32 %v3421, 0.75
        %v3446 = vmul.f32 %v3422, 0.75
        %v3447 = vadd.f32 %v3439, %v3443
        %v3448 = vadd.f32 %v3440, %v3444
        %v3449 = vadd.f32 %v3441, %v3445
        %v3450 = vadd.f32 %v3442, %v3446
        %3451 = vrot.lane.b32.xlu0 %v3419, 127
        %v3452 = vpop.permute.xlu0 %3451
        %3453 = vrot.lane.b32.xlu0 %v3420, 127
        %v3454 = vpop.permute.xlu0 %3453
        %3455 = vrot.lane.b32.xlu0 %v3421, 127
        %v3456 = vpop.permute.xlu0 %3455
        %3457 = vrot.lane.b32.xlu0 %v3422, 127
        %v3458 = vpop.permute.xlu0 %3457
        %v3459 = vsel %vm3262, %v3456, %v3458
        %v3460 = vsel %vm3262, %v3454, %v3456
        %v3461 = vsel %vm3262, %v3452, %v3454
        %v3462 = vsel %vm3262, %v3458, %v3452
        %v3463 = vsel %vm3272, %v3419, %v3461
        %v3464 = vsel %vm3273, %v3420, %v3460
        %v3465 = vsel %vm3274, %v3421, %v3459
        %v3466 = vsel %vm3275, %v3422, %v3462
        %v3467 = vmul.f32 %v3463, 0.25
        %v3468 = vmul.f32 %v3464, 0.25
        %v3469 = vmul.f32 %v3465, 0.25
        %v3470 = vmul.f32 %v3466, 0.25
        %v3471 = vadd.f32 %v3443, %v3467
        %v3472 = vadd.f32 %v3444, %v3468
        %v3473 = vadd.f32 %v3445, %v3469
        %v3474 = vadd.f32 %v3446, %v3470
        %3475 = vrot.lane.b32.xlu0 %v3391, 120
        %v3476 = vpop.permute.xlu0 %3475
        %3477 = vrot.lane.b32.xlu0 %v3392, 120
        %v3478 = vpop.permute.xlu0 %3477
        %3479 = vrot.lane.b32.xlu0 %v3393, 120
        %v3480 = vpop.permute.xlu0 %3479
        %3481 = vrot.lane.b32.xlu0 %v3394, 120
        %v3482 = vpop.permute.xlu0 %3481
        %v3483 = vsel %vm3296, %v3480, %v3482
        %v3484 = vsel %vm3296, %v3478, %v3480
        %v3485 = vsel %vm3296, %v3476, %v3478
        %v3486 = vsel %vm3296, %v3482, %v3476
        %v3487 = vsel %vm3306, %v3391, %v3485
        %v3488 = vsel %vm3307, %v3392, %v3484
        %v3489 = vsel %vm3308, %v3393, %v3483
        %v3490 = vsel %vm3309, %v3394, %v3486
        %v3491 = vmul.f32 %v3487, 0.25
        %v3492 = vmul.f32 %v3488, 0.25
        %v3493 = vmul.f32 %v3489, 0.25
        %v3494 = vmul.f32 %v3490, 0.25
        %v3495 = vadd.f32 %v3415, %v3491
        %v3496 = vadd.f32 %v3416, %v3492
        %v3497 = vadd.f32 %v3417, %v3493
        %v3498 = vadd.f32 %v3418, %v3494
        %3499 = vrot.lane.b32.xlu0 %v3495, 1
        %v3500 = vpop.permute.xlu0 %3499
        %3501 = vrot.lane.b32.xlu0 %v3496, 1
        %v3502 = vpop.permute.xlu0 %3501
        %3503 = vrot.lane.b32.xlu0 %v3497, 1
        %v3504 = vpop.permute.xlu0 %3503
        %3505 = vrot.lane.b32.xlu0 %v3498, 1
        %v3506 = vpop.permute.xlu0 %3505
        %v3507 = vsel %vm3224, %v3504, %v3506
        %v3508 = vsel %vm3224, %v3502, %v3504
        %v3509 = vsel %vm3224, %v3500, %v3502
        %v3510 = vsel %vm3224, %v3506, %v3500
        %v3511 = vsel %vm3234, %v3495, %v3510
        %v3512 = vsel %vm3235, %v3496, %v3509
        %v3513 = vsel %vm3236, %v3497, %v3508
        %v3514 = vsel %vm3237, %v3498, %v3507
        %v3515 = vmul.f32 %v3511, 0.25
        %v3516 = vmul.f32 %v3512, 0.25
        %v3517 = vmul.f32 %v3513, 0.25
        %v3518 = vmul.f32 %v3514, 0.25
        %v3519 = vmul.f32 %v3495, 0.75
        %v3520 = vmul.f32 %v3496, 0.75
        %v3521 = vmul.f32 %v3497, 0.75
        %v3522 = vmul.f32 %v3498, 0.75
        %v3523 = vadd.f32 %v3515, %v3519
        %v3524 = vadd.f32 %v3516, %v3520
        %v3525 = vadd.f32 %v3517, %v3521
        %v3526 = vadd.f32 %v3518, %v3522
        %3527 = vrot.lane.b32.xlu0 %v3495, 127
        %v3528 = vpop.permute.xlu0 %3527
        %3529 = vrot.lane.b32.xlu0 %v3496, 127
        %v3530 = vpop.permute.xlu0 %3529
        %3531 = vrot.lane.b32.xlu0 %v3497, 127
        %v3532 = vpop.permute.xlu0 %3531
        %3533 = vrot.lane.b32.xlu0 %v3498, 127
        %v3534 = vpop.permute.xlu0 %3533
        %v3535 = vsel %vm3262, %v3532, %v3534
        %v3536 = vsel %vm3262, %v3530, %v3532
        %v3537 = vsel %vm3262, %v3528, %v3530
        %v3538 = vsel %vm3262, %v3534, %v3528
        %v3539 = vsel %vm3272, %v3495, %v3537
        %v3540 = vsel %vm3273, %v3496, %v3536
        %v3541 = vsel %vm3274, %v3497, %v3535
        %v3542 = vsel %vm3275, %v3498, %v3538
        %v3543 = vmul.f32 %v3539, 0.25
        %v3544 = vmul.f32 %v3540, 0.25
        %v3545 = vmul.f32 %v3541, 0.25
        %v3546 = vmul.f32 %v3542, 0.25
        %v3547 = vadd.f32 %v3519, %v3543
        %v3548 = vadd.f32 %v3520, %v3544
        %v3549 = vadd.f32 %v3521, %v3545
        %v3550 = vadd.f32 %v3522, %v3546
        %v3555 = vrot.slane %v3284, 6
        %v3556 = vrot.slane %v3285, 6
        %v3557 = vrot.slane %v3286, 6
        %v3558 = vrot.slane %v3287, 6
        %v3567 = vrot.slane %v3346, 4
        %v3568 = vrot.slane %v3347, 4
        %v3569 = vrot.slane %v3348, 4
        %v3570 = vrot.slane %v3349, 4
        %v3579 = vrot.slane %v3370, 2
        %v3580 = vrot.slane %v3371, 2
        %v3581 = vrot.slane %v3372, 2
        %v3582 = vrot.slane %v3373, 2
        %v3591 = vrot.slane %v3471, 6
        %v3592 = vrot.slane %v3472, 6
        %v3593 = vrot.slane %v3473, 6
        %v3594 = vrot.slane %v3474, 6
        %v3603 = vrot.slane %v3523, 4
        %v3604 = vrot.slane %v3524, 4
        %v3605 = vrot.slane %v3525, 4
        %v3606 = vrot.slane %v3526, 4
        %v3615 = vrot.slane %v3547, 2
        %v3616 = vrot.slane %v3548, 2
        %v3617 = vrot.slane %v3549, 2
        %v3618 = vrot.slane %v3550, 2
        %v3623 = vsel %vm3054, %v3250, %v3555
        %v3624 = vsel %vm3054, %v3251, %v3556
        %v3625 = vsel %vm3054, %v3252, %v3557
        %v3626 = vsel %vm3054, %v3253, %v3558
        %v3627 = vsel %vm316, %v3623, %v3567
        %v3628 = vsel %vm316, %v3624, %v3568
        %v3629 = vsel %vm316, %v3625, %v3569
        %v3630 = vsel %vm316, %v3626, %v3570
        %vm3631 = vcmask 1045504
        %v3632 = vsel %vm3631, %v3627, %v3579
        %v3633 = vsel %vm3631, %v3628, %v3580
        %v3634 = vsel %vm3631, %v3629, %v3581
        %v3635 = vsel %vm3631, %v3630, %v3582
        %v3636 = vsel %vm3054, %v3447, %v3591
        %v3637 = vsel %vm3054, %v3448, %v3592
        %v3638 = vsel %vm3054, %v3449, %v3593
        %v3639 = vsel %vm3054, %v3450, %v3594
        %v3640 = vsel %vm316, %v3636, %v3603
        %v3641 = vsel %vm316, %v3637, %v3604
        %v3642 = vsel %vm316, %v3638, %v3605
        %v3643 = vsel %vm316, %v3639, %v3606
        %v3644 = vsel %vm3631, %v3640, %v3615
        %v3645 = vsel %vm3631, %v3641, %v3616
        %v3646 = vsel %vm3631, %v3642, %v3617
        %v3647 = vsel %vm3631, %v3643, %v3618
        %3648 = vst [vmem:[%s266] sm:$0xff] %v3632
        %3649 = vst [vmem:[%s266 + $0x8] sm:$0xff] %v3633
        %3650 = vst [vmem:[%s266 + $0x10] sm:$0xff] %v3634
        %3651 = vst [vmem:[%s266 + $0x18] sm:$0xff] %v3635
        %3652 = vst [vmem:[%s266 + $0x20] sm:$0xff] %v3644
        %3653 = vst [vmem:[%s266 + $0x28] sm:$0xff] %v3645
        %3654 = vst [vmem:[%s266 + $0x30] sm:$0xff] %v3646
        %3655 = vst [vmem:[%s266 + $0x38] sm:$0xff] %v3647
        %p3656 = scmp.lt.s32.totalorder %s18, 1
        %s3657 = scalar_select %p3656, %s18, 1
        %s3658 = smul.addr %s3657, 8
        %s3659 = smul.addr %s3658, 8
        %s3660 = scalar_lea.vmem %s6, %s3659
        // Predicated region
        $region49: #{_decoder_forward.1} parent=43 // pred_check
          %p3661 = pneg %p167
        $region50: #{_decoder_forward.1} parent=43 // pred_check_branch
          %3663 = sbr.rel (%p3661) target = $region52
        $region51: #{_decoder_forward.1} parent=43 // pred_region
          _
        $region52: #{_decoder_forward.1} parent=43 // pred_fallthru
          _
      $region44: #{_decoder_forward.1} parent=5 // pred_fallthru
        _
      %p3664 = scmp.le.s32.totalorder 2, %s13
      // Predicated region
      $region53: #{_decoder_forward.1} parent=5 // pred_check
        %p3665 = pneg %p3664
      $region54: #{_decoder_forward.1} parent=5 // pred_check_branch
        %3667 = sbr.rel (%p3665) target = $region56
      $region55: #{_decoder_forward.1} parent=5 // pred_region
        %s3668 = ssub.s32 %s13, 2
        // Predicated region
        $region57: #{_decoder_forward.1} parent=55 // pred_check
          %p3669 = pneg %p173
        $region58: #{_decoder_forward.1} parent=55 // pred_check_branch
          %3671 = sbr.rel (%p3669) target = $region60
        $region59: #{_decoder_forward.1} parent=55 // pred_region
          %p3672 = scmp.lt.s32.totalorder %s19, 1
          %s3673 = scalar_select %p3672, %s19, 1
          %s3674 = smul.addr %s3673, 8
          %s3675 = smul.addr %s3674, 8
          %s3676 = scalar_lea.vmem %s6, %s3675
        $region60: #{_decoder_forward.1} parent=55 // pred_fallthru
          _
      $region56: #{_decoder_forward.1} parent=5 // pred_fallthru
        _
    $region6: #{_decoder_forward.1} parent=1 // loop_footer
      %s17 = sadd.s32 1, %s13
    $region7: #{_decoder_forward.1} parent=1 // loop_footer_branch
      %12 = sbr.rel target = $region3
    $region8: #{_decoder_forward.1} parent=1 // loop_exit
      _
    %3677 = vsyncpa [#allocation5], 1
    %s3678 = scalar_lea.sflag [#allocation5], 1
    %3679 = vsyncpa %s3678, 1

</llo_original>
